<compile_context>
chip_gen: v7x
topology: tpu7x:2x2x1
jax: 0.10.0
libtpu: 0.0.40
codegen_flags: <defaults>
</compile_context>

<pallas_src>
import math

import jax
import jax.numpy as jnp
from jax.experimental import pallas as pl
from jax.experimental.pallas import tpu as pltpu

_VMEM_LIMIT = 40 * 1024 * 1024   # safe on v5e/v6e (128 MiB) and v7x (64 MiB)
_LANE = 128


def _rup(n, m=_LANE):
    return ((n + m - 1) // m) * m


# ----------------------------------------------------------------------------
# Input prep: pad channels to 128, pack scale/shift into a slab, split attn/fc
# weights per branch (so the concatenated encoder output is never materialized)
# ----------------------------------------------------------------------------
def _prep_fused_inputs(params, E):
    chans = params["channels"]
    n_br = len(chans)
    Ep = _rup(E)

    # pass 1: channel extents / halo size
    cmax, pmax = E, 0
    for ch in chans:
        K = int(ch["base_w"].shape[0])
        # TODO(synk): even filter sizes change the output length in PyTorch; unsupported.
        assert K % 2 == 1, "filter sizes must be odd"
        pmax = max(pmax, K // 2)
        for rb in ch["res_blocks"]:
            cmax = max(cmax, int(rb["w1"].shape[1]), int(rb["w1"].shape[2]))
    CMAXP = _rup(cmax)
    PAD = max(8, ((pmax + 7) // 8) * 8)           # sublane-aligned halo rows

    # pass 2: padded conv weights + packed scale/shift slab
    conv_ws, slab_rows, meta, br_widths = [], [], [], []

    def add_conv(w, scale, shift):
        K, cin, cout = (int(d) for d in w.shape)
        cin_p, cout_p = _rup(cin), _rup(cout)
        wp = jnp.zeros((K, cin_p, cout_p), jnp.float32).at[:, :cin, :cout].set(w)
        conv_ws.append(wp.astype(jnp.bfloat16))
        slab_rows.append(jnp.zeros((CMAXP,), jnp.float32).at[:cout].set(scale))
        slab_rows.append(jnp.zeros((CMAXP,), jnp.float32).at[:cout].set(shift))
        return cin_p, cout_p

    for ch in chans:
        K = int(ch["base_w"].shape[0])
        add_conv(ch["base_w"], ch["base_scale"], ch["base_shift"])
        layers, width = [], E
        for rb in ch["res_blocks"]:
            cin_p, cout_p = add_conv(rb["w1"], rb["s1"], rb["t1"])   # conv1 + BN1
            add_conv(rb["w2"], rb["s2"], rb["t2"])                   # conv2 + BN2
            add_conv(rb["ws"], rb["ss"], rb["ts"])                   # 1x1 shortcut + BN
            layers.append((cin_p, cout_p))
            width = int(rb["w1"].shape[2])
        meta.append({"K": K, "layers": tuple(layers)})
        br_widths.append(width)

    F = br_widths[0]
    assert all(w == F for w in br_widths), "branches must share an output width"
    Fp = _rup(F)
    slab = jnp.stack(slab_rows, axis=0)                        # (2*n_convs, CMAXP)

    A = int(params["att_w1"].shape[1])                         # attention_size
    Ap = _rup(A)
    Y = int(params["fc_w"].shape[1])

    def stack_branch_rows(w, ncols):
        # split the encoder dim into per-branch row blocks, zero-pad rows to Fp
        blocks = []
        for b in range(n_br):
            blk = jnp.zeros((Fp, ncols), jnp.float32)
            blk = blk.at[:F, :w.shape[1]].set(w[b * F:(b + 1) * F, :])
            blocks.append(blk)
        return jnp.stack(blocks, axis=0).astype(jnp.bfloat16)  # (n_br, Fp, ncols)

    w1s = stack_branch_rows(params["att_w1"], Ap)              # (n_br, Fp, Ap)
    fws = stack_branch_rows(params["fc_w"], Y)                 # (n_br, Fp, Y)
    b1 = jnp.zeros((1, Ap), jnp.float32).at[0, :A].set(params["att_b1"])
    wc = jnp.zeros((1, Ap), jnp.float32).at[0, :A].set(params["att_wc"])
    # att_bc shifts every logit equally -> softmax-invariant -> dropped from kernel.
    fb = params["fc_b"].reshape(1, Y).astype(jnp.float32)

    dims = dict(Ep=Ep, CMAXP=CMAXP, PAD=PAD, Fp=Fp, Ap=Ap, Y=Y, n_br=n_br)
    return meta, conv_ws, slab, w1s, b1, wc, fws, fb, dims


# ----------------------------------------------------------------------------
# Fused kernel: MultiResCNN branches + attention pooling + fc, one batch per step
# ----------------------------------------------------------------------------
def _make_fused_kernel(meta, dims, L):
    Ep, CMAXP, PAD = dims["Ep"], dims["CMAXP"], dims["PAD"]
    Ap, Y, n_br = dims["Ap"], dims["Y"], dims["n_br"]
    n_convs = sum(1 + 3 * len(m["layers"]) for m in meta)
    relu_out = (Y == 1)

    def kernel(x_ref, *refs):
        conv_refs = refs[:n_convs]
        slab_ref, w1_ref, b1_ref, wc_ref, fw_ref, fb_ref = refs[n_convs:n_convs + 6]
        o_ref = refs[n_convs + 6]            # (1, 1, Y)
        xp_ref = refs[n_convs + 7]           # (PAD + L + PAD, CMAXP) f32 scratch

        # Zero the halo rows every step: under megacore each core has its own
        # scratch, so gating this on program_id(0)==0 would leave one core's
        # halos uninitialized. Cost is just 2*PAD full-lane rows.
        zeros_halo = jnp.zeros((PAD, CMAXP), jnp.float32)
        xp_ref[:PAD, :] = zeros_halo
        xp_ref[PAD + L:, :] = zeros_halo

        conv_i = [0]

        def next_w_scale_shift(cout_p):
            i = conv_i[0]
            conv_i[0] += 1
            return (conv_refs[i],
                    slab_ref[2 * i:2 * i + 1, :cout_p],
                    slab_ref[2 * i + 1:2 * i + 2, :cout_p])

        def same_conv(h, K, cin_p, cout_p, apply_tanh):
            # "same" conv (stride 1, odd K) + folded BN scale/shift (+ optional
            # tanh). K accumulated per-tap MXU matmuls on slices of the zero-halo
            # scratch; f32 accumulation, bf16 operands.
            w_ref, scale, shift = next_w_scale_shift(cout_p)
            half = K // 2
            xp_ref[PAD:PAD + L, :cin_p] = h              # place between zero halos
            y = jnp.zeros((L, cout_p), jnp.float32)
            for t in range(K):
                s = PAD + t - half
                win = xp_ref[s:s + L, :cin_p].astype(jnp.bfloat16)
                y = y + jnp.dot(win, w_ref[t], preferred_element_type=jnp.float32)
            y = y * scale + shift
            return jnp.tanh(y) if apply_tanh else y

        def shortcut_1x1(h_b16, cout_p):
            w_ref, scale, shift = next_w_scale_shift(cout_p)
            y = jnp.dot(h_b16, w_ref[0], preferred_element_type=jnp.float32)
            return y * scale + shift

        # ---- MultiResCNN branches (fully unrolled; dropout = identity) ----
        x = x_ref[0]                                     # (L, Ep) f32
        att_pre = jnp.zeros((L, Ap), jnp.float32)
        branch_out = []
        for bi, m in enumerate(meta):
            K = m["K"]
            h = same_conv(x, K, Ep, Ep, True)            # tanh(baseconv(x))
            for cin_p, cout_p in m["layers"]:
                h_b16 = h.astype(jnp.bfloat16)
                left = same_conv(h, K, cin_p, cout_p, True)       # conv1+BN+tanh
                left = same_conv(left, K, cout_p, cout_p, False)  # conv2+BN
                h = jnp.tanh(left + shortcut_1x1(h_b16, cout_p))  # residual merge
            h_b16 = h.astype(jnp.bfloat16)
            branch_out.append(h_b16)
            # fused attention projection: accumulate enc @ W1 branch-block by block
            att_pre = att_pre + jnp.dot(h_b16, w1_ref[bi],
                                        preferred_element_type=jnp.float32)

        # ---- attention-with-context pooling (unmasked softmax over L) + fc ----
        att = jnp.tanh(att_pre + b1_ref[...])                        # (L, Ap)
        logits = jnp.sum(att * wc_ref[...], axis=-1, keepdims=True)  # (L, 1)
        m_max = jnp.max(logits, axis=0, keepdims=True)
        p = jnp.exp(logits - m_max)                                  # unnormalized
        denom = jnp.sum(p, axis=0, keepdims=True)                    # (1, 1)
        y = jnp.zeros((1, Y), jnp.float32)
        for bi in range(n_br):
            # weighted sum over L; runs once per batch step (off the critical path)
            pooled = jnp.sum(p * branch_out[bi], axis=0, keepdims=True)   # (1, Fp)
            y = y + jnp.dot(pooled.astype(jnp.bfloat16), fw_ref[bi],
                            preferred_element_type=jnp.float32)
        y = y / denom + fb_ref[...]                      # exact softmax normalization
        if relu_out:                                     # FlatModel: Y == 1 path
            y = jnp.maximum(y, 0.0)
        o_ref[...] = y.reshape(o_ref.shape)

    return kernel


# ----------------------------------------------------------------------------
# Forward pass: ONE pallas_call (embedding gather stays in XLA)
# ----------------------------------------------------------------------------
def flat_model_forward(params, tokens):
    """tokens: (B, L) int32 -> (B, Y) f32 (squeezed when Y == 1)."""
    E = int(params["embed"].shape[1])
    meta, conv_ws, slab, w1s, b1, wc, fws, fb, dims = _prep_fused_inputs(params, E)
    Ep, CMAXP, PAD, Y = dims["Ep"], dims["CMAXP"], dims["PAD"], dims["Y"]

    # Pad the embedding table once so the gather already emits lane-dense rows.
    emb = params["embed"]
    if Ep > E:
        emb = jnp.pad(emb, ((0, 0), (0, Ep - E)))
    # Embedding gather is data-dependent -> plain-JAX glue outside the kernel.
    x = jnp.take(emb, tokens, axis=0).astype(jnp.float32)      # (B, L, Ep)
    B, L, _ = x.shape

    flat = list(conv_ws) + [slab, w1s, b1, wc, fws, fb]
    in_specs = [pl.BlockSpec((1, L, Ep), lambda b: (b, 0, 0))]
    for a in flat:   # weights: full blocks with constant index maps
        in_specs.append(pl.BlockSpec(a.shape, lambda b, _nd=a.ndim: (0,) * _nd))

    out = pl.pallas_call(
        _make_fused_kernel(meta, dims, L),
        out_shape=jax.ShapeDtypeStruct((B, 1, Y), jnp.float32),
        grid_spec=pltpu.PrefetchScalarGridSpec(
            num_scalar_prefetch=0,
            grid=(B,),                                         # pipelined over batch
            in_specs=in_specs,
            out_specs=pl.BlockSpec((1, 1, Y), lambda b: (b, 0, 0)),
            scratch_shapes=[pltpu.VMEM((2 * PAD + L, CMAXP), jnp.float32)]),
        compiler_params=pltpu.CompilerParams(
            dimension_semantics=("parallel",),                 # megacore / dual-TC
            vmem_limit_bytes=_VMEM_LIMIT),
    )(x, *flat)
    # TODO(synk): for very long L, additionally tile L inside the kernel (halo'd
    # conv blocks + online softmax) so per-step VMEM stays within v7x's 64 MiB.

    y = out.reshape(B, Y)
    if Y == 1:
        y = jnp.squeeze(y)   # matches torch.relu(y_hat).squeeze(); relu done in-kernel
    return y


# ----------------------------------------------------------------------------
# Parameter init (deterministic, shapes follow the PyTorch module __init__)
# ----------------------------------------------------------------------------
def _fold_bn(gamma, beta, mean, var, eps=1e-5):
    scale = gamma / jnp.sqrt(var + eps)
    shift = beta - mean * scale
    return scale, shift


def init_params(key, Y, filter_num, filter_sizes, num_layers, vocab_size, embed_dim):
    kernels = [int(k) for k in filter_sizes.split(",")]
    conv_dict = {1: [embed_dim, filter_num],
                 2: [embed_dim, 100, filter_num],
                 3: [embed_dim, 150, 100, filter_num],
                 4: [embed_dim, 200, 150, 100, filter_num]}
    encode_dim = filter_num * len(kernels)

    keys = iter(jax.random.split(key, 256))
    nk = lambda: next(keys)

    def uniform(shape, bound):
        return jax.random.uniform(nk(), shape, jnp.float32, -bound, bound)

    def conv_w(K, cin, cout):
        return uniform((K, cin, cout), 1.0 / math.sqrt(cin * K))

    def xavier(shape):
        return uniform(shape, math.sqrt(6.0 / (shape[0] + shape[-1])))

    ones = lambda n: jnp.ones((n,), jnp.float32)
    zeros = lambda n: jnp.zeros((n,), jnp.float32)

    params = {"embed": 0.1 * jax.random.normal(nk(), (vocab_size, embed_dim), jnp.float32)}

    channels = []
    for K in kernels:
        ch = {"base_w": conv_w(K, embed_dim, embed_dim),
              "base_scale": ones(embed_dim),                                        # no BN here
              "base_shift": uniform((embed_dim,), 1.0 / math.sqrt(embed_dim * K)),  # conv bias
              "res_blocks": []}
        dims = conv_dict[num_layers]
        for idx in range(num_layers):
            cin, cout = dims[idx], dims[idx + 1]
            s1, t1 = _fold_bn(ones(cout), zeros(cout), zeros(cout), ones(cout))
            s2, t2 = _fold_bn(ones(cout), zeros(cout), zeros(cout), ones(cout))
            ss, ts = _fold_bn(ones(cout), zeros(cout), zeros(cout), ones(cout))
            ch["res_blocks"].append({
                "w1": conv_w(K, cin, cout), "s1": s1, "t1": t1,   # conv1 (no bias) + BN1
                "w2": conv_w(K, cout, cout), "s2": s2, "t2": t2,  # conv2 (no bias) + BN2
                "ws": conv_w(1, cin, cout), "ss": ss, "ts": ts,   # 1x1 shortcut + BN
            })
        channels.append(ch)
    params["channels"] = channels

    params["att_w1"] = xavier((encode_dim, encode_dim))
    params["att_b1"] = zeros(encode_dim)
    params["att_wc"] = xavier((encode_dim, 1)).reshape(encode_dim)
    params["att_bc"] = zeros(1)
    params["fc_w"] = uniform((encode_dim, Y), 1.0 / math.sqrt(encode_dim))
    params["fc_b"] = uniform((Y,), 1.0 / math.sqrt(encode_dim))
    return params


# ----------------------------------------------------------------------------
# Pure-JAX f32 reference for sanity checking
# ----------------------------------------------------------------------------
def _same_conv_ref(x, w, scale, shift, apply_tanh):
    K, p, L = w.shape[0], w.shape[0] // 2, x.shape[1]
    xp = jnp.pad(x, ((0, 0), (p, p), (0, 0)))
    y = jnp.zeros((x.shape[0], L, w.shape[2]), jnp.float32)
    for t in range(K):
        y = y + jnp.einsum("blc,co->blo", xp[:, t:t + L, :], w[t])
    y = y * scale.reshape(1, 1, -1) + shift.reshape(1, 1, -1)
    return jnp.tanh(y) if apply_tanh else y


def flat_model_reference(params, tokens):
    x = jnp.take(params["embed"], tokens, axis=0)
    outs = []
    for ch in params["channels"]:
        h = _same_conv_ref(x, ch["base_w"], ch["base_scale"], ch["base_shift"], True)
        for rb in ch["res_blocks"]:
            left = _same_conv_ref(h, rb["w1"], rb["s1"], rb["t1"], True)
            left = _same_conv_ref(left, rb["w2"], rb["s2"], rb["t2"], False)
            sc = _same_conv_ref(h, rb["ws"], rb["ss"], rb["ts"], False)
            h = jnp.tanh(left + sc)
        outs.append(h)
    enc = jnp.concatenate(outs, axis=-1)
    att = jnp.tanh(jnp.einsum("bld,de->ble", enc, params["att_w1"])
                   + params["att_b1"][None, None, :])
    logits = jnp.einsum("bld,d->bl", att, params["att_wc"]) + params["att_bc"][0]
    score = jax.nn.softmax(logits, axis=-1)
    pooled = jnp.einsum("bl,bld->bd", score, enc)
    y = pooled @ params["fc_w"] + params["fc_b"][None, :]
    if params["fc_b"].shape[-1] == 1:
        y = jnp.squeeze(jnp.maximum(y, 0.0))
    return y


if __name__ == "__main__":
    # Small config consistent with the module: Y=2, filter_num=8, filter_sizes="3,5",
    # num_layers=1, vocab_size=50, embed_dim=8 -> encode_dim = 16.
    Y, filter_num, filter_sizes, num_layers = 2, 8, "3,5", 1
    vocab_size, embed_dim = 50, 8
    B, L = 2, 16

    key = jax.random.PRNGKey(0)
    pkey, xkey = jax.random.split(key)
    params = init_params(pkey, Y, filter_num, filter_sizes, num_layers,
                         vocab_size, embed_dim)
    tokens = jax.random.randint(xkey, (B, L), 0, vocab_size, dtype=jnp.int32)

    fwd = jax.jit(flat_model_forward)
    y_hat = fwd(params, tokens)
    jax.block_until_ready(y_hat)
    assert y_hat.shape == (B, Y) and y_hat.dtype == jnp.float32

    # Sanity check vs. a pure-JAX f32 reference (loose tolerance: bf16 MXU inputs
    # throughout the encoder / attention / fc -- documented inference divergence).
    y_ref = flat_model_reference(params, tokens)
    assert jnp.allclose(y_hat, y_ref, atol=8e-2, rtol=8e-2), (y_hat, y_ref)
    print("KERNEL_OK")
</pallas_src>

<mosaic_0001>
module attributes {stable_mosaic.version = 11 : i64} {
  func.func @kernel(%arg0: i32, %arg1: memref<1x16x128xf32, #tpu.memory_space<vmem>>, %arg2: memref<3x128x128xbf16, #tpu.memory_space<vmem>>, %arg3: memref<3x128x128xbf16, #tpu.memory_space<vmem>>, %arg4: memref<3x128x128xbf16, #tpu.memory_space<vmem>>, %arg5: memref<1x128x128xbf16, #tpu.memory_space<vmem>>, %arg6: memref<5x128x128xbf16, #tpu.memory_space<vmem>>, %arg7: memref<5x128x128xbf16, #tpu.memory_space<vmem>>, %arg8: memref<5x128x128xbf16, #tpu.memory_space<vmem>>, %arg9: memref<1x128x128xbf16, #tpu.memory_space<vmem>>, %arg10: memref<16x128xf32, #tpu.memory_space<vmem>>, %arg11: memref<2x128x128xbf16, #tpu.memory_space<vmem>>, %arg12: memref<1x128xf32, #tpu.memory_space<vmem>>, %arg13: memref<1x128xf32, #tpu.memory_space<vmem>>, %arg14: memref<2x128x2xbf16, #tpu.memory_space<vmem>>, %arg15: memref<1x2xf32, #tpu.memory_space<vmem>>, %arg16: memref<1x1x2xf32, #tpu.memory_space<vmem>>, %arg17: memref<32x128xf32, #tpu.memory_space<vmem>>) attributes {dimension_semantics = [#tpu.dimension_semantics<parallel>], iteration_bounds = array<i64: 2>, scalar_prefetch = 0 : i64, scratch_operands = 1 : i64, tpu.core_type = #tpu.core_type<tc>, window_params = [{transform_indices = @transform_0, window_bounds = array<i64: 1, 16, 128>}, {pipeline_mode = #tpu.pipeline_mode<synchronous>, transform_indices = @transform_1, window_bounds = array<i64: 3, 128, 128>}, {pipeline_mode = #tpu.pipeline_mode<synchronous>, transform_indices = @transform_2, window_bounds = array<i64: 3, 128, 128>}, {pipeline_mode = #tpu.pipeline_mode<synchronous>, transform_indices = @transform_3, window_bounds = array<i64: 3, 128, 128>}, {pipeline_mode = #tpu.pipeline_mode<synchronous>, transform_indices = @transform_4, window_bounds = array<i64: 1, 128, 128>}, {pipeline_mode = #tpu.pipeline_mode<synchronous>, transform_indices = @transform_5, window_bounds = array<i64: 5, 128, 128>}, {pipeline_mode = #tpu.pipeline_mode<synchronous>, transform_indices = @transform_6, window_bounds = array<i64: 5, 128, 128>}, {pipeline_mode = #tpu.pipeline_mode<synchronous>, transform_indices = @transform_7, window_bounds = array<i64: 5, 128, 128>}, {pipeline_mode = #tpu.pipeline_mode<synchronous>, transform_indices = @transform_8, window_bounds = array<i64: 1, 128, 128>}, {pipeline_mode = #tpu.pipeline_mode<synchronous>, transform_indices = @transform_9, window_bounds = array<i64: 16, 128>}, {pipeline_mode = #tpu.pipeline_mode<synchronous>, transform_indices = @transform_10, window_bounds = array<i64: 2, 128, 128>}, {pipeline_mode = #tpu.pipeline_mode<synchronous>, transform_indices = @transform_11, window_bounds = array<i64: 1, 128>}, {pipeline_mode = #tpu.pipeline_mode<synchronous>, transform_indices = @transform_12, window_bounds = array<i64: 1, 128>}, {pipeline_mode = #tpu.pipeline_mode<synchronous>, transform_indices = @transform_13, window_bounds = array<i64: 2, 128, 2>}, {pipeline_mode = #tpu.pipeline_mode<synchronous>, transform_indices = @transform_14, window_bounds = array<i64: 1, 2>}, {transform_indices = @transform_15, window_bounds = array<i64: 1, 1, 2>}]} {
    %cst = arith.constant 0.000000e+00 : f32
    %0 = vector.broadcast %cst : f32 to vector<8x128xf32>
    %c0 = arith.constant 0 : index
    %c0_0 = arith.constant 0 : index
    %1 = vector.load %arg17[%c0, %c0_0] : memref<32x128xf32, #tpu.memory_space<vmem>>, vector<8x128xf32>
    tpu.vector_store %arg17[%c0, %c0_0], %0 {strides = array<i32>} : memref<32x128xf32, #tpu.memory_space<vmem>>, vector<8x128xf32>,
    %c24 = arith.constant 24 : index
    %c0_1 = arith.constant 0 : index
    %2 = vector.load %arg17[%c24, %c0_1] : memref<32x128xf32, #tpu.memory_space<vmem>>, vector<8x128xf32>
    tpu.vector_store %arg17[%c24, %c0_1], %0 {strides = array<i32>} : memref<32x128xf32, #tpu.memory_space<vmem>>, vector<8x128xf32>,
    %c0_2 = arith.constant 0 : index
    %c0_3 = arith.constant 0 : index
    %c0_4 = arith.constant 0 : index
    %3 = vector.load %arg1[%c0_2, %c0_3, %c0_4] : memref<1x16x128xf32, #tpu.memory_space<vmem>>, vector<1x16x128xf32>
    %4 = vector.shape_cast %3 : vector<1x16x128xf32> to vector<16x128xf32>
    %cst_5 = arith.constant 0.000000e+00 : f32
    %5 = vector.broadcast %cst_5 : f32 to vector<16x128xf32>
    %c0_6 = arith.constant 0 : index
    %c0_7 = arith.constant 0 : index
    %6 = vector.load %arg10[%c0_6, %c0_7] : memref<16x128xf32, #tpu.memory_space<vmem>>, vector<1x128xf32>
    %c1 = arith.constant 1 : index
    %c0_8 = arith.constant 0 : index
    %7 = vector.load %arg10[%c1, %c0_8] : memref<16x128xf32, #tpu.memory_space<vmem>>, vector<1x128xf32>
    %c8 = arith.constant 8 : index
    %c0_9 = arith.constant 0 : index
    %8 = vector.load %arg17[%c8, %c0_9] : memref<32x128xf32, #tpu.memory_space<vmem>>, vector<16x128xf32>
    tpu.vector_store %arg17[%c8, %c0_9], %4 {strides = array<i32>} : memref<32x128xf32, #tpu.memory_space<vmem>>, vector<16x128xf32>,
    %cst_10 = arith.constant 0.000000e+00 : f32
    %9 = vector.broadcast %cst_10 : f32 to vector<16x128xf32>
    %c7 = arith.constant 7 : index
    %c0_11 = arith.constant 0 : index
    %10 = vector.load %arg17[%c7, %c0_11] : memref<32x128xf32, #tpu.memory_space<vmem>>, vector<16x128xf32>
    %11 = arith.truncf %10 : vector<16x128xf32> to vector<16x128xbf16>
    %c0_12 = arith.constant 0 : index
    %c0_13 = arith.constant 0 : index
    %c0_14 = arith.constant 0 : index
    %12 = vector.load %arg2[%c0_12, %c0_13, %c0_14] : memref<3x128x128xbf16, #tpu.memory_space<vmem>>, vector<1x128x128xbf16>
    %13 = vector.shape_cast %12 : vector<1x128x128xbf16> to vector<128x128xbf16>
    %cst_15 = arith.constant dense<0.000000e+00> : vector<16x128xf32>
    %14 = tpu.matmul %11, %13, %cst_15 {dimension_numbers = #tpu.dot_dimension_numbers<[1], [0], [0], [1], [0, 0, 1, 1], [], []>} : vector<16x128xbf16>, vector<128x128xbf16>, vector<16x128xf32> -> vector<16x128xf32>
    %15 = arith.addf %9, %14 : vector<16x128xf32>
    %c8_16 = arith.constant 8 : index
    %c0_17 = arith.constant 0 : index
    %16 = vector.load %arg17[%c8_16, %c0_17] : memref<32x128xf32, #tpu.memory_space<vmem>>, vector<16x128xf32>
    %17 = arith.truncf %16 : vector<16x128xf32> to vector<16x128xbf16>
    %c1_18 = arith.constant 1 : index
    %c0_19 = arith.constant 0 : index
    %c0_20 = arith.constant 0 : index
    %18 = vector.load %arg2[%c1_18, %c0_19, %c0_20] : memref<3x128x128xbf16, #tpu.memory_space<vmem>>, vector<1x128x128xbf16>
    %19 = vector.shape_cast %18 : vector<1x128x128xbf16> to vector<128x128xbf16>
    %cst_21 = arith.constant dense<0.000000e+00> : vector<16x128xf32>
    %20 = tpu.matmul %17, %19, %cst_21 {dimension_numbers = #tpu.dot_dimension_numbers<[1], [0], [0], [1], [0, 0, 1, 1], [], []>} : vector<16x128xbf16>, vector<128x128xbf16>, vector<16x128xf32> -> vector<16x128xf32>
    %21 = arith.addf %15, %20 : vector<16x128xf32>
    %c9 = arith.constant 9 : index
    %c0_22 = arith.constant 0 : index
    %22 = vector.load %arg17[%c9, %c0_22] : memref<32x128xf32, #tpu.memory_space<vmem>>, vector<16x128xf32>
    %23 = arith.truncf %22 : vector<16x128xf32> to vector<16x128xbf16>
    %c2 = arith.constant 2 : index
    %c0_23 = arith.constant 0 : index
    %c0_24 = arith.constant 0 : index
    %24 = vector.load %arg2[%c2, %c0_23, %c0_24] : memref<3x128x128xbf16, #tpu.memory_space<vmem>>, vector<1x128x128xbf16>
    %25 = vector.shape_cast %24 : vector<1x128x128xbf16> to vector<128x128xbf16>
    %cst_25 = arith.constant dense<0.000000e+00> : vector<16x128xf32>
    %26 = tpu.matmul %23, %25, %cst_25 {dimension_numbers = #tpu.dot_dimension_numbers<[1], [0], [0], [1], [0, 0, 1, 1], [], []>} : vector<16x128xbf16>, vector<128x128xbf16>, vector<16x128xf32> -> vector<16x128xf32>
    %27 = arith.addf %21, %26 : vector<16x128xf32>
    %28 = vector.broadcast %6 : vector<1x128xf32> to vector<16x128xf32>
    %29 = arith.mulf %27, %28 : vector<16x128xf32>
    %30 = vector.broadcast %7 : vector<1x128xf32> to vector<16x128xf32>
    %31 = arith.addf %29, %30 : vector<16x128xf32>
    %32 = math.tanh %31 : vector<16x128xf32>
    %33 = arith.truncf %32 : vector<16x128xf32> to vector<16x128xbf16>
    %c2_26 = arith.constant 2 : index
    %c0_27 = arith.constant 0 : index
    %34 = vector.load %arg10[%c2_26, %c0_27] : memref<16x128xf32, #tpu.memory_space<vmem>>, vector<1x128xf32>
    %c3 = arith.constant 3 : index
    %c0_28 = arith.constant 0 : index
    %35 = vector.load %arg10[%c3, %c0_28] : memref<16x128xf32, #tpu.memory_space<vmem>>, vector<1x128xf32>
    %c8_29 = arith.constant 8 : index
    %c0_30 = arith.constant 0 : index
    %36 = vector.load %arg17[%c8_29, %c0_30] : memref<32x128xf32, #tpu.memory_space<vmem>>, vector<16x128xf32>
    tpu.vector_store %arg17[%c8_29, %c0_30], %32 {strides = array<i32>} : memref<32x128xf32, #tpu.memory_space<vmem>>, vector<16x128xf32>,
    %cst_31 = arith.constant 0.000000e+00 : f32
    %37 = vector.broadcast %cst_31 : f32 to vector<16x128xf32>
    %c7_32 = arith.constant 7 : index
    %c0_33 = arith.constant 0 : index
    %38 = vector.load %arg17[%c7_32, %c0_33] : memref<32x128xf32, #tpu.memory_space<vmem>>, vector<16x128xf32>
    %39 = arith.truncf %38 : vector<16x128xf32> to vector<16x128xbf16>
    %c0_34 = arith.constant 0 : index
    %c0_35 = arith.constant 0 : index
    %c0_36 = arith.constant 0 : index
    %40 = vector.load %arg3[%c0_34, %c0_35, %c0_36] : memref<3x128x128xbf16, #tpu.memory_space<vmem>>, vector<1x128x128xbf16>
    %41 = vector.shape_cast %40 : vector<1x128x128xbf16> to vector<128x128xbf16>
    %cst_37 = arith.constant dense<0.000000e+00> : vector<16x128xf32>
    %42 = tpu.matmul %39, %41, %cst_37 {dimension_numbers = #tpu.dot_dimension_numbers<[1], [0], [0], [1], [0, 0, 1, 1], [], []>} : vector<16x128xbf16>, vector<128x128xbf16>, vector<16x128xf32> -> vector<16x128xf32>
    %43 = arith.addf %37, %42 : vector<16x128xf32>
    %c8_38 = arith.constant 8 : index
    %c0_39 = arith.constant 0 : index
    %44 = vector.load %arg17[%c8_38, %c0_39] : memref<32x128xf32, #tpu.memory_space<vmem>>, vector<16x128xf32>
    %45 = arith.truncf %44 : vector<16x128xf32> to vector<16x128xbf16>
    %c1_40 = arith.constant 1 : index
    %c0_41 = arith.constant 0 : index
    %c0_42 = arith.constant 0 : index
    %46 = vector.load %arg3[%c1_40, %c0_41, %c0_42] : memref<3x128x128xbf16, #tpu.memory_space<vmem>>, vector<1x128x128xbf16>
    %47 = vector.shape_cast %46 : vector<1x128x128xbf16> to vector<128x128xbf16>
    %cst_43 = arith.constant dense<0.000000e+00> : vector<16x128xf32>
    %48 = tpu.matmul %45, %47, %cst_43 {dimension_numbers = #tpu.dot_dimension_numbers<[1], [0], [0], [1], [0, 0, 1, 1], [], []>} : vector<16x128xbf16>, vector<128x128xbf16>, vector<16x128xf32> -> vector<16x128xf32>
    %49 = arith.addf %43, %48 : vector<16x128xf32>
    %c9_44 = arith.constant 9 : index
    %c0_45 = arith.constant 0 : index
    %50 = vector.load %arg17[%c9_44, %c0_45] : memref<32x128xf32, #tpu.memory_space<vmem>>, vector<16x128xf32>
    %51 = arith.truncf %50 : vector<16x128xf32> to vector<16x128xbf16>
    %c2_46 = arith.constant 2 : index
    %c0_47 = arith.constant 0 : index
    %c0_48 = arith.constant 0 : index
    %52 = vector.load %arg3[%c2_46, %c0_47, %c0_48] : memref<3x128x128xbf16, #tpu.memory_space<vmem>>, vector<1x128x128xbf16>
    %53 = vector.shape_cast %52 : vector<1x128x128xbf16> to vector<128x128xbf16>
    %cst_49 = arith.constant dense<0.000000e+00> : vector<16x128xf32>
    %54 = tpu.matmul %51, %53, %cst_49 {dimension_numbers = #tpu.dot_dimension_numbers<[1], [0], [0], [1], [0, 0, 1, 1], [], []>} : vector<16x128xbf16>, vector<128x128xbf16>, vector<16x128xf32> -> vector<16x128xf32>
    %55 = arith.addf %49, %54 : vector<16x128xf32>
    %56 = vector.broadcast %34 : vector<1x128xf32> to vector<16x128xf32>
    %57 = arith.mulf %55, %56 : vector<16x128xf32>
    %58 = vector.broadcast %35 : vector<1x128xf32> to vector<16x128xf32>
    %59 = arith.addf %57, %58 : vector<16x128xf32>
    %60 = math.tanh %59 : vector<16x128xf32>
    %c4 = arith.constant 4 : index
    %c0_50 = arith.constant 0 : index
    %61 = vector.load %arg10[%c4, %c0_50] : memref<16x128xf32, #tpu.memory_space<vmem>>, vector<1x128xf32>
    %c5 = arith.constant 5 : index
    %c0_51 = arith.constant 0 : index
    %62 = vector.load %arg10[%c5, %c0_51] : memref<16x128xf32, #tpu.memory_space<vmem>>, vector<1x128xf32>
    %c8_52 = arith.constant 8 : index
    %c0_53 = arith.constant 0 : index
    %63 = vector.load %arg17[%c8_52, %c0_53] : memref<32x128xf32, #tpu.memory_space<vmem>>, vector<16x128xf32>
    tpu.vector_store %arg17[%c8_52, %c0_53], %60 {strides = array<i32>} : memref<32x128xf32, #tpu.memory_space<vmem>>, vector<16x128xf32>,
    %cst_54 = arith.constant 0.000000e+00 : f32
    %64 = vector.broadcast %cst_54 : f32 to vector<16x128xf32>
    %c7_55 = arith.constant 7 : index
    %c0_56 = arith.constant 0 : index
    %65 = vector.load %arg17[%c7_55, %c0_56] : memref<32x128xf32, #tpu.memory_space<vmem>>, vector<16x128xf32>
    %66 = arith.truncf %65 : vector<16x128xf32> to vector<16x128xbf16>
    %c0_57 = arith.constant 0 : index
    %c0_58 = arith.constant 0 : index
    %c0_59 = arith.constant 0 : index
    %67 = vector.load %arg4[%c0_57, %c0_58, %c0_59] : memref<3x128x128xbf16, #tpu.memory_space<vmem>>, vector<1x128x128xbf16>
    %68 = vector.shape_cast %67 : vector<1x128x128xbf16> to vector<128x128xbf16>
    %cst_60 = arith.constant dense<0.000000e+00> : vector<16x128xf32>
    %69 = tpu.matmul %66, %68, %cst_60 {dimension_numbers = #tpu.dot_dimension_numbers<[1], [0], [0], [1], [0, 0, 1, 1], [], []>} : vector<16x128xbf16>, vector<128x128xbf16>, vector<16x128xf32> -> vector<16x128xf32>
    %70 = arith.addf %64, %69 : vector<16x128xf32>
    %c8_61 = arith.constant 8 : index
    %c0_62 = arith.constant 0 : index
    %71 = vector.load %arg17[%c8_61, %c0_62] : memref<32x128xf32, #tpu.memory_space<vmem>>, vector<16x128xf32>
    %72 = arith.truncf %71 : vector<16x128xf32> to vector<16x128xbf16>
    %c1_63 = arith.constant 1 : index
    %c0_64 = arith.constant 0 : index
    %c0_65 = arith.constant 0 : index
    %73 = vector.load %arg4[%c1_63, %c0_64, %c0_65] : memref<3x128x128xbf16, #tpu.memory_space<vmem>>, vector<1x128x128xbf16>
    %74 = vector.shape_cast %73 : vector<1x128x128xbf16> to vector<128x128xbf16>
    %cst_66 = arith.constant dense<0.000000e+00> : vector<16x128xf32>
    %75 = tpu.matmul %72, %74, %cst_66 {dimension_numbers = #tpu.dot_dimension_numbers<[1], [0], [0], [1], [0, 0, 1, 1], [], []>} : vector<16x128xbf16>, vector<128x128xbf16>, vector<16x128xf32> -> vector<16x128xf32>
    %76 = arith.addf %70, %75 : vector<16x128xf32>
    %c9_67 = arith.constant 9 : index
    %c0_68 = arith.constant 0 : index
    %77 = vector.load %arg17[%c9_67, %c0_68] : memref<32x128xf32, #tpu.memory_space<vmem>>, vector<16x128xf32>
    %78 = arith.truncf %77 : vector<16x128xf32> to vector<16x128xbf16>
    %c2_69 = arith.constant 2 : index
    %c0_70 = arith.constant 0 : index
    %c0_71 = arith.constant 0 : index
    %79 = vector.load %arg4[%c2_69, %c0_70, %c0_71] : memref<3x128x128xbf16, #tpu.memory_space<vmem>>, vector<1x128x128xbf16>
    %80 = vector.shape_cast %79 : vector<1x128x128xbf16> to vector<128x128xbf16>
    %cst_72 = arith.constant dense<0.000000e+00> : vector<16x128xf32>
    %81 = tpu.matmul %78, %80, %cst_72 {dimension_numbers = #tpu.dot_dimension_numbers<[1], [0], [0], [1], [0, 0, 1, 1], [], []>} : vector<16x128xbf16>, vector<128x128xbf16>, vector<16x128xf32> -> vector<16x128xf32>
    %82 = arith.addf %76, %81 : vector<16x128xf32>
    %83 = vector.broadcast %61 : vector<1x128xf32> to vector<16x128xf32>
    %84 = arith.mulf %82, %83 : vector<16x128xf32>
    %85 = vector.broadcast %62 : vector<1x128xf32> to vector<16x128xf32>
    %86 = arith.addf %84, %85 : vector<16x128xf32>
    %c6 = arith.constant 6 : index
    %c0_73 = arith.constant 0 : index
    %87 = vector.load %arg10[%c6, %c0_73] : memref<16x128xf32, #tpu.memory_space<vmem>>, vector<1x128xf32>
    %c7_74 = arith.constant 7 : index
    %c0_75 = arith.constant 0 : index
    %88 = vector.load %arg10[%c7_74, %c0_75] : memref<16x128xf32, #tpu.memory_space<vmem>>, vector<1x128xf32>
    %c0_76 = arith.constant 0 : index
    %c0_77 = arith.constant 0 : index
    %c0_78 = arith.constant 0 : index
    %89 = vector.load %arg5[%c0_76, %c0_77, %c0_78] : memref<1x128x128xbf16, #tpu.memory_space<vmem>>, vector<1x128x128xbf16>
    %90 = vector.shape_cast %89 : vector<1x128x128xbf16> to vector<128x128xbf16>
    %cst_79 = arith.constant dense<0.000000e+00> : vector<16x128xf32>
    %91 = tpu.matmul %33, %90, %cst_79 {dimension_numbers = #tpu.dot_dimension_numbers<[1], [0], [0], [1], [0, 0, 1, 1], [], []>} : vector<16x128xbf16>, vector<128x128xbf16>, vector<16x128xf32> -> vector<16x128xf32>
    %92 = vector.broadcast %87 : vector<1x128xf32> to vector<16x128xf32>
    %93 = arith.mulf %91, %92 : vector<16x128xf32>
    %94 = vector.broadcast %88 : vector<1x128xf32> to vector<16x128xf32>
    %95 = arith.addf %93, %94 : vector<16x128xf32>
    %96 = arith.addf %86, %95 : vector<16x128xf32>
    %97 = math.tanh %96 : vector<16x128xf32>
    %98 = arith.truncf %97 : vector<16x128xf32> to vector<16x128xbf16>
    %c0_80 = arith.constant 0 : index
    %c0_81 = arith.constant 0 : index
    %c0_82 = arith.constant 0 : index
    %99 = vector.load %arg11[%c0_80, %c0_81, %c0_82] : memref<2x128x128xbf16, #tpu.memory_space<vmem>>, vector<1x128x128xbf16>
    %100 = vector.shape_cast %99 : vector<1x128x128xbf16> to vector<128x128xbf16>
    %cst_83 = arith.constant dense<0.000000e+00> : vector<16x128xf32>
    %101 = tpu.matmul %98, %100, %cst_83 {dimension_numbers = #tpu.dot_dimension_numbers<[1], [0], [0], [1], [0, 0, 1, 1], [], []>} : vector<16x128xbf16>, vector<128x128xbf16>, vector<16x128xf32> -> vector<16x128xf32>
    %102 = arith.addf %5, %101 : vector<16x128xf32>
    %c8_84 = arith.constant 8 : index
    %c0_85 = arith.constant 0 : index
    %103 = vector.load %arg10[%c8_84, %c0_85] : memref<16x128xf32, #tpu.memory_space<vmem>>, vector<1x128xf32>
    %c9_86 = arith.constant 9 : index
    %c0_87 = arith.constant 0 : index
    %104 = vector.load %arg10[%c9_86, %c0_87] : memref<16x128xf32, #tpu.memory_space<vmem>>, vector<1x128xf32>
    %c8_88 = arith.constant 8 : index
    %c0_89 = arith.constant 0 : index
    %105 = vector.load %arg17[%c8_88, %c0_89] : memref<32x128xf32, #tpu.memory_space<vmem>>, vector<16x128xf32>
    tpu.vector_store %arg17[%c8_88, %c0_89], %4 {strides = array<i32>} : memref<32x128xf32, #tpu.memory_space<vmem>>, vector<16x128xf32>,
    %cst_90 = arith.constant 0.000000e+00 : f32
    %106 = vector.broadcast %cst_90 : f32 to vector<16x128xf32>
    %c6_91 = arith.constant 6 : index
    %c0_92 = arith.constant 0 : index
    %107 = vector.load %arg17[%c6_91, %c0_92] : memref<32x128xf32, #tpu.memory_space<vmem>>, vector<16x128xf32>
    %108 = arith.truncf %107 : vector<16x128xf32> to vector<16x128xbf16>
    %c0_93 = arith.constant 0 : index
    %c0_94 = arith.constant 0 : index
    %c0_95 = arith.constant 0 : index
    %109 = vector.load %arg6[%c0_93, %c0_94, %c0_95] : memref<5x128x128xbf16, #tpu.memory_space<vmem>>, vector<1x128x128xbf16>
    %110 = vector.shape_cast %109 : vector<1x128x128xbf16> to vector<128x128xbf16>
    %cst_96 = arith.constant dense<0.000000e+00> : vector<16x128xf32>
    %111 = tpu.matmul %108, %110, %cst_96 {dimension_numbers = #tpu.dot_dimension_numbers<[1], [0], [0], [1], [0, 0, 1, 1], [], []>} : vector<16x128xbf16>, vector<128x128xbf16>, vector<16x128xf32> -> vector<16x128xf32>
    %112 = arith.addf %106, %111 : vector<16x128xf32>
    %c7_97 = arith.constant 7 : index
    %c0_98 = arith.constant 0 : index
    %113 = vector.load %arg17[%c7_97, %c0_98] : memref<32x128xf32, #tpu.memory_space<vmem>>, vector<16x128xf32>
    %114 = arith.truncf %113 : vector<16x128xf32> to vector<16x128xbf16>
    %c1_99 = arith.constant 1 : index
    %c0_100 = arith.constant 0 : index
    %c0_101 = arith.constant 0 : index
    %115 = vector.load %arg6[%c1_99, %c0_100, %c0_101] : memref<5x128x128xbf16, #tpu.memory_space<vmem>>, vector<1x128x128xbf16>
    %116 = vector.shape_cast %115 : vector<1x128x128xbf16> to vector<128x128xbf16>
    %cst_102 = arith.constant dense<0.000000e+00> : vector<16x128xf32>
    %117 = tpu.matmul %114, %116, %cst_102 {dimension_numbers = #tpu.dot_dimension_numbers<[1], [0], [0], [1], [0, 0, 1, 1], [], []>} : vector<16x128xbf16>, vector<128x128xbf16>, vector<16x128xf32> -> vector<16x128xf32>
    %118 = arith.addf %112, %117 : vector<16x128xf32>
    %c8_103 = arith.constant 8 : index
    %c0_104 = arith.constant 0 : index
    %119 = vector.load %arg17[%c8_103, %c0_104] : memref<32x128xf32, #tpu.memory_space<vmem>>, vector<16x128xf32>
    %120 = arith.truncf %119 : vector<16x128xf32> to vector<16x128xbf16>
    %c2_105 = arith.constant 2 : index
    %c0_106 = arith.constant 0 : index
    %c0_107 = arith.constant 0 : index
    %121 = vector.load %arg6[%c2_105, %c0_106, %c0_107] : memref<5x128x128xbf16, #tpu.memory_space<vmem>>, vector<1x128x128xbf16>
    %122 = vector.shape_cast %121 : vector<1x128x128xbf16> to vector<128x128xbf16>
    %cst_108 = arith.constant dense<0.000000e+00> : vector<16x128xf32>
    %123 = tpu.matmul %120, %122, %cst_108 {dimension_numbers = #tpu.dot_dimension_numbers<[1], [0], [0], [1], [0, 0, 1, 1], [], []>} : vector<16x128xbf16>, vector<128x128xbf16>, vector<16x128xf32> -> vector<16x128xf32>
    %124 = arith.addf %118, %123 : vector<16x128xf32>
    %c9_109 = arith.constant 9 : index
    %c0_110 = arith.constant 0 : index
    %125 = vector.load %arg17[%c9_109, %c0_110] : memref<32x128xf32, #tpu.memory_space<vmem>>, vector<16x128xf32>
    %126 = arith.truncf %125 : vector<16x128xf32> to vector<16x128xbf16>
    %c3_111 = arith.constant 3 : index
    %c0_112 = arith.constant 0 : index
    %c0_113 = arith.constant 0 : index
    %127 = vector.load %arg6[%c3_111, %c0_112, %c0_113] : memref<5x128x128xbf16, #tpu.memory_space<vmem>>, vector<1x128x128xbf16>
    %128 = vector.shape_cast %127 : vector<1x128x128xbf16> to vector<128x128xbf16>
    %cst_114 = arith.constant dense<0.000000e+00> : vector<16x128xf32>
    %129 = tpu.matmul %126, %128, %cst_114 {dimension_numbers = #tpu.dot_dimension_numbers<[1], [0], [0], [1], [0, 0, 1, 1], [], []>} : vector<16x128xbf16>, vector<128x128xbf16>, vector<16x128xf32> -> vector<16x128xf32>
    %130 = arith.addf %124, %129 : vector<16x128xf32>
    %c10 = arith.constant 10 : index
    %c0_115 = arith.constant 0 : index
    %131 = vector.load %arg17[%c10, %c0_115] : memref<32x128xf32, #tpu.memory_space<vmem>>, vector<16x128xf32>
    %132 = arith.truncf %131 : vector<16x128xf32> to vector<16x128xbf16>
    %c4_116 = arith.constant 4 : index
    %c0_117 = arith.constant 0 : index
    %c0_118 = arith.constant 0 : index
    %133 = vector.load %arg6[%c4_116, %c0_117, %c0_118] : memref<5x128x128xbf16, #tpu.memory_space<vmem>>, vector<1x128x128xbf16>
    %134 = vector.shape_cast %133 : vector<1x128x128xbf16> to vector<128x128xbf16>
    %cst_119 = arith.constant dense<0.000000e+00> : vector<16x128xf32>
    %135 = tpu.matmul %132, %134, %cst_119 {dimension_numbers = #tpu.dot_dimension_numbers<[1], [0], [0], [1], [0, 0, 1, 1], [], []>} : vector<16x128xbf16>, vector<128x128xbf16>, vector<16x128xf32> -> vector<16x128xf32>
    %136 = arith.addf %130, %135 : vector<16x128xf32>
    %137 = vector.broadcast %103 : vector<1x128xf32> to vector<16x128xf32>
    %138 = arith.mulf %136, %137 : vector<16x128xf32>
    %139 = vector.broadcast %104 : vector<1x128xf32> to vector<16x128xf32>
    %140 = arith.addf %138, %139 : vector<16x128xf32>
    %141 = math.tanh %140 : vector<16x128xf32>
    %142 = arith.truncf %141 : vector<16x128xf32> to vector<16x128xbf16>
    %c10_120 = arith.constant 10 : index
    %c0_121 = arith.constant 0 : index
    %143 = vector.load %arg10[%c10_120, %c0_121] : memref<16x128xf32, #tpu.memory_space<vmem>>, vector<1x128xf32>
    %c11 = arith.constant 11 : index
    %c0_122 = arith.constant 0 : index
    %144 = vector.load %arg10[%c11, %c0_122] : memref<16x128xf32, #tpu.memory_space<vmem>>, vector<1x128xf32>
    %c8_123 = arith.constant 8 : index
    %c0_124 = arith.constant 0 : index
    %145 = vector.load %arg17[%c8_123, %c0_124] : memref<32x128xf32, #tpu.memory_space<vmem>>, vector<16x128xf32>
    tpu.vector_store %arg17[%c8_123, %c0_124], %141 {strides = array<i32>} : memref<32x128xf32, #tpu.memory_space<vmem>>, vector<16x128xf32>,
    %cst_125 = arith.constant 0.000000e+00 : f32
    %146 = vector.broadcast %cst_125 : f32 to vector<16x128xf32>
    %c6_126 = arith.constant 6 : index
    %c0_127 = arith.constant 0 : index
    %147 = vector.load %arg17[%c6_126, %c0_127] : memref<32x128xf32, #tpu.memory_space<vmem>>, vector<16x128xf32>
    %148 = arith.truncf %147 : vector<16x128xf32> to vector<16x128xbf16>
    %c0_128 = arith.constant 0 : index
    %c0_129 = arith.constant 0 : index
    %c0_130 = arith.constant 0 : index
    %149 = vector.load %arg7[%c0_128, %c0_129, %c0_130] : memref<5x128x128xbf16, #tpu.memory_space<vmem>>, vector<1x128x128xbf16>
    %150 = vector.shape_cast %149 : vector<1x128x128xbf16> to vector<128x128xbf16>
    %cst_131 = arith.constant dense<0.000000e+00> : vector<16x128xf32>
    %151 = tpu.matmul %148, %150, %cst_131 {dimension_numbers = #tpu.dot_dimension_numbers<[1], [0], [0], [1], [0, 0, 1, 1], [], []>} : vector<16x128xbf16>, vector<128x128xbf16>, vector<16x128xf32> -> vector<16x128xf32>
    %152 = arith.addf %146, %151 : vector<16x128xf32>
    %c7_132 = arith.constant 7 : index
    %c0_133 = arith.constant 0 : index
    %153 = vector.load %arg17[%c7_132, %c0_133] : memref<32x128xf32, #tpu.memory_space<vmem>>, vector<16x128xf32>
    %154 = arith.truncf %153 : vector<16x128xf32> to vector<16x128xbf16>
    %c1_134 = arith.constant 1 : index
    %c0_135 = arith.constant 0 : index
    %c0_136 = arith.constant 0 : index
    %155 = vector.load %arg7[%c1_134, %c0_135, %c0_136] : memref<5x128x128xbf16, #tpu.memory_space<vmem>>, vector<1x128x128xbf16>
    %156 = vector.shape_cast %155 : vector<1x128x128xbf16> to vector<128x128xbf16>
    %cst_137 = arith.constant dense<0.000000e+00> : vector<16x128xf32>
    %157 = tpu.matmul %154, %156, %cst_137 {dimension_numbers = #tpu.dot_dimension_numbers<[1], [0], [0], [1], [0, 0, 1, 1], [], []>} : vector<16x128xbf16>, vector<128x128xbf16>, vector<16x128xf32> -> vector<16x128xf32>
    %158 = arith.addf %152, %157 : vector<16x128xf32>
    %c8_138 = arith.constant 8 : index
    %c0_139 = arith.constant 0 : index
    %159 = vector.load %arg17[%c8_138, %c0_139] : memref<32x128xf32, #tpu.memory_space<vmem>>, vector<16x128xf32>
    %160 = arith.truncf %159 : vector<16x128xf32> to vector<16x128xbf16>
    %c2_140 = arith.constant 2 : index
    %c0_141 = arith.constant 0 : index
    %c0_142 = arith.constant 0 : index
    %161 = vector.load %arg7[%c2_140, %c0_141, %c0_142] : memref<5x128x128xbf16, #tpu.memory_space<vmem>>, vector<1x128x128xbf16>
    %162 = vector.shape_cast %161 : vector<1x128x128xbf16> to vector<128x128xbf16>
    %cst_143 = arith.constant dense<0.000000e+00> : vector<16x128xf32>
    %163 = tpu.matmul %160, %162, %cst_143 {dimension_numbers = #tpu.dot_dimension_numbers<[1], [0], [0], [1], [0, 0, 1, 1], [], []>} : vector<16x128xbf16>, vector<128x128xbf16>, vector<16x128xf32> -> vector<16x128xf32>
    %164 = arith.addf %158, %163 : vector<16x128xf32>
    %c9_144 = arith.constant 9 : index
    %c0_145 = arith.constant 0 : index
    %165 = vector.load %arg17[%c9_144, %c0_145] : memref<32x128xf32, #tpu.memory_space<vmem>>, vector<16x128xf32>
    %166 = arith.truncf %165 : vector<16x128xf32> to vector<16x128xbf16>
    %c3_146 = arith.constant 3 : index
    %c0_147 = arith.constant 0 : index
    %c0_148 = arith.constant 0 : index
    %167 = vector.load %arg7[%c3_146, %c0_147, %c0_148] : memref<5x128x128xbf16, #tpu.memory_space<vmem>>, vector<1x128x128xbf16>
    %168 = vector.shape_cast %167 : vector<1x128x128xbf16> to vector<128x128xbf16>
    %cst_149 = arith.constant dense<0.000000e+00> : vector<16x128xf32>
    %169 = tpu.matmul %166, %168, %cst_149 {dimension_numbers = #tpu.dot_dimension_numbers<[1], [0], [0], [1], [0, 0, 1, 1], [], []>} : vector<16x128xbf16>, vector<128x128xbf16>, vector<16x128xf32> -> vector<16x128xf32>
    %170 = arith.addf %164, %169 : vector<16x128xf32>
    %c10_150 = arith.constant 10 : index
    %c0_151 = arith.constant 0 : index
    %171 = vector.load %arg17[%c10_150, %c0_151] : memref<32x128xf32, #tpu.memory_space<vmem>>, vector<16x128xf32>
    %172 = arith.truncf %171 : vector<16x128xf32> to vector<16x128xbf16>
    %c4_152 = arith.constant 4 : index
    %c0_153 = arith.constant 0 : index
    %c0_154 = arith.constant 0 : index
    %173 = vector.load %arg7[%c4_152, %c0_153, %c0_154] : memref<5x128x128xbf16, #tpu.memory_space<vmem>>, vector<1x128x128xbf16>
    %174 = vector.shape_cast %173 : vector<1x128x128xbf16> to vector<128x128xbf16>
    %cst_155 = arith.constant dense<0.000000e+00> : vector<16x128xf32>
    %175 = tpu.matmul %172, %174, %cst_155 {dimension_numbers = #tpu.dot_dimension_numbers<[1], [0], [0], [1], [0, 0, 1, 1], [], []>} : vector<16x128xbf16>, vector<128x128xbf16>, vector<16x128xf32> -> vector<16x128xf32>
    %176 = arith.addf %170, %175 : vector<16x128xf32>
    %177 = vector.broadcast %143 : vector<1x128xf32> to vector<16x128xf32>
    %178 = arith.mulf %176, %177 : vector<16x128xf32>
    %179 = vector.broadcast %144 : vector<1x128xf32> to vector<16x128xf32>
    %180 = arith.addf %178, %179 : vector<16x128xf32>
    %181 = math.tanh %180 : vector<16x128xf32>
    %c12 = arith.constant 12 : index
    %c0_156 = arith.constant 0 : index
    %182 = vector.load %arg10[%c12, %c0_156] : memref<16x128xf32, #tpu.memory_space<vmem>>, vector<1x128xf32>
    %c13 = arith.constant 13 : index
    %c0_157 = arith.constant 0 : index
    %183 = vector.load %arg10[%c13, %c0_157] : memref<16x128xf32, #tpu.memory_space<vmem>>, vector<1x128xf32>
    %c8_158 = arith.constant 8 : index
    %c0_159 = arith.constant 0 : index
    %184 = vector.load %arg17[%c8_158, %c0_159] : memref<32x128xf32, #tpu.memory_space<vmem>>, vector<16x128xf32>
    tpu.vector_store %arg17[%c8_158, %c0_159], %181 {strides = array<i32>} : memref<32x128xf32, #tpu.memory_space<vmem>>, vector<16x128xf32>,
    %cst_160 = arith.constant 0.000000e+00 : f32
    %185 = vector.broadcast %cst_160 : f32 to vector<16x128xf32>
    %c6_161 = arith.constant 6 : index
    %c0_162 = arith.constant 0 : index
    %186 = vector.load %arg17[%c6_161, %c0_162] : memref<32x128xf32, #tpu.memory_space<vmem>>, vector<16x128xf32>
    %187 = arith.truncf %186 : vector<16x128xf32> to vector<16x128xbf16>
    %c0_163 = arith.constant 0 : index
    %c0_164 = arith.constant 0 : index
    %c0_165 = arith.constant 0 : index
    %188 = vector.load %arg8[%c0_163, %c0_164, %c0_165] : memref<5x128x128xbf16, #tpu.memory_space<vmem>>, vector<1x128x128xbf16>
    %189 = vector.shape_cast %188 : vector<1x128x128xbf16> to vector<128x128xbf16>
    %cst_166 = arith.constant dense<0.000000e+00> : vector<16x128xf32>
    %190 = tpu.matmul %187, %189, %cst_166 {dimension_numbers = #tpu.dot_dimension_numbers<[1], [0], [0], [1], [0, 0, 1, 1], [], []>} : vector<16x128xbf16>, vector<128x128xbf16>, vector<16x128xf32> -> vector<16x128xf32>
    %191 = arith.addf %185, %190 : vector<16x128xf32>
    %c7_167 = arith.constant 7 : index
    %c0_168 = arith.constant 0 : index
    %192 = vector.load %arg17[%c7_167, %c0_168] : memref<32x128xf32, #tpu.memory_space<vmem>>, vector<16x128xf32>
    %193 = arith.truncf %192 : vector<16x128xf32> to vector<16x128xbf16>
    %c1_169 = arith.constant 1 : index
    %c0_170 = arith.constant 0 : index
    %c0_171 = arith.constant 0 : index
    %194 = vector.load %arg8[%c1_169, %c0_170, %c0_171] : memref<5x128x128xbf16, #tpu.memory_space<vmem>>, vector<1x128x128xbf16>
    %195 = vector.shape_cast %194 : vector<1x128x128xbf16> to vector<128x128xbf16>
    %cst_172 = arith.constant dense<0.000000e+00> : vector<16x128xf32>
    %196 = tpu.matmul %193, %195, %cst_172 {dimension_numbers = #tpu.dot_dimension_numbers<[1], [0], [0], [1], [0, 0, 1, 1], [], []>} : vector<16x128xbf16>, vector<128x128xbf16>, vector<16x128xf32> -> vector<16x128xf32>
    %197 = arith.addf %191, %196 : vector<16x128xf32>
    %c8_173 = arith.constant 8 : index
    %c0_174 = arith.constant 0 : index
    %198 = vector.load %arg17[%c8_173, %c0_174] : memref<32x128xf32, #tpu.memory_space<vmem>>, vector<16x128xf32>
    %199 = arith.truncf %198 : vector<16x128xf32> to vector<16x128xbf16>
    %c2_175 = arith.constant 2 : index
    %c0_176 = arith.constant 0 : index
    %c0_177 = arith.constant 0 : index
    %200 = vector.load %arg8[%c2_175, %c0_176, %c0_177] : memref<5x128x128xbf16, #tpu.memory_space<vmem>>, vector<1x128x128xbf16>
    %201 = vector.shape_cast %200 : vector<1x128x128xbf16> to vector<128x128xbf16>
    %cst_178 = arith.constant dense<0.000000e+00> : vector<16x128xf32>
    %202 = tpu.matmul %199, %201, %cst_178 {dimension_numbers = #tpu.dot_dimension_numbers<[1], [0], [0], [1], [0, 0, 1, 1], [], []>} : vector<16x128xbf16>, vector<128x128xbf16>, vector<16x128xf32> -> vector<16x128xf32>
    %203 = arith.addf %197, %202 : vector<16x128xf32>
    %c9_179 = arith.constant 9 : index
    %c0_180 = arith.constant 0 : index
    %204 = vector.load %arg17[%c9_179, %c0_180] : memref<32x128xf32, #tpu.memory_space<vmem>>, vector<16x128xf32>
    %205 = arith.truncf %204 : vector<16x128xf32> to vector<16x128xbf16>
    %c3_181 = arith.constant 3 : index
    %c0_182 = arith.constant 0 : index
    %c0_183 = arith.constant 0 : index
    %206 = vector.load %arg8[%c3_181, %c0_182, %c0_183] : memref<5x128x128xbf16, #tpu.memory_space<vmem>>, vector<1x128x128xbf16>
    %207 = vector.shape_cast %206 : vector<1x128x128xbf16> to vector<128x128xbf16>
    %cst_184 = arith.constant dense<0.000000e+00> : vector<16x128xf32>
    %208 = tpu.matmul %205, %207, %cst_184 {dimension_numbers = #tpu.dot_dimension_numbers<[1], [0], [0], [1], [0, 0, 1, 1], [], []>} : vector<16x128xbf16>, vector<128x128xbf16>, vector<16x128xf32> -> vector<16x128xf32>
    %209 = arith.addf %203, %208 : vector<16x128xf32>
    %c10_185 = arith.constant 10 : index
    %c0_186 = arith.constant 0 : index
    %210 = vector.load %arg17[%c10_185, %c0_186] : memref<32x128xf32, #tpu.memory_space<vmem>>, vector<16x128xf32>
    %211 = arith.truncf %210 : vector<16x128xf32> to vector<16x128xbf16>
    %c4_187 = arith.constant 4 : index
    %c0_188 = arith.constant 0 : index
    %c0_189 = arith.constant 0 : index
    %212 = vector.load %arg8[%c4_187, %c0_188, %c0_189] : memref<5x128x128xbf16, #tpu.memory_space<vmem>>, vector<1x128x128xbf16>
    %213 = vector.shape_cast %212 : vector<1x128x128xbf16> to vector<128x128xbf16>
    %cst_190 = arith.constant dense<0.000000e+00> : vector<16x128xf32>
    %214 = tpu.matmul %211, %213, %cst_190 {dimension_numbers = #tpu.dot_dimension_numbers<[1], [0], [0], [1], [0, 0, 1, 1], [], []>} : vector<16x128xbf16>, vector<128x128xbf16>, vector<16x128xf32> -> vector<16x128xf32>
    %215 = arith.addf %209, %214 : vector<16x128xf32>
    %216 = vector.broadcast %182 : vector<1x128xf32> to vector<16x128xf32>
    %217 = arith.mulf %215, %216 : vector<16x128xf32>
    %218 = vector.broadcast %183 : vector<1x128xf32> to vector<16x128xf32>
    %219 = arith.addf %217, %218 : vector<16x128xf32>
    %c14 = arith.constant 14 : index
    %c0_191 = arith.constant 0 : index
    %220 = vector.load %arg10[%c14, %c0_191] : memref<16x128xf32, #tpu.memory_space<vmem>>, vector<1x128xf32>
    %c15 = arith.constant 15 : index
    %c0_192 = arith.constant 0 : index
    %221 = vector.load %arg10[%c15, %c0_192] : memref<16x128xf32, #tpu.memory_space<vmem>>, vector<1x128xf32>
    %c0_193 = arith.constant 0 : index
    %c0_194 = arith.constant 0 : index
    %c0_195 = arith.constant 0 : index
    %222 = vector.load %arg9[%c0_193, %c0_194, %c0_195] : memref<1x128x128xbf16, #tpu.memory_space<vmem>>, vector<1x128x128xbf16>
    %223 = vector.shape_cast %222 : vector<1x128x128xbf16> to vector<128x128xbf16>
    %cst_196 = arith.constant dense<0.000000e+00> : vector<16x128xf32>
    %224 = tpu.matmul %142, %223, %cst_196 {dimension_numbers = #tpu.dot_dimension_numbers<[1], [0], [0], [1], [0, 0, 1, 1], [], []>} : vector<16x128xbf16>, vector<128x128xbf16>, vector<16x128xf32> -> vector<16x128xf32>
    %225 = vector.broadcast %220 : vector<1x128xf32> to vector<16x128xf32>
    %226 = arith.mulf %224, %225 : vector<16x128xf32>
    %227 = vector.broadcast %221 : vector<1x128xf32> to vector<16x128xf32>
    %228 = arith.addf %226, %227 : vector<16x128xf32>
    %229 = arith.addf %219, %228 : vector<16x128xf32>
    %230 = math.tanh %229 : vector<16x128xf32>
    %231 = arith.truncf %230 : vector<16x128xf32> to vector<16x128xbf16>
    %c1_197 = arith.constant 1 : index
    %c0_198 = arith.constant 0 : index
    %c0_199 = arith.constant 0 : index
    %232 = vector.load %arg11[%c1_197, %c0_198, %c0_199] : memref<2x128x128xbf16, #tpu.memory_space<vmem>>, vector<1x128x128xbf16>
    %233 = vector.shape_cast %232 : vector<1x128x128xbf16> to vector<128x128xbf16>
    %cst_200 = arith.constant dense<0.000000e+00> : vector<16x128xf32>
    %234 = tpu.matmul %231, %233, %cst_200 {dimension_numbers = #tpu.dot_dimension_numbers<[1], [0], [0], [1], [0, 0, 1, 1], [], []>} : vector<16x128xbf16>, vector<128x128xbf16>, vector<16x128xf32> -> vector<16x128xf32>
    %235 = arith.addf %102, %234 : vector<16x128xf32>
    %c0_201 = arith.constant 0 : index
    %c0_202 = arith.constant 0 : index
    %236 = vector.load %arg12[%c0_201, %c0_202] : memref<1x128xf32, #tpu.memory_space<vmem>>, vector<1x128xf32>
    %237 = vector.broadcast %236 : vector<1x128xf32> to vector<16x128xf32>
    %238 = arith.addf %235, %237 : vector<16x128xf32>
    %239 = math.tanh %238 : vector<16x128xf32>
    %c0_203 = arith.constant 0 : index
    %c0_204 = arith.constant 0 : index
    %240 = vector.load %arg13[%c0_203, %c0_204] : memref<1x128xf32, #tpu.memory_space<vmem>>, vector<1x128xf32>
    %241 = vector.broadcast %240 : vector<1x128xf32> to vector<16x128xf32>
    %242 = arith.mulf %239, %241 : vector<16x128xf32>
    %cst_205 = arith.constant dense<0.000000e+00> : vector<16xf32>
    %243 = vector.multi_reduction <add>, %242, %cst_205 [1] : vector<16x128xf32> to vector<16xf32>
    %244 = vector.shape_cast %243 : vector<16xf32> to vector<16x1xf32>
    %cst_206 = arith.constant dense<0xFF800000> : vector<1xf32>
    %245 = vector.multi_reduction <maximumf>, %244, %cst_206 [0] : vector<16x1xf32> to vector<1xf32>
    %246 = vector.shape_cast %245 : vector<1xf32> to vector<1x1xf32>
    %247 = vector.broadcast %246 : vector<1x1xf32> to vector<16x1xf32>
    %248 = arith.subf %244, %247 : vector<16x1xf32>
    %249 = math.exp %248 : vector<16x1xf32>
    %cst_207 = arith.constant dense<0.000000e+00> : vector<1xf32>
    %250 = vector.multi_reduction <add>, %249, %cst_207 [0] : vector<16x1xf32> to vector<1xf32>
    %251 = vector.shape_cast %250 : vector<1xf32> to vector<1x1xf32>
    %cst_208 = arith.constant 0.000000e+00 : f32
    %252 = vector.broadcast %cst_208 : f32 to vector<1x2xf32>
    %253 = arith.extf %98 : vector<16x128xbf16> to vector<16x128xf32>
    %254 = vector.broadcast %249 : vector<16x1xf32> to vector<16x128xf32>
    %255 = arith.mulf %254, %253 : vector<16x128xf32>
    %cst_209 = arith.constant dense<0.000000e+00> : vector<128xf32>
    %256 = vector.multi_reduction <add>, %255, %cst_209 [0] : vector<16x128xf32> to vector<128xf32>
    %257 = vector.shape_cast %256 : vector<128xf32> to vector<1x128xf32>
    %258 = arith.truncf %257 : vector<1x128xf32> to vector<1x128xbf16>
    %c0_210 = arith.constant 0 : index
    %c0_211 = arith.constant 0 : index
    %c0_212 = arith.constant 0 : index
    %259 = vector.load %arg14[%c0_210, %c0_211, %c0_212] : memref<2x128x2xbf16, #tpu.memory_space<vmem>>, vector<1x128x2xbf16>
    %260 = vector.shape_cast %259 : vector<1x128x2xbf16> to vector<128x2xbf16>
    %cst_213 = arith.constant dense<0.000000e+00> : vector<1x2xf32>
    %261 = tpu.matmul %258, %260, %cst_213 {dimension_numbers = #tpu.dot_dimension_numbers<[1], [0], [0], [1], [0, 0, 1, 1], [], []>} : vector<1x128xbf16>, vector<128x2xbf16>, vector<1x2xf32> -> vector<1x2xf32>
    %262 = arith.addf %252, %261 : vector<1x2xf32>
    %263 = arith.extf %231 : vector<16x128xbf16> to vector<16x128xf32>
    %264 = vector.broadcast %249 : vector<16x1xf32> to vector<16x128xf32>
    %265 = arith.mulf %264, %263 : vector<16x128xf32>
    %cst_214 = arith.constant dense<0.000000e+00> : vector<128xf32>
    %266 = vector.multi_reduction <add>, %265, %cst_214 [0] : vector<16x128xf32> to vector<128xf32>
    %267 = vector.shape_cast %266 : vector<128xf32> to vector<1x128xf32>
    %268 = arith.truncf %267 : vector<1x128xf32> to vector<1x128xbf16>
    %c1_215 = arith.constant 1 : index
    %c0_216 = arith.constant 0 : index
    %c0_217 = arith.constant 0 : index
    %269 = vector.load %arg14[%c1_215, %c0_216, %c0_217] : memref<2x128x2xbf16, #tpu.memory_space<vmem>>, vector<1x128x2xbf16>
    %270 = vector.shape_cast %269 : vector<1x128x2xbf16> to vector<128x2xbf16>
    %cst_218 = arith.constant dense<0.000000e+00> : vector<1x2xf32>
    %271 = tpu.matmul %268, %270, %cst_218 {dimension_numbers = #tpu.dot_dimension_numbers<[1], [0], [0], [1], [0, 0, 1, 1], [], []>} : vector<1x128xbf16>, vector<128x2xbf16>, vector<1x2xf32> -> vector<1x2xf32>
    %272 = arith.addf %262, %271 : vector<1x2xf32>
    %273 = vector.broadcast %251 : vector<1x1xf32> to vector<1x2xf32>
    %274 = arith.divf %272, %273 : vector<1x2xf32>
    %c0_219 = arith.constant 0 : index
    %c0_220 = arith.constant 0 : index
    %275 = vector.load %arg15[%c0_219, %c0_220] : memref<1x2xf32, #tpu.memory_space<vmem>>, vector<1x2xf32>
    %276 = arith.addf %274, %275 : vector<1x2xf32>
    %277 = vector.shape_cast %276 : vector<1x2xf32> to vector<1x1x2xf32>
    %c0_221 = arith.constant 0 : index
    %c0_222 = arith.constant 0 : index
    %c0_223 = arith.constant 0 : index
    %278 = vector.load %arg16[%c0_221, %c0_222, %c0_223] : memref<1x1x2xf32, #tpu.memory_space<vmem>>, vector<1x1x2xf32>
    tpu.vector_store %arg16[%c0_221, %c0_222, %c0_223], %277 {strides = array<i32>} : memref<1x1x2xf32, #tpu.memory_space<vmem>>, vector<1x1x2xf32>,
    return
  }
  func.func @transform_0(%arg0: i32) -> (i32, i32, i32) {
    %c0_i32 = arith.constant 0 : i32
    %c0_i32_0 = arith.constant 0 : i32
    %c0_i32_1 = arith.constant 0 : i32
    return %arg0, %c0_i32, %c0_i32_0 : i32, i32, i32
  }
  func.func @transform_1(%arg0: i32) -> (i32, i32, i32) {
    %c0_i32 = arith.constant 0 : i32
    %c0_i32_0 = arith.constant 0 : i32
    %c0_i32_1 = arith.constant 0 : i32
    %c0_i32_2 = arith.constant 0 : i32
    return %c0_i32, %c0_i32_0, %c0_i32_1 : i32, i32, i32
  }
  func.func @transform_2(%arg0: i32) -> (i32, i32, i32) {
    %c0_i32 = arith.constant 0 : i32
    %c0_i32_0 = arith.constant 0 : i32
    %c0_i32_1 = arith.constant 0 : i32
    %c0_i32_2 = arith.constant 0 : i32
    return %c0_i32, %c0_i32_0, %c0_i32_1 : i32, i32, i32
  }
  func.func @transform_3(%arg0: i32) -> (i32, i32, i32) {
    %c0_i32 = arith.constant 0 : i32
    %c0_i32_0 = arith.constant 0 : i32
    %c0_i32_1 = arith.constant 0 : i32
    %c0_i32_2 = arith.constant 0 : i32
    return %c0_i32, %c0_i32_0, %c0_i32_1 : i32, i32, i32
  }
  func.func @transform_4(%arg0: i32) -> (i32, i32, i32) {
    %c0_i32 = arith.constant 0 : i32
    %c0_i32_0 = arith.constant 0 : i32
    %c0_i32_1 = arith.constant 0 : i32
    %c0_i32_2 = arith.constant 0 : i32
    return %c0_i32, %c0_i32_0, %c0_i32_1 : i32, i32, i32
  }
  func.func @transform_5(%arg0: i32) -> (i32, i32, i32) {
    %c0_i32 = arith.constant 0 : i32
    %c0_i32_0 = arith.constant 0 : i32
    %c0_i32_1 = arith.constant 0 : i32
    %c0_i32_2 = arith.constant 0 : i32
    return %c0_i32, %c0_i32_0, %c0_i32_1 : i32, i32, i32
  }
  func.func @transform_6(%arg0: i32) -> (i32, i32, i32) {
    %c0_i32 = arith.constant 0 : i32
    %c0_i32_0 = arith.constant 0 : i32
    %c0_i32_1 = arith.constant 0 : i32
    %c0_i32_2 = arith.constant 0 : i32
    return %c0_i32, %c0_i32_0, %c0_i32_1 : i32, i32, i32
  }
  func.func @transform_7(%arg0: i32) -> (i32, i32, i32) {
    %c0_i32 = arith.constant 0 : i32
    %c0_i32_0 = arith.constant 0 : i32
    %c0_i32_1 = arith.constant 0 : i32
    %c0_i32_2 = arith.constant 0 : i32
    return %c0_i32, %c0_i32_0, %c0_i32_1 : i32, i32, i32
  }
  func.func @transform_8(%arg0: i32) -> (i32, i32, i32) {
    %c0_i32 = arith.constant 0 : i32
    %c0_i32_0 = arith.constant 0 : i32
    %c0_i32_1 = arith.constant 0 : i32
    %c0_i32_2 = arith.constant 0 : i32
    return %c0_i32, %c0_i32_0, %c0_i32_1 : i32, i32, i32
  }
  func.func @transform_9(%arg0: i32) -> (i32, i32) {
    %c0_i32 = arith.constant 0 : i32
    %c0_i32_0 = arith.constant 0 : i32
    %c0_i32_1 = arith.constant 0 : i32
    return %c0_i32, %c0_i32_0 : i32, i32
  }
  func.func @transform_10(%arg0: i32) -> (i32, i32, i32) {
    %c0_i32 = arith.constant 0 : i32
    %c0_i32_0 = arith.constant 0 : i32
    %c0_i32_1 = arith.constant 0 : i32
    %c0_i32_2 = arith.constant 0 : i32
    return %c0_i32, %c0_i32_0, %c0_i32_1 : i32, i32, i32
  }
  func.func @transform_11(%arg0: i32) -> (i32, i32) {
    %c0_i32 = arith.constant 0 : i32
    %c0_i32_0 = arith.constant 0 : i32
    %c0_i32_1 = arith.constant 0 : i32
    return %c0_i32, %c0_i32_0 : i32, i32
  }
  func.func @transform_12(%arg0: i32) -> (i32, i32) {
    %c0_i32 = arith.constant 0 : i32
    %c0_i32_0 = arith.constant 0 : i32
    %c0_i32_1 = arith.constant 0 : i32
    return %c0_i32, %c0_i32_0 : i32, i32
  }
  func.func @transform_13(%arg0: i32) -> (i32, i32, i32) {
    %c0_i32 = arith.constant 0 : i32
    %c0_i32_0 = arith.constant 0 : i32
    %c0_i32_1 = arith.constant 0 : i32
    %c0_i32_2 = arith.constant 0 : i32
    return %c0_i32, %c0_i32_0, %c0_i32_1 : i32, i32, i32
  }
  func.func @transform_14(%arg0: i32) -> (i32, i32) {
    %c0_i32 = arith.constant 0 : i32
    %c0_i32_0 = arith.constant 0 : i32
    %c0_i32_1 = arith.constant 0 : i32
    return %c0_i32, %c0_i32_0 : i32, i32
  }
  func.func @transform_15(%arg0: i32) -> (i32, i32, i32) {
    %c0_i32 = arith.constant 0 : i32
    %c0_i32_0 = arith.constant 0 : i32
    %c0_i32_1 = arith.constant 0 : i32
    return %arg0, %c0_i32, %c0_i32_0 : i32, i32, i32
  }
}

</mosaic_0001>

<llo_original>
// kernel: flat_model_forward.1
$region0: #{flat_model_forward.1}
  #allocation0 [shape = 'u32[]', space=smem, size = 0x4, offset = 0x4, fixed_abs, tag = 'smem constant byte address 0x4 - core index']
  #allocation1 [shape = 'u32[144,128]{1,0:T(1,128)}', space=vmem, size = 0x12000, scoped, tag = 'internal scratch']
  #allocation2 [shape = 'f32[32,128]{1,0:T(8,128)}', space=vmem, size = 0x4000, scoped, tag = 'scratch operand']
  %s0 = inlined_call_operand.vmem [shape: f32[2,16,128], index: 0, kind: input, shape index: {}]
  %s1 = inlined_call_operand.vmem [shape: bf16[3,128,128], index: 1, kind: input, shape index: {}]
  %s2 = inlined_call_operand.vmem [shape: bf16[3,128,128], index: 2, kind: input, shape index: {}]
  %s3 = inlined_call_operand.vmem [shape: bf16[3,128,128], index: 3, kind: input, shape index: {}]
  %s4 = inlined_call_operand.vmem [shape: bf16[1,128,128], index: 4, kind: input, shape index: {}]
  %s5 = inlined_call_operand.vmem [shape: bf16[5,128,128], index: 5, kind: input, shape index: {}]
  %s6 = inlined_call_operand.vmem [shape: bf16[5,128,128], index: 6, kind: input, shape index: {}]
  %s7 = inlined_call_operand.vmem [shape: bf16[5,128,128], index: 7, kind: input, shape index: {}]
  %s8 = inlined_call_operand.vmem [shape: bf16[1,128,128], index: 8, kind: input, shape index: {}]
  %s9 = inlined_call_operand.vmem [shape: f32[16,128], index: 9, kind: input, shape index: {}]
  %s10 = inlined_call_operand.vmem [shape: bf16[2,128,128], index: 10, kind: input, shape index: {}]
  %s11 = inlined_call_operand.vmem [shape: f32[1,128], index: 11, kind: input, shape index: {}]
  %s12 = inlined_call_operand.vmem [shape: f32[1,128], index: 12, kind: input, shape index: {}]
  %s13 = inlined_call_operand.vmem [shape: bf16[2,128,2], index: 13, kind: input, shape index: {}]
  %s14 = inlined_call_operand.vmem [shape: f32[1,2], index: 14, kind: input, shape index: {}]
  %s15 = inlined_call_operand.hbm [shape: f32[2,1,2], index: 15, kind: output, shape index: {}]
  %s16 = sld [smem:[#allocation0]]
  $region93: #{flat_model_forward.1} parent=0
    _
  %s18 = ssub.s32 1, %s16
  %s19 = scalar_select 0, %s18, %s16
  $region1: #{flat_model_forward.1} parent=0
    #allocation3 [shape = 'u8[1024]{0}', space=vmem, size = 0x400, scoped, tag = 'output window, operand 0']
    #allocation4 [shape = 's32[2]{0}', space=sflag, size = 0x8, scoped, tag = 'scoped memory for flat_model_forward.1']
    %20 = vsyncpa [#allocation4], 0
    %s21 = scalar_lea.sflag [#allocation4], 1
    %22 = vsyncpa %s21, 0
    loop: start=0, step=1, limit=4
    $region2: #{flat_model_forward.1} parent=1 // loop_pre_header
      _
    $region3: #{flat_model_forward.1} parent=1 // loop_header
      %s24 = sphi 0, %s28
      %p25 = scmp.ge.s32.totalorder %s24, 4
      %s34 = sphi 0, %s36
      %s37 = sphi 0, %s34
      %s38 = sphi 0, %s37
      %s54 = sphi 0, %s38
      %s58 = sphi 0, %s58
      %s60 = sphi 0, %s58
      %s61 = sphi 0, %s60
      %s75 = sphi 0, %s61
      %s79 = sphi 0, %s79
      %s81 = sphi 0, %s79
      %s82 = sphi 0, %s81
      %s96 = sphi 0, %s82
      %s100 = sphi 0, %s100
      %s102 = sphi 0, %s100
      %s103 = sphi 0, %s102
      %s117 = sphi 0, %s103
      %s121 = sphi 0, %s121
      %s123 = sphi 0, %s121
      %s124 = sphi 0, %s123
      %s138 = sphi 0, %s124
      %s142 = sphi 0, %s142
      %s144 = sphi 0, %s142
      %s145 = sphi 0, %s144
      %s159 = sphi 0, %s145
      %s163 = sphi 0, %s163
      %s165 = sphi 0, %s163
      %s166 = sphi 0, %s165
      %s180 = sphi 0, %s166
      %s184 = sphi 0, %s184
      %s186 = sphi 0, %s184
      %s187 = sphi 0, %s186
      %s201 = sphi 0, %s187
      %s205 = sphi 0, %s205
      %s207 = sphi 0, %s205
      %s208 = sphi 0, %s207
      %s222 = sphi 0, %s208
      %s226 = sphi 0, %s226
      %s228 = sphi 0, %s226
      %s229 = sphi 0, %s228
      %s243 = sphi 0, %s229
      %s247 = sphi 0, %s247
      %s249 = sphi 0, %s247
      %s250 = sphi 0, %s249
      %s264 = sphi 0, %s250
      %s268 = sphi 0, %s268
      %s270 = sphi 0, %s268
      %s271 = sphi 0, %s270
      %s285 = sphi 0, %s271
      %s289 = sphi 0, %s289
      %s291 = sphi 0, %s289
      %s292 = sphi 0, %s291
      %s306 = sphi 0, %s292
      %s310 = sphi 0, %s310
      %s312 = sphi 0, %s310
      %s313 = sphi 0, %s312
      %s327 = sphi 0, %s313
      %s331 = sphi 0, %s331
      %s333 = sphi 0, %s331
      %s334 = sphi 0, %s333
      %s348 = sphi 0, %s334
      %s354 = sphi 0, %s356
      %s357 = sphi 0, %s354
      %s358 = sphi 0, %s357
      %s374 = sphi 0, %s358
    $region4: #{flat_model_forward.1} parent=1 // loop_header_branch
      %27 = sbr.rel (%p25) target = $region8
    $region5: #{flat_model_forward.1} parent=1 // loop_body
      %s29 = ssub.s32 %s24, 1
      %s30 = ssub.s32 %s24, 2
      %s31 = sadd.s32 %s24, 1
      %s32 = ssub.s32 %s24, %s31
      %p33 = scmp.eq.s32.totalorder %s32, 0
      %s35 = sadd.s32 %s34, 1
      %s36 = scalar_select %p33, %s34, %s35
      %p39 = pneg %p33
      %p40 = scmp.eq.s32.totalorder %s24, 1
      %p41 = por %p39, %p40
      %p42 = scmp.ne.s32.totalorder %s34, %s37
      %p43 = scmp.eq.s32.totalorder %s24, 0
      %p44 = por %p42, %p43
      %p45 = scmp.ne.s32.totalorder %s34, %s37
      %p46 = scmp.eq.s32.totalorder %s29, 1
      %p47 = por %p45, %p46
      %p48 = scmp.ne.s32.totalorder %s37, %s38
      %p49 = scmp.eq.s32.totalorder %s29, 0
      %p50 = por %p48, %p49
      %p51 = scmp.ne.s32.totalorder %s37, %s38
      %p52 = scmp.eq.s32.totalorder %s30, 1
      %p53 = por %p51, %p52
      %p55 = scmp.ne.s32.totalorder %s38, %s54
      %p56 = scmp.eq.s32.totalorder %s30, 0
      %p57 = por %p55, %p56
      %s59 = sadd.s32 %s58, 1
      %p62 = scmp.eq.s32.totalorder %s24, 1
      %p63 = scmp.ne.s32.totalorder %s58, %s60
      %p64 = scmp.eq.s32.totalorder %s24, 0
      %p65 = por %p63, %p64
      %p66 = scmp.ne.s32.totalorder %s58, %s60
      %p67 = scmp.eq.s32.totalorder %s29, 1
      %p68 = por %p66, %p67
      %p69 = scmp.ne.s32.totalorder %s60, %s61
      %p70 = scmp.eq.s32.totalorder %s29, 0
      %p71 = por %p69, %p70
      %p72 = scmp.ne.s32.totalorder %s60, %s61
      %p73 = scmp.eq.s32.totalorder %s30, 1
      %p74 = por %p72, %p73
      %p76 = scmp.ne.s32.totalorder %s61, %s75
      %p77 = scmp.eq.s32.totalorder %s30, 0
      %p78 = por %p76, %p77
      %s80 = sadd.s32 %s79, 1
      %p83 = scmp.eq.s32.totalorder %s24, 1
      %p84 = scmp.ne.s32.totalorder %s79, %s81
      %p85 = scmp.eq.s32.totalorder %s24, 0
      %p86 = por %p84, %p85
      %p87 = scmp.ne.s32.totalorder %s79, %s81
      %p88 = scmp.eq.s32.totalorder %s29, 1
      %p89 = por %p87, %p88
      %p90 = scmp.ne.s32.totalorder %s81, %s82
      %p91 = scmp.eq.s32.totalorder %s29, 0
      %p92 = por %p90, %p91
      %p93 = scmp.ne.s32.totalorder %s81, %s82
      %p94 = scmp.eq.s32.totalorder %s30, 1
      %p95 = por %p93, %p94
      %p97 = scmp.ne.s32.totalorder %s82, %s96
      %p98 = scmp.eq.s32.totalorder %s30, 0
      %p99 = por %p97, %p98
      %s101 = sadd.s32 %s100, 1
      %p104 = scmp.eq.s32.totalorder %s24, 1
      %p105 = scmp.ne.s32.totalorder %s100, %s102
      %p106 = scmp.eq.s32.totalorder %s24, 0
      %p107 = por %p105, %p106
      %p108 = scmp.ne.s32.totalorder %s100, %s102
      %p109 = scmp.eq.s32.totalorder %s29, 1
      %p110 = por %p108, %p109
      %p111 = scmp.ne.s32.totalorder %s102, %s103
      %p112 = scmp.eq.s32.totalorder %s29, 0
      %p113 = por %p111, %p112
      %p114 = scmp.ne.s32.totalorder %s102, %s103
      %p115 = scmp.eq.s32.totalorder %s30, 1
      %p116 = por %p114, %p115
      %p118 = scmp.ne.s32.totalorder %s103, %s117
      %p119 = scmp.eq.s32.totalorder %s30, 0
      %p120 = por %p118, %p119
      %s122 = sadd.s32 %s121, 1
      %p125 = scmp.eq.s32.totalorder %s24, 1
      %p126 = scmp.ne.s32.totalorder %s121, %s123
      %p127 = scmp.eq.s32.totalorder %s24, 0
      %p128 = por %p126, %p127
      %p129 = scmp.ne.s32.totalorder %s121, %s123
      %p130 = scmp.eq.s32.totalorder %s29, 1
      %p131 = por %p129, %p130
      %p132 = scmp.ne.s32.totalorder %s123, %s124
      %p133 = scmp.eq.s32.totalorder %s29, 0
      %p134 = por %p132, %p133
      %p135 = scmp.ne.s32.totalorder %s123, %s124
      %p136 = scmp.eq.s32.totalorder %s30, 1
      %p137 = por %p135, %p136
      %p139 = scmp.ne.s32.totalorder %s124, %s138
      %p140 = scmp.eq.s32.totalorder %s30, 0
      %p141 = por %p139, %p140
      %s143 = sadd.s32 %s142, 1
      %p146 = scmp.eq.s32.totalorder %s24, 1
      %p147 = scmp.ne.s32.totalorder %s142, %s144
      %p148 = scmp.eq.s32.totalorder %s24, 0
      %p149 = por %p147, %p148
      %p150 = scmp.ne.s32.totalorder %s142, %s144
      %p151 = scmp.eq.s32.totalorder %s29, 1
      %p152 = por %p150, %p151
      %p153 = scmp.ne.s32.totalorder %s144, %s145
      %p154 = scmp.eq.s32.totalorder %s29, 0
      %p155 = por %p153, %p154
      %p156 = scmp.ne.s32.totalorder %s144, %s145
      %p157 = scmp.eq.s32.totalorder %s30, 1
      %p158 = por %p156, %p157
      %p160 = scmp.ne.s32.totalorder %s145, %s159
      %p161 = scmp.eq.s32.totalorder %s30, 0
      %p162 = por %p160, %p161
      %s164 = sadd.s32 %s163, 1
      %p167 = scmp.eq.s32.totalorder %s24, 1
      %p168 = scmp.ne.s32.totalorder %s163, %s165
      %p169 = scmp.eq.s32.totalorder %s24, 0
      %p170 = por %p168, %p169
      %p171 = scmp.ne.s32.totalorder %s163, %s165
      %p172 = scmp.eq.s32.totalorder %s29, 1
      %p173 = por %p171, %p172
      %p174 = scmp.ne.s32.totalorder %s165, %s166
      %p175 = scmp.eq.s32.totalorder %s29, 0
      %p176 = por %p174, %p175
      %p177 = scmp.ne.s32.totalorder %s165, %s166
      %p178 = scmp.eq.s32.totalorder %s30, 1
      %p179 = por %p177, %p178
      %p181 = scmp.ne.s32.totalorder %s166, %s180
      %p182 = scmp.eq.s32.totalorder %s30, 0
      %p183 = por %p181, %p182
      %s185 = sadd.s32 %s184, 1
      %p188 = scmp.eq.s32.totalorder %s24, 1
      %p189 = scmp.ne.s32.totalorder %s184, %s186
      %p190 = scmp.eq.s32.totalorder %s24, 0
      %p191 = por %p189, %p190
      %p192 = scmp.ne.s32.totalorder %s184, %s186
      %p193 = scmp.eq.s32.totalorder %s29, 1
      %p194 = por %p192, %p193
      %p195 = scmp.ne.s32.totalorder %s186, %s187
      %p196 = scmp.eq.s32.totalorder %s29, 0
      %p197 = por %p195, %p196
      %p198 = scmp.ne.s32.totalorder %s186, %s187
      %p199 = scmp.eq.s32.totalorder %s30, 1
      %p200 = por %p198, %p199
      %p202 = scmp.ne.s32.totalorder %s187, %s201
      %p203 = scmp.eq.s32.totalorder %s30, 0
      %p204 = por %p202, %p203
      %s206 = sadd.s32 %s205, 1
      %p209 = scmp.eq.s32.totalorder %s24, 1
      %p210 = scmp.ne.s32.totalorder %s205, %s207
      %p211 = scmp.eq.s32.totalorder %s24, 0
      %p212 = por %p210, %p211
      %p213 = scmp.ne.s32.totalorder %s205, %s207
      %p214 = scmp.eq.s32.totalorder %s29, 1
      %p215 = por %p213, %p214
      %p216 = scmp.ne.s32.totalorder %s207, %s208
      %p217 = scmp.eq.s32.totalorder %s29, 0
      %p218 = por %p216, %p217
      %p219 = scmp.ne.s32.totalorder %s207, %s208
      %p220 = scmp.eq.s32.totalorder %s30, 1
      %p221 = por %p219, %p220
      %p223 = scmp.ne.s32.totalorder %s208, %s222
      %p224 = scmp.eq.s32.totalorder %s30, 0
      %p225 = por %p223, %p224
      %s227 = sadd.s32 %s226, 1
      %p230 = scmp.eq.s32.totalorder %s24, 1
      %p231 = scmp.ne.s32.totalorder %s226, %s228
      %p232 = scmp.eq.s32.totalorder %s24, 0
      %p233 = por %p231, %p232
      %p234 = scmp.ne.s32.totalorder %s226, %s228
      %p235 = scmp.eq.s32.totalorder %s29, 1
      %p236 = por %p234, %p235
      %p237 = scmp.ne.s32.totalorder %s228, %s229
      %p238 = scmp.eq.s32.totalorder %s29, 0
      %p239 = por %p237, %p238
      %p240 = scmp.ne.s32.totalorder %s228, %s229
      %p241 = scmp.eq.s32.totalorder %s30, 1
      %p242 = por %p240, %p241
      %p244 = scmp.ne.s32.totalorder %s229, %s243
      %p245 = scmp.eq.s32.totalorder %s30, 0
      %p246 = por %p244, %p245
      %s248 = sadd.s32 %s247, 1
      %p251 = scmp.eq.s32.totalorder %s24, 1
      %p252 = scmp.ne.s32.totalorder %s247, %s249
      %p253 = scmp.eq.s32.totalorder %s24, 0
      %p254 = por %p252, %p253
      %p255 = scmp.ne.s32.totalorder %s247, %s249
      %p256 = scmp.eq.s32.totalorder %s29, 1
      %p257 = por %p255, %p256
      %p258 = scmp.ne.s32.totalorder %s249, %s250
      %p259 = scmp.eq.s32.totalorder %s29, 0
      %p260 = por %p258, %p259
      %p261 = scmp.ne.s32.totalorder %s249, %s250
      %p262 = scmp.eq.s32.totalorder %s30, 1
      %p263 = por %p261, %p262
      %p265 = scmp.ne.s32.totalorder %s250, %s264
      %p266 = scmp.eq.s32.totalorder %s30, 0
      %p267 = por %p265, %p266
      %s269 = sadd.s32 %s268, 1
      %p272 = scmp.eq.s32.totalorder %s24, 1
      %p273 = scmp.ne.s32.totalorder %s268, %s270
      %p274 = scmp.eq.s32.totalorder %s24, 0
      %p275 = por %p273, %p274
      %p276 = scmp.ne.s32.totalorder %s268, %s270
      %p277 = scmp.eq.s32.totalorder %s29, 1
      %p278 = por %p276, %p277
      %p279 = scmp.ne.s32.totalorder %s270, %s271
      %p280 = scmp.eq.s32.totalorder %s29, 0
      %p281 = por %p279, %p280
      %p282 = scmp.ne.s32.totalorder %s270, %s271
      %p283 = scmp.eq.s32.totalorder %s30, 1
      %p284 = por %p282, %p283
      %p286 = scmp.ne.s32.totalorder %s271, %s285
      %p287 = scmp.eq.s32.totalorder %s30, 0
      %p288 = por %p286, %p287
      %s290 = sadd.s32 %s289, 1
      %p293 = scmp.eq.s32.totalorder %s24, 1
      %p294 = scmp.ne.s32.totalorder %s289, %s291
      %p295 = scmp.eq.s32.totalorder %s24, 0
      %p296 = por %p294, %p295
      %p297 = scmp.ne.s32.totalorder %s289, %s291
      %p298 = scmp.eq.s32.totalorder %s29, 1
      %p299 = por %p297, %p298
      %p300 = scmp.ne.s32.totalorder %s291, %s292
      %p301 = scmp.eq.s32.totalorder %s29, 0
      %p302 = por %p300, %p301
      %p303 = scmp.ne.s32.totalorder %s291, %s292
      %p304 = scmp.eq.s32.totalorder %s30, 1
      %p305 = por %p303, %p304
      %p307 = scmp.ne.s32.totalorder %s292, %s306
      %p308 = scmp.eq.s32.totalorder %s30, 0
      %p309 = por %p307, %p308
      %s311 = sadd.s32 %s310, 1
      %p314 = scmp.eq.s32.totalorder %s24, 1
      %p315 = scmp.ne.s32.totalorder %s310, %s312
      %p316 = scmp.eq.s32.totalorder %s24, 0
      %p317 = por %p315, %p316
      %p318 = scmp.ne.s32.totalorder %s310, %s312
      %p319 = scmp.eq.s32.totalorder %s29, 1
      %p320 = por %p318, %p319
      %p321 = scmp.ne.s32.totalorder %s312, %s313
      %p322 = scmp.eq.s32.totalorder %s29, 0
      %p323 = por %p321, %p322
      %p324 = scmp.ne.s32.totalorder %s312, %s313
      %p325 = scmp.eq.s32.totalorder %s30, 1
      %p326 = por %p324, %p325
      %p328 = scmp.ne.s32.totalorder %s313, %s327
      %p329 = scmp.eq.s32.totalorder %s30, 0
      %p330 = por %p328, %p329
      %s332 = sadd.s32 %s331, 1
      %p335 = scmp.eq.s32.totalorder %s24, 1
      %p336 = scmp.ne.s32.totalorder %s331, %s333
      %p337 = scmp.eq.s32.totalorder %s24, 0
      %p338 = por %p336, %p337
      %p339 = scmp.ne.s32.totalorder %s331, %s333
      %p340 = scmp.eq.s32.totalorder %s29, 1
      %p341 = por %p339, %p340
      %p342 = scmp.ne.s32.totalorder %s333, %s334
      %p343 = scmp.eq.s32.totalorder %s29, 0
      %p344 = por %p342, %p343
      %p345 = scmp.ne.s32.totalorder %s333, %s334
      %p346 = scmp.eq.s32.totalorder %s30, 1
      %p347 = por %p345, %p346
      %p349 = scmp.ne.s32.totalorder %s334, %s348
      %p350 = scmp.eq.s32.totalorder %s30, 0
      %p351 = por %p349, %p350
      %s352 = ssub.s32 %s24, %s31
      %p353 = scmp.eq.s32.totalorder %s352, 0
      %s355 = sadd.s32 %s354, 1
      %s356 = scalar_select %p353, %s354, %s355
      %p359 = pneg %p353
      %p360 = scmp.eq.s32.totalorder %s24, 1
      %p361 = por %p359, %p360
      %p362 = scmp.ne.s32.totalorder %s354, %s357
      %p363 = scmp.eq.s32.totalorder %s24, 0
      %p364 = por %p362, %p363
      %p365 = scmp.ne.s32.totalorder %s354, %s357
      %p366 = scmp.eq.s32.totalorder %s29, 1
      %p367 = por %p365, %p366
      %p368 = scmp.ne.s32.totalorder %s357, %s358
      %p369 = scmp.eq.s32.totalorder %s29, 0
      %p370 = por %p368, %p369
      %p371 = scmp.ne.s32.totalorder %s357, %s358
      %p372 = scmp.eq.s32.totalorder %s30, 1
      %p373 = por %p371, %p372
      %p375 = scmp.ne.s32.totalorder %s358, %s374
      %p376 = scmp.eq.s32.totalorder %s30, 0
      %p377 = por %p375, %p376
      %p378 = scmp.le.s32.totalorder 1, %s24
      %p379 = scmp.lt.s32.totalorder %s24, 3
      %p380 = pnand %p378, %p379
      %p381 = pneg %p380
      // Predicated region
      $region9: #{flat_model_forward.1} parent=5 // pred_check
        _
      $region10: #{flat_model_forward.1} parent=5 // pred_check_branch
        %383 = sbr.rel (%p380) target = $region12
      $region11: #{flat_model_forward.1} parent=5 // pred_region
        %s384 = ssub.s32 %s24, 1
        // Predicated region
        $region13: #{flat_model_forward.1} parent=11 // pred_check
          %p385 = pneg %p71
        $region14: #{flat_model_forward.1} parent=11 // pred_check_branch
          %387 = sbr.rel (%p385) target = $region16
        $region15: #{flat_model_forward.1} parent=11 // pred_region
          _
        $region16: #{flat_model_forward.1} parent=11 // pred_fallthru
          _
        // Predicated region
        $region17: #{flat_model_forward.1} parent=11 // pred_check
          %p388 = pneg %p92
        $region18: #{flat_model_forward.1} parent=11 // pred_check_branch
          %390 = sbr.rel (%p388) target = $region20
        $region19: #{flat_model_forward.1} parent=11 // pred_region
          _
        $region20: #{flat_model_forward.1} parent=11 // pred_fallthru
          _
        // Predicated region
        $region21: #{flat_model_forward.1} parent=11 // pred_check
          %p391 = pneg %p113
        $region22: #{flat_model_forward.1} parent=11 // pred_check_branch
          %393 = sbr.rel (%p391) target = $region24
        $region23: #{flat_model_forward.1} parent=11 // pred_region
          _
        $region24: #{flat_model_forward.1} parent=11 // pred_fallthru
          _
        // Predicated region
        $region25: #{flat_model_forward.1} parent=11 // pred_check
          %p394 = pneg %p134
        $region26: #{flat_model_forward.1} parent=11 // pred_check_branch
          %396 = sbr.rel (%p394) target = $region28
        $region27: #{flat_model_forward.1} parent=11 // pred_region
          _
        $region28: #{flat_model_forward.1} parent=11 // pred_fallthru
          _
        // Predicated region
        $region29: #{flat_model_forward.1} parent=11 // pred_check
          %p397 = pneg %p155
        $region30: #{flat_model_forward.1} parent=11 // pred_check_branch
          %399 = sbr.rel (%p397) target = $region32
        $region31: #{flat_model_forward.1} parent=11 // pred_region
          _
        $region32: #{flat_model_forward.1} parent=11 // pred_fallthru
          _
        // Predicated region
        $region33: #{flat_model_forward.1} parent=11 // pred_check
          %p400 = pneg %p176
        $region34: #{flat_model_forward.1} parent=11 // pred_check_branch
          %402 = sbr.rel (%p400) target = $region36
        $region35: #{flat_model_forward.1} parent=11 // pred_region
          _
        $region36: #{flat_model_forward.1} parent=11 // pred_fallthru
          _
        // Predicated region
        $region37: #{flat_model_forward.1} parent=11 // pred_check
          %p403 = pneg %p197
        $region38: #{flat_model_forward.1} parent=11 // pred_check_branch
          %405 = sbr.rel (%p403) target = $region40
        $region39: #{flat_model_forward.1} parent=11 // pred_region
          _
        $region40: #{flat_model_forward.1} parent=11 // pred_fallthru
          _
        // Predicated region
        $region41: #{flat_model_forward.1} parent=11 // pred_check
          %p406 = pneg %p218
        $region42: #{flat_model_forward.1} parent=11 // pred_check_branch
          %408 = sbr.rel (%p406) target = $region44
        $region43: #{flat_model_forward.1} parent=11 // pred_region
          _
        $region44: #{flat_model_forward.1} parent=11 // pred_fallthru
          _
        // Predicated region
        $region45: #{flat_model_forward.1} parent=11 // pred_check
          %p409 = pneg %p239
        $region46: #{flat_model_forward.1} parent=11 // pred_check_branch
          %411 = sbr.rel (%p409) target = $region48
        $region47: #{flat_model_forward.1} parent=11 // pred_region
          _
        $region48: #{flat_model_forward.1} parent=11 // pred_fallthru
          _
        // Predicated region
        $region49: #{flat_model_forward.1} parent=11 // pred_check
          %p412 = pneg %p260
        $region50: #{flat_model_forward.1} parent=11 // pred_check_branch
          %414 = sbr.rel (%p412) target = $region52
        $region51: #{flat_model_forward.1} parent=11 // pred_region
          _
        $region52: #{flat_model_forward.1} parent=11 // pred_fallthru
          _
        // Predicated region
        $region53: #{flat_model_forward.1} parent=11 // pred_check
          %p415 = pneg %p281
        $region54: #{flat_model_forward.1} parent=11 // pred_check_branch
          %417 = sbr.rel (%p415) target = $region56
        $region55: #{flat_model_forward.1} parent=11 // pred_region
          _
        $region56: #{flat_model_forward.1} parent=11 // pred_fallthru
          _
        // Predicated region
        $region57: #{flat_model_forward.1} parent=11 // pred_check
          %p418 = pneg %p302
        $region58: #{flat_model_forward.1} parent=11 // pred_check_branch
          %420 = sbr.rel (%p418) target = $region60
        $region59: #{flat_model_forward.1} parent=11 // pred_region
          _
        $region60: #{flat_model_forward.1} parent=11 // pred_fallthru
          _
        // Predicated region
        $region61: #{flat_model_forward.1} parent=11 // pred_check
          %p421 = pneg %p323
        $region62: #{flat_model_forward.1} parent=11 // pred_check_branch
          %423 = sbr.rel (%p421) target = $region64
        $region63: #{flat_model_forward.1} parent=11 // pred_region
          _
        $region64: #{flat_model_forward.1} parent=11 // pred_fallthru
          _
        // Predicated region
        $region65: #{flat_model_forward.1} parent=11 // pred_check
          %p424 = pneg %p344
        $region66: #{flat_model_forward.1} parent=11 // pred_check_branch
          %426 = sbr.rel (%p424) target = $region68
        $region67: #{flat_model_forward.1} parent=11 // pred_region
          _
        $region68: #{flat_model_forward.1} parent=11 // pred_fallthru
          _
      $region12: #{flat_model_forward.1} parent=5 // pred_fallthru
        _
      %p427 = scmp.lt.s32.totalorder %s24, 2
      // Predicated region
      $region69: #{flat_model_forward.1} parent=5 // pred_check
        %p428 = pneg %p427
      $region70: #{flat_model_forward.1} parent=5 // pred_check_branch
        %430 = sbr.rel (%p428) target = $region72
      $region71: #{flat_model_forward.1} parent=5 // pred_region
        // Predicated region
        $region73: #{flat_model_forward.1} parent=71 // pred_check
          %p431 = pneg %p44
        $region74: #{flat_model_forward.1} parent=71 // pred_check_branch
          %433 = sbr.rel (%p431) target = $region76
        $region75: #{flat_model_forward.1} parent=71 // pred_region
          %p434 = scmp.lt.s32.totalorder %s24, 1
          %s435 = scalar_select %p434, %s24, 1
          %s436 = smul.addr %s435, 2
          %s437 = smul.addr %s436, 8
          %s438 = scalar_lea.vmem %s0, %s437
        $region76: #{flat_model_forward.1} parent=71 // pred_fallthru
          _
      $region72: #{flat_model_forward.1} parent=5 // pred_fallthru
        _
      %p439 = scmp.le.s32.totalorder 1, %s24
      %p440 = scmp.lt.s32.totalorder %s24, 3
      %p441 = pnand %p439, %p440
      %p442 = pneg %p441
      // Predicated region
      $region77: #{flat_model_forward.1} parent=5 // pred_check
        _
      $region78: #{flat_model_forward.1} parent=5 // pred_check_branch
        %444 = sbr.rel (%p441) target = $region80
      $region79: #{flat_model_forward.1} parent=5 // pred_region
        %s445 = ssub.s32 %s24, 1
        %p446 = scmp.lt.s32.totalorder %s29, 1
        %s447 = scalar_select %p446, %s29, 1
        %s448 = smul.addr %s447, 2
        %s449 = smul.addr %s448, 8
        %s450 = scalar_lea.vmem %s0, %s449
        %p451 = pneg %p50
        %p452 = pneg %p47
        %p453 = pneg %p71
        %p454 = pneg %p68
        %p455 = pneg %p92
        %p456 = pneg %p89
        %p457 = pneg %p113
        %p458 = pneg %p110
        %p459 = pneg %p134
        %p460 = pneg %p131
        %p461 = pneg %p155
        %p462 = pneg %p152
        %p463 = pneg %p176
        %p464 = pneg %p173
        %p465 = pneg %p197
        %p466 = pneg %p194
        %p467 = pneg %p218
        %p468 = pneg %p215
        %p469 = pneg %p239
        %p470 = pneg %p236
        %p471 = pneg %p260
        %p472 = pneg %p257
        %p473 = pneg %p281
        %p474 = pneg %p278
        %p475 = pneg %p302
        %p476 = pneg %p299
        %p477 = pneg %p323
        %p478 = pneg %p320
        %p479 = pneg %p344
        %p480 = pneg %p341
        %p481 = pneg %p370
        %p482 = pneg %p367
        %s483 = sand.u32 %s357, 1
        %s484 = scalar_lea.sflag [#allocation4], %s483
        %s485 = sand.u32 %s357, 1
        %s486 = scalar_lea.vmem [#allocation3], %s485
        %p487 = scmp.lt.s32.totalorder %s29, 1
        %s488 = scalar_select %p487, %s29, 1
        %s489 = smul.addr %s488, 2
        %s490 = smul.addr %s489, 8
        %s491 = scalar_lea.vmem %s0, %s490
        %493 = vst [vmem:[#allocation2] sm:$0xff] 0.0
        %494 = vst [vmem:[#allocation2 + $0x18] sm:$0xff] 0.0
        %v495 = vld [vmem:[%s491] sm:$0xff]
        %v496 = vld [vmem:[%s491 + $0x8] sm:$0xff]
        %v497 = vld [vmem:[%s9] sm:$0x1]
        %v498 = vld [vmem:[%s9 + $0x1] sm:$0x1]
        %499 = vst [vmem:[#allocation2 + $0x8] sm:$0xff] %v495
        %500 = vst [vmem:[#allocation2 + $0x10] sm:$0xff] %v496
        %v501 = vld [vmem:[#allocation2 + $0x7] sm:$0xff]
        %v502 = vld [vmem:[#allocation2 + $0xf] sm:$0xff]
        %v503 = vpack.c.bf16 %v502, %v501
        %v504 = vld [vmem:[%s1] sm:$0xf]
        %v505 = vld [vmem:[%s1 + $0x4] sm:$0xf]
        %v506 = vld [vmem:[%s1 + $0x8] sm:$0xf]
        %v507 = vld [vmem:[%s1 + $0xc] sm:$0xf]
        %v508 = vld [vmem:[%s1 + $0x10] sm:$0xf]
        %v509 = vld [vmem:[%s1 + $0x14] sm:$0xf]
        %v510 = vld [vmem:[%s1 + $0x18] sm:$0xf]
        %v511 = vld [vmem:[%s1 + $0x1c] sm:$0xf]
        %v512 = vld [vmem:[%s1 + $0x20] sm:$0xf]
        %v513 = vld [vmem:[%s1 + $0x24] sm:$0xf]
        %v514 = vld [vmem:[%s1 + $0x28] sm:$0xf]
        %v515 = vld [vmem:[%s1 + $0x2c] sm:$0xf]
        %v516 = vld [vmem:[%s1 + $0x30] sm:$0xf]
        %v517 = vld [vmem:[%s1 + $0x34] sm:$0xf]
        %v518 = vld [vmem:[%s1 + $0x38] sm:$0xf]
        %v519 = vld [vmem:[%s1 + $0x3c] sm:$0xf]
        %v520 = vld [vmem:[#allocation2 + $0x8] sm:$0xff]
        %v521 = vld [vmem:[#allocation2 + $0x10] sm:$0xff]
        %v522 = vpack.c.bf16 %v521, %v520
        %s523 = scalar_lea.vmem %s1, 64
        %v524 = vld [vmem:[%s523] sm:$0xf]
        %v525 = vld [vmem:[%s523 + $0x4] sm:$0xf]
        %v526 = vld [vmem:[%s523 + $0x8] sm:$0xf]
        %v527 = vld [vmem:[%s523 + $0xc] sm:$0xf]
        %v528 = vld [vmem:[%s523 + $0x10] sm:$0xf]
        %v529 = vld [vmem:[%s523 + $0x14] sm:$0xf]
        %v530 = vld [vmem:[%s523 + $0x18] sm:$0xf]
        %v531 = vld [vmem:[%s523 + $0x1c] sm:$0xf]
        %v532 = vld [vmem:[%s523 + $0x20] sm:$0xf]
        %v533 = vld [vmem:[%s523 + $0x24] sm:$0xf]
        %v534 = vld [vmem:[%s523 + $0x28] sm:$0xf]
        %v535 = vld [vmem:[%s523 + $0x2c] sm:$0xf]
        %v536 = vld [vmem:[%s523 + $0x30] sm:$0xf]
        %v537 = vld [vmem:[%s523 + $0x34] sm:$0xf]
        %v538 = vld [vmem:[%s523 + $0x38] sm:$0xf]
        %v539 = vld [vmem:[%s523 + $0x3c] sm:$0xf]
        %v556 = vunpack.c.l.b16 %v524
        %v557 = vunpack.c.l.b16 %v525
        %v558 = vunpack.c.l.b16 %v526
        %v559 = vunpack.c.l.b16 %v527
        %v560 = vunpack.c.l.b16 %v528
        %v561 = vunpack.c.l.b16 %v529
        %v562 = vunpack.c.l.b16 %v530
        %v563 = vunpack.c.l.b16 %v531
        %v564 = vunpack.c.l.b16 %v532
        %v565 = vunpack.c.l.b16 %v533
        %v566 = vunpack.c.l.b16 %v534
        %v567 = vunpack.c.l.b16 %v535
        %v568 = vunpack.c.l.b16 %v536
        %v569 = vunpack.c.l.b16 %v537
        %v570 = vunpack.c.l.b16 %v538
        %v571 = vunpack.c.l.b16 %v539
        %v572 = vpack.c.b16 %v557, %v556
        %v573 = vpack.c.b16 %v559, %v558
        %v574 = vpack.c.b16 %v561, %v560
        %v575 = vpack.c.b16 %v563, %v562
        %v576 = vpack.c.b16 %v565, %v564
        %v577 = vpack.c.b16 %v567, %v566
        %v578 = vpack.c.b16 %v569, %v568
        %v579 = vpack.c.b16 %v571, %v570
        %588 = vmatprep.subr.bf16.mxu0 0
        %589 = vmatpush1.bf16.msra.mxu0 %v572
        %590 = vmatprep.subr.bf16.mxu0 0
        %591 = vmatpush1.bf16.msra.mxu0 %v573
        %592 = vmatprep.subr.bf16.mxu0 0
        %593 = vmatpush1.bf16.msra.mxu0 %v574
        %594 = vmatprep.subr.bf16.mxu0 0
        %595 = vmatpush1.bf16.msra.mxu0 %v575
        %596 = vmatprep.subr.bf16.mxu0 0
        %597 = vmatpush1.bf16.msra.mxu0 %v576
        %598 = vmatprep.subr.bf16.mxu0 0
        %599 = vmatpush1.bf16.msra.mxu0 %v577
        %600 = vmatprep.subr.bf16.mxu0 0
        %601 = vmatpush1.bf16.msra.mxu0 %v578
        %602 = vmatprep.subr.bf16.mxu0 0
        %603 = vmatpush1.bf16.msra.mxu0 %v579
        %604 = vmatprep.subr.bf16.mxu0 0
        %605 = vmatpush1.bf16.msra.mxu0 0
        %606 = vmatprep.subr.bf16.mxu0 0
        %607 = vmatpush1.bf16.msra.mxu0 0
        %608 = vmatprep.subr.bf16.mxu0 0
        %609 = vmatpush1.bf16.msra.mxu0 0
        %610 = vmatprep.subr.bf16.mxu0 0
        %611 = vmatpush1.bf16.msra.mxu0 0
        %612 = vmatprep.subr.bf16.mxu0 0
        %613 = vmatpush1.bf16.msra.mxu0 0
        %614 = vmatprep.subr.bf16.mxu0 0
        %615 = vmatpush1.bf16.msra.mxu0 0
        %616 = vmatprep.subr.bf16.mxu0 0
        %617 = vmatpush1.bf16.msra.mxu0 0
        %618 = vmatprep.subr.bf16.mxu0 0
        %619 = vmatpush1.bf16.msra.mxu0 0
        %620 = vmatprep.mubr.bf16.mxu0 0
        %621 = vmatmul.mubr.bf16.gmra.mrb[0].mxu0 %v522
        %v622 = vpop.f32.mrb[0].mxu0
        %v623 = vadd.f32 0.0, %v622
        %v624 = vpop.f32.mrb[0].mxu0
        %v625 = vpop.f32.mrb[0].mxu0
        %v626 = vadd.f32 0.0, %v625
        %v627 = vpop.f32.mrb[0].mxu0
        %628 = vdwg.mxu0
        %v645 = vunpack.c.l.b16 %v504
        %v646 = vunpack.c.l.b16 %v505
        %v647 = vunpack.c.l.b16 %v506
        %v648 = vunpack.c.l.b16 %v507
        %v649 = vunpack.c.l.b16 %v508
        %v650 = vunpack.c.l.b16 %v509
        %v651 = vunpack.c.l.b16 %v510
        %v652 = vunpack.c.l.b16 %v511
        %v653 = vunpack.c.l.b16 %v512
        %v654 = vunpack.c.l.b16 %v513
        %v655 = vunpack.c.l.b16 %v514
        %v656 = vunpack.c.l.b16 %v515
        %v657 = vunpack.c.l.b16 %v516
        %v658 = vunpack.c.l.b16 %v517
        %v659 = vunpack.c.l.b16 %v518
        %v660 = vunpack.c.l.b16 %v519
        %v661 = vpack.c.b16 %v646, %v645
        %v662 = vpack.c.b16 %v648, %v647
        %v663 = vpack.c.b16 %v650, %v649
        %v664 = vpack.c.b16 %v652, %v651
        %v665 = vpack.c.b16 %v654, %v653
        %v666 = vpack.c.b16 %v656, %v655
        %v667 = vpack.c.b16 %v658, %v657
        %v668 = vpack.c.b16 %v660, %v659
        %677 = vmatprep.subr.bf16.mxu0 0
        %678 = vmatpush1.bf16.msra.mxu0 %v661
        %679 = vmatprep.subr.bf16.mxu0 0
        %680 = vmatpush1.bf16.msra.mxu0 %v662
        %681 = vmatprep.subr.bf16.mxu0 0
        %682 = vmatpush1.bf16.msra.mxu0 %v663
        %683 = vmatprep.subr.bf16.mxu0 0
        %684 = vmatpush1.bf16.msra.mxu0 %v664
        %685 = vmatprep.subr.bf16.mxu0 0
        %686 = vmatpush1.bf16.msra.mxu0 %v665
        %687 = vmatprep.subr.bf16.mxu0 0
        %688 = vmatpush1.bf16.msra.mxu0 %v666
        %689 = vmatprep.subr.bf16.mxu0 0
        %690 = vmatpush1.bf16.msra.mxu0 %v667
        %691 = vmatprep.subr.bf16.mxu0 0
        %692 = vmatpush1.bf16.msra.mxu0 %v668
        %693 = vmatprep.subr.bf16.mxu0 0
        %694 = vmatpush1.bf16.msra.mxu0 0
        %695 = vmatprep.subr.bf16.mxu0 0
        %696 = vmatpush1.bf16.msra.mxu0 0
        %697 = vmatprep.subr.bf16.mxu0 0
        %698 = vmatpush1.bf16.msra.mxu0 0
        %699 = vmatprep.subr.bf16.mxu0 0
        %700 = vmatpush1.bf16.msra.mxu0 0
        %701 = vmatprep.subr.bf16.mxu0 0
        %702 = vmatpush1.bf16.msra.mxu0 0
        %703 = vmatprep.subr.bf16.mxu0 0
        %704 = vmatpush1.bf16.msra.mxu0 0
        %705 = vmatprep.subr.bf16.mxu0 0
        %706 = vmatpush1.bf16.msra.mxu0 0
        %707 = vmatprep.subr.bf16.mxu0 0
        %708 = vmatpush1.bf16.msra.mxu0 0
        %709 = vmatprep.mubr.bf16.mxu0 0
        %710 = vmatmul.mubr.bf16.gmra.mrb[0].mxu0 %v503
        %v711 = vpop.f32.mrb[0].mxu0
        %v712 = vadd.f32 %v623, %v711
        %v713 = vpop.f32.mrb[0].mxu0
        %v714 = vpop.f32.mrb[0].mxu0
        %v715 = vadd.f32 %v626, %v714
        %v716 = vpop.f32.mrb[0].mxu0
        %717 = vdwg.mxu0
        %v718 = vld [vmem:[#allocation2 + $0x9] sm:$0xff]
        %v719 = vld [vmem:[#allocation2 + $0x11] sm:$0xff]
        %v720 = vpack.c.bf16 %v719, %v718
        %s721 = scalar_lea.vmem %s1, 128
        %v722 = vld [vmem:[%s721] sm:$0xf]
        %v723 = vld [vmem:[%s721 + $0x4] sm:$0xf]
        %v724 = vld [vmem:[%s721 + $0x8] sm:$0xf]
        %v725 = vld [vmem:[%s721 + $0xc] sm:$0xf]
        %v726 = vld [vmem:[%s721 + $0x10] sm:$0xf]
        %v727 = vld [vmem:[%s721 + $0x14] sm:$0xf]
        %v728 = vld [vmem:[%s721 + $0x18] sm:$0xf]
        %v729 = vld [vmem:[%s721 + $0x1c] sm:$0xf]
        %v730 = vld [vmem:[%s721 + $0x20] sm:$0xf]
        %v731 = vld [vmem:[%s721 + $0x24] sm:$0xf]
        %v732 = vld [vmem:[%s721 + $0x28] sm:$0xf]
        %v733 = vld [vmem:[%s721 + $0x2c] sm:$0xf]
        %v734 = vld [vmem:[%s721 + $0x30] sm:$0xf]
        %v735 = vld [vmem:[%s721 + $0x34] sm:$0xf]
        %v736 = vld [vmem:[%s721 + $0x38] sm:$0xf]
        %v737 = vld [vmem:[%s721 + $0x3c] sm:$0xf]
        %v754 = vunpack.c.l.b16 %v722
        %v755 = vunpack.c.l.b16 %v723
        %v756 = vunpack.c.l.b16 %v724
        %v757 = vunpack.c.l.b16 %v725
        %v758 = vunpack.c.l.b16 %v726
        %v759 = vunpack.c.l.b16 %v727
        %v760 = vunpack.c.l.b16 %v728
        %v761 = vunpack.c.l.b16 %v729
        %v762 = vunpack.c.l.b16 %v730
        %v763 = vunpack.c.l.b16 %v731
        %v764 = vunpack.c.l.b16 %v732
        %v765 = vunpack.c.l.b16 %v733
        %v766 = vunpack.c.l.b16 %v734
        %v767 = vunpack.c.l.b16 %v735
        %v768 = vunpack.c.l.b16 %v736
        %v769 = vunpack.c.l.b16 %v737
        %v770 = vpack.c.b16 %v755, %v754
        %v771 = vpack.c.b16 %v757, %v756
        %v772 = vpack.c.b16 %v759, %v758
        %v773 = vpack.c.b16 %v761, %v760
        %v774 = vpack.c.b16 %v763, %v762
        %v775 = vpack.c.b16 %v765, %v764
        %v776 = vpack.c.b16 %v767, %v766
        %v777 = vpack.c.b16 %v769, %v768
        %786 = vmatprep.subr.bf16.mxu0 0
        %787 = vmatpush1.bf16.msra.mxu0 %v770
        %788 = vmatprep.subr.bf16.mxu0 0
        %789 = vmatpush1.bf16.msra.mxu0 %v771
        %790 = vmatprep.subr.bf16.mxu0 0
        %791 = vmatpush1.bf16.msra.mxu0 %v772
        %792 = vmatprep.subr.bf16.mxu0 0
        %793 = vmatpush1.bf16.msra.mxu0 %v773
        %794 = vmatprep.subr.bf16.mxu0 0
        %795 = vmatpush1.bf16.msra.mxu0 %v774
        %796 = vmatprep.subr.bf16.mxu0 0
        %797 = vmatpush1.bf16.msra.mxu0 %v775
        %798 = vmatprep.subr.bf16.mxu0 0
        %799 = vmatpush1.bf16.msra.mxu0 %v776
        %800 = vmatprep.subr.bf16.mxu0 0
        %801 = vmatpush1.bf16.msra.mxu0 %v777
        %802 = vmatprep.subr.bf16.mxu0 0
        %803 = vmatpush1.bf16.msra.mxu0 0
        %804 = vmatprep.subr.bf16.mxu0 0
        %805 = vmatpush1.bf16.msra.mxu0 0
        %806 = vmatprep.subr.bf16.mxu0 0
        %807 = vmatpush1.bf16.msra.mxu0 0
        %808 = vmatprep.subr.bf16.mxu0 0
        %809 = vmatpush1.bf16.msra.mxu0 0
        %810 = vmatprep.subr.bf16.mxu0 0
        %811 = vmatpush1.bf16.msra.mxu0 0
        %812 = vmatprep.subr.bf16.mxu0 0
        %813 = vmatpush1.bf16.msra.mxu0 0
        %814 = vmatprep.subr.bf16.mxu0 0
        %815 = vmatpush1.bf16.msra.mxu0 0
        %816 = vmatprep.subr.bf16.mxu0 0
        %817 = vmatpush1.bf16.msra.mxu0 0
        %818 = vmatprep.mubr.bf16.mxu0 0
        %819 = vmatmul.mubr.bf16.gmra.mrb[0].mxu0 %v720
        %v820 = vpop.f32.mrb[0].mxu0
        %v821 = vadd.f32 0.0, %v820
        %v822 = vpop.f32.mrb[0].mxu0
        %v823 = vpop.f32.mrb[0].mxu0
        %v824 = vadd.f32 0.0, %v823
        %v825 = vpop.f32.mrb[0].mxu0
        %826 = vdwg.mxu0
        %v827 = vadd.f32 %v712, %v821
        %v828 = vadd.f32 %v715, %v824
        %v829 = vlaneseq
        %v830 = vshrl.u32 %v829, 7
        %v831 = vsub.s32 0, %v830
        %v832 = vrot.slane %v497, %v831
        %v833 = vmul.f32 %v827, %v832
        %v834 = vmul.f32 %v828, %v832
        %v835 = vlaneseq
        %v836 = vshrl.u32 %v835, 7
        %v837 = vsub.s32 0, %v836
        %v838 = vrot.slane %v498, %v837
        %v839 = vadd.f32 %v833, %v838
        %v840 = vadd.f32 %v834, %v838
        %v841 = vtanh.pop %v839
        %v842 = vtanh.pop %v840
        %v843 = vpack.c.bf16 %v842, %v841
        %v844 = vld [vmem:[%s9 + $0x2] sm:$0x1]
        %v845 = vld [vmem:[%s9 + $0x3] sm:$0x1]
        %846 = vst [vmem:[#allocation2 + $0x8] sm:$0xff] %v841
        %847 = vst [vmem:[#allocation2 + $0x10] sm:$0xff] %v842
        %v848 = vld [vmem:[#allocation2 + $0x7] sm:$0xff]
        %v849 = vld [vmem:[#allocation2 + $0xf] sm:$0xff]
        %v850 = vpack.c.bf16 %v849, %v848
        %v851 = vld [vmem:[%s2] sm:$0xf]
        %v852 = vld [vmem:[%s2 + $0x4] sm:$0xf]
        %v853 = vld [vmem:[%s2 + $0x8] sm:$0xf]
        %v854 = vld [vmem:[%s2 + $0xc] sm:$0xf]
        %v855 = vld [vmem:[%s2 + $0x10] sm:$0xf]
        %v856 = vld [vmem:[%s2 + $0x14] sm:$0xf]
        %v857 = vld [vmem:[%s2 + $0x18] sm:$0xf]
        %v858 = vld [vmem:[%s2 + $0x1c] sm:$0xf]
        %v859 = vld [vmem:[%s2 + $0x20] sm:$0xf]
        %v860 = vld [vmem:[%s2 + $0x24] sm:$0xf]
        %v861 = vld [vmem:[%s2 + $0x28] sm:$0xf]
        %v862 = vld [vmem:[%s2 + $0x2c] sm:$0xf]
        %v863 = vld [vmem:[%s2 + $0x30] sm:$0xf]
        %v864 = vld [vmem:[%s2 + $0x34] sm:$0xf]
        %v865 = vld [vmem:[%s2 + $0x38] sm:$0xf]
        %v866 = vld [vmem:[%s2 + $0x3c] sm:$0xf]
        %v867 = vld [vmem:[#allocation2 + $0x8] sm:$0xff]
        %v868 = vld [vmem:[#allocation2 + $0x10] sm:$0xff]
        %v869 = vpack.c.bf16 %v868, %v867
        %s870 = scalar_lea.vmem %s2, 64
        %v871 = vld [vmem:[%s870] sm:$0xf]
        %v872 = vld [vmem:[%s870 + $0x4] sm:$0xf]
        %v873 = vld [vmem:[%s870 + $0x8] sm:$0xf]
        %v874 = vld [vmem:[%s870 + $0xc] sm:$0xf]
        %v875 = vld [vmem:[%s870 + $0x10] sm:$0xf]
        %v876 = vld [vmem:[%s870 + $0x14] sm:$0xf]
        %v877 = vld [vmem:[%s870 + $0x18] sm:$0xf]
        %v878 = vld [vmem:[%s870 + $0x1c] sm:$0xf]
        %v879 = vld [vmem:[%s870 + $0x20] sm:$0xf]
        %v880 = vld [vmem:[%s870 + $0x24] sm:$0xf]
        %v881 = vld [vmem:[%s870 + $0x28] sm:$0xf]
        %v882 = vld [vmem:[%s870 + $0x2c] sm:$0xf]
        %v883 = vld [vmem:[%s870 + $0x30] sm:$0xf]
        %v884 = vld [vmem:[%s870 + $0x34] sm:$0xf]
        %v885 = vld [vmem:[%s870 + $0x38] sm:$0xf]
        %v886 = vld [vmem:[%s870 + $0x3c] sm:$0xf]
        %v903 = vunpack.c.l.b16 %v871
        %v904 = vunpack.c.l.b16 %v872
        %v905 = vunpack.c.l.b16 %v873
        %v906 = vunpack.c.l.b16 %v874
        %v907 = vunpack.c.l.b16 %v875
        %v908 = vunpack.c.l.b16 %v876
        %v909 = vunpack.c.l.b16 %v877
        %v910 = vunpack.c.l.b16 %v878
        %v911 = vunpack.c.l.b16 %v879
        %v912 = vunpack.c.l.b16 %v880
        %v913 = vunpack.c.l.b16 %v881
        %v914 = vunpack.c.l.b16 %v882
        %v915 = vunpack.c.l.b16 %v883
        %v916 = vunpack.c.l.b16 %v884
        %v917 = vunpack.c.l.b16 %v885
        %v918 = vunpack.c.l.b16 %v886
        %v919 = vpack.c.b16 %v904, %v903
        %v920 = vpack.c.b16 %v906, %v905
        %v921 = vpack.c.b16 %v908, %v907
        %v922 = vpack.c.b16 %v910, %v909
        %v923 = vpack.c.b16 %v912, %v911
        %v924 = vpack.c.b16 %v914, %v913
        %v925 = vpack.c.b16 %v916, %v915
        %v926 = vpack.c.b16 %v918, %v917
        %935 = vmatprep.subr.bf16.mxu0 0
        %936 = vmatpush1.bf16.msra.mxu0 %v919
        %937 = vmatprep.subr.bf16.mxu0 0
        %938 = vmatpush1.bf16.msra.mxu0 %v920
        %939 = vmatprep.subr.bf16.mxu0 0
        %940 = vmatpush1.bf16.msra.mxu0 %v921
        %941 = vmatprep.subr.bf16.mxu0 0
        %942 = vmatpush1.bf16.msra.mxu0 %v922
        %943 = vmatprep.subr.bf16.mxu0 0
        %944 = vmatpush1.bf16.msra.mxu0 %v923
        %945 = vmatprep.subr.bf16.mxu0 0
        %946 = vmatpush1.bf16.msra.mxu0 %v924
        %947 = vmatprep.subr.bf16.mxu0 0
        %948 = vmatpush1.bf16.msra.mxu0 %v925
        %949 = vmatprep.subr.bf16.mxu0 0
        %950 = vmatpush1.bf16.msra.mxu0 %v926
        %951 = vmatprep.subr.bf16.mxu0 0
        %952 = vmatpush1.bf16.msra.mxu0 0
        %953 = vmatprep.subr.bf16.mxu0 0
        %954 = vmatpush1.bf16.msra.mxu0 0
        %955 = vmatprep.subr.bf16.mxu0 0
        %956 = vmatpush1.bf16.msra.mxu0 0
        %957 = vmatprep.subr.bf16.mxu0 0
        %958 = vmatpush1.bf16.msra.mxu0 0
        %959 = vmatprep.subr.bf16.mxu0 0
        %960 = vmatpush1.bf16.msra.mxu0 0
        %961 = vmatprep.subr.bf16.mxu0 0
        %962 = vmatpush1.bf16.msra.mxu0 0
        %963 = vmatprep.subr.bf16.mxu0 0
        %964 = vmatpush1.bf16.msra.mxu0 0
        %965 = vmatprep.subr.bf16.mxu0 0
        %966 = vmatpush1.bf16.msra.mxu0 0
        %967 = vmatprep.mubr.bf16.mxu0 0
        %968 = vmatmul.mubr.bf16.gmra.mrb[0].mxu0 %v869
        %v969 = vpop.f32.mrb[0].mxu0
        %v970 = vadd.f32 0.0, %v969
        %v971 = vpop.f32.mrb[0].mxu0
        %v972 = vpop.f32.mrb[0].mxu0
        %v973 = vadd.f32 0.0, %v972
        %v974 = vpop.f32.mrb[0].mxu0
        %975 = vdwg.mxu0
        %v992 = vunpack.c.l.b16 %v851
        %v993 = vunpack.c.l.b16 %v852
        %v994 = vunpack.c.l.b16 %v853
        %v995 = vunpack.c.l.b16 %v854
        %v996 = vunpack.c.l.b16 %v855
        %v997 = vunpack.c.l.b16 %v856
        %v998 = vunpack.c.l.b16 %v857
        %v999 = vunpack.c.l.b16 %v858
        %v1000 = vunpack.c.l.b16 %v859
        %v1001 = vunpack.c.l.b16 %v860
        %v1002 = vunpack.c.l.b16 %v861
        %v1003 = vunpack.c.l.b16 %v862
        %v1004 = vunpack.c.l.b16 %v863
        %v1005 = vunpack.c.l.b16 %v864
        %v1006 = vunpack.c.l.b16 %v865
        %v1007 = vunpack.c.l.b16 %v866
        %v1008 = vpack.c.b16 %v993, %v992
        %v1009 = vpack.c.b16 %v995, %v994
        %v1010 = vpack.c.b16 %v997, %v996
        %v1011 = vpack.c.b16 %v999, %v998
        %v1012 = vpack.c.b16 %v1001, %v1000
        %v1013 = vpack.c.b16 %v1003, %v1002
        %v1014 = vpack.c.b16 %v1005, %v1004
        %v1015 = vpack.c.b16 %v1007, %v1006
        %1024 = vmatprep.subr.bf16.mxu0 0
        %1025 = vmatpush1.bf16.msra.mxu0 %v1008
        %1026 = vmatprep.subr.bf16.mxu0 0
        %1027 = vmatpush1.bf16.msra.mxu0 %v1009
        %1028 = vmatprep.subr.bf16.mxu0 0
        %1029 = vmatpush1.bf16.msra.mxu0 %v1010
        %1030 = vmatprep.subr.bf16.mxu0 0
        %1031 = vmatpush1.bf16.msra.mxu0 %v1011
        %1032 = vmatprep.subr.bf16.mxu0 0
        %1033 = vmatpush1.bf16.msra.mxu0 %v1012
        %1034 = vmatprep.subr.bf16.mxu0 0
        %1035 = vmatpush1.bf16.msra.mxu0 %v1013
        %1036 = vmatprep.subr.bf16.mxu0 0
        %1037 = vmatpush1.bf16.msra.mxu0 %v1014
        %1038 = vmatprep.subr.bf16.mxu0 0
        %1039 = vmatpush1.bf16.msra.mxu0 %v1015
        %1040 = vmatprep.subr.bf16.mxu0 0
        %1041 = vmatpush1.bf16.msra.mxu0 0
        %1042 = vmatprep.subr.bf16.mxu0 0
        %1043 = vmatpush1.bf16.msra.mxu0 0
        %1044 = vmatprep.subr.bf16.mxu0 0
        %1045 = vmatpush1.bf16.msra.mxu0 0
        %1046 = vmatprep.subr.bf16.mxu0 0
        %1047 = vmatpush1.bf16.msra.mxu0 0
        %1048 = vmatprep.subr.bf16.mxu0 0
        %1049 = vmatpush1.bf16.msra.mxu0 0
        %1050 = vmatprep.subr.bf16.mxu0 0
        %1051 = vmatpush1.bf16.msra.mxu0 0
        %1052 = vmatprep.subr.bf16.mxu0 0
        %1053 = vmatpush1.bf16.msra.mxu0 0
        %1054 = vmatprep.subr.bf16.mxu0 0
        %1055 = vmatpush1.bf16.msra.mxu0 0
        %1056 = vmatprep.mubr.bf16.mxu0 0
        %1057 = vmatmul.mubr.bf16.gmra.mrb[0].mxu0 %v850
        %v1058 = vpop.f32.mrb[0].mxu0
        %v1059 = vadd.f32 %v970, %v1058
        %v1060 = vpop.f32.mrb[0].mxu0
        %v1061 = vpop.f32.mrb[0].mxu0
        %v1062 = vadd.f32 %v973, %v1061
        %v1063 = vpop.f32.mrb[0].mxu0
        %1064 = vdwg.mxu0
        %v1065 = vld [vmem:[#allocation2 + $0x9] sm:$0xff]
        %v1066 = vld [vmem:[#allocation2 + $0x11] sm:$0xff]
        %v1067 = vpack.c.bf16 %v1066, %v1065
        %s1068 = scalar_lea.vmem %s2, 128
        %v1069 = vld [vmem:[%s1068] sm:$0xf]
        %v1070 = vld [vmem:[%s1068 + $0x4] sm:$0xf]
        %v1071 = vld [vmem:[%s1068 + $0x8] sm:$0xf]
        %v1072 = vld [vmem:[%s1068 + $0xc] sm:$0xf]
        %v1073 = vld [vmem:[%s1068 + $0x10] sm:$0xf]
        %v1074 = vld [vmem:[%s1068 + $0x14] sm:$0xf]
        %v1075 = vld [vmem:[%s1068 + $0x18] sm:$0xf]
        %v1076 = vld [vmem:[%s1068 + $0x1c] sm:$0xf]
        %v1077 = vld [vmem:[%s1068 + $0x20] sm:$0xf]
        %v1078 = vld [vmem:[%s1068 + $0x24] sm:$0xf]
        %v1079 = vld [vmem:[%s1068 + $0x28] sm:$0xf]
        %v1080 = vld [vmem:[%s1068 + $0x2c] sm:$0xf]
        %v1081 = vld [vmem:[%s1068 + $0x30] sm:$0xf]
        %v1082 = vld [vmem:[%s1068 + $0x34] sm:$0xf]
        %v1083 = vld [vmem:[%s1068 + $0x38] sm:$0xf]
        %v1084 = vld [vmem:[%s1068 + $0x3c] sm:$0xf]
        %v1101 = vunpack.c.l.b16 %v1069
        %v1102 = vunpack.c.l.b16 %v1070
        %v1103 = vunpack.c.l.b16 %v1071
        %v1104 = vunpack.c.l.b16 %v1072
        %v1105 = vunpack.c.l.b16 %v1073
        %v1106 = vunpack.c.l.b16 %v1074
        %v1107 = vunpack.c.l.b16 %v1075
        %v1108 = vunpack.c.l.b16 %v1076
        %v1109 = vunpack.c.l.b16 %v1077
        %v1110 = vunpack.c.l.b16 %v1078
        %v1111 = vunpack.c.l.b16 %v1079
        %v1112 = vunpack.c.l.b16 %v1080
        %v1113 = vunpack.c.l.b16 %v1081
        %v1114 = vunpack.c.l.b16 %v1082
        %v1115 = vunpack.c.l.b16 %v1083
        %v1116 = vunpack.c.l.b16 %v1084
        %v1117 = vpack.c.b16 %v1102, %v1101
        %v1118 = vpack.c.b16 %v1104, %v1103
        %v1119 = vpack.c.b16 %v1106, %v1105
        %v1120 = vpack.c.b16 %v1108, %v1107
        %v1121 = vpack.c.b16 %v1110, %v1109
        %v1122 = vpack.c.b16 %v1112, %v1111
        %v1123 = vpack.c.b16 %v1114, %v1113
        %v1124 = vpack.c.b16 %v1116, %v1115
        %1133 = vmatprep.subr.bf16.mxu0 0
        %1134 = vmatpush1.bf16.msra.mxu0 %v1117
        %1135 = vmatprep.subr.bf16.mxu0 0
        %1136 = vmatpush1.bf16.msra.mxu0 %v1118
        %1137 = vmatprep.subr.bf16.mxu0 0
        %1138 = vmatpush1.bf16.msra.mxu0 %v1119
        %1139 = vmatprep.subr.bf16.mxu0 0
        %1140 = vmatpush1.bf16.msra.mxu0 %v1120
        %1141 = vmatprep.subr.bf16.mxu0 0
        %1142 = vmatpush1.bf16.msra.mxu0 %v1121
        %1143 = vmatprep.subr.bf16.mxu0 0
        %1144 = vmatpush1.bf16.msra.mxu0 %v1122
        %1145 = vmatprep.subr.bf16.mxu0 0
        %1146 = vmatpush1.bf16.msra.mxu0 %v1123
        %1147 = vmatprep.subr.bf16.mxu0 0
        %1148 = vmatpush1.bf16.msra.mxu0 %v1124
        %1149 = vmatprep.subr.bf16.mxu0 0
        %1150 = vmatpush1.bf16.msra.mxu0 0
        %1151 = vmatprep.subr.bf16.mxu0 0
        %1152 = vmatpush1.bf16.msra.mxu0 0
        %1153 = vmatprep.subr.bf16.mxu0 0
        %1154 = vmatpush1.bf16.msra.mxu0 0
        %1155 = vmatprep.subr.bf16.mxu0 0
        %1156 = vmatpush1.bf16.msra.mxu0 0
        %1157 = vmatprep.subr.bf16.mxu0 0
        %1158 = vmatpush1.bf16.msra.mxu0 0
        %1159 = vmatprep.subr.bf16.mxu0 0
        %1160 = vmatpush1.bf16.msra.mxu0 0
        %1161 = vmatprep.subr.bf16.mxu0 0
        %1162 = vmatpush1.bf16.msra.mxu0 0
        %1163 = vmatprep.subr.bf16.mxu0 0
        %1164 = vmatpush1.bf16.msra.mxu0 0
        %1165 = vmatprep.mubr.bf16.mxu0 0
        %1166 = vmatmul.mubr.bf16.gmra.mrb[0].mxu0 %v1067
        %v1167 = vpop.f32.mrb[0].mxu0
        %v1168 = vadd.f32 0.0, %v1167
        %v1169 = vpop.f32.mrb[0].mxu0
        %v1170 = vpop.f32.mrb[0].mxu0
        %v1171 = vadd.f32 0.0, %v1170
        %v1172 = vpop.f32.mrb[0].mxu0
        %1173 = vdwg.mxu0
        %v1174 = vadd.f32 %v1059, %v1168
        %v1175 = vadd.f32 %v1062, %v1171
        %v1176 = vlaneseq
        %v1177 = vshrl.u32 %v1176, 7
        %v1178 = vsub.s32 0, %v1177
        %v1179 = vrot.slane %v844, %v1178
        %v1180 = vmul.f32 %v1174, %v1179
        %v1181 = vmul.f32 %v1175, %v1179
        %v1182 = vlaneseq
        %v1183 = vshrl.u32 %v1182, 7
        %v1184 = vsub.s32 0, %v1183
        %v1185 = vrot.slane %v845, %v1184
        %v1186 = vadd.f32 %v1180, %v1185
        %v1187 = vadd.f32 %v1181, %v1185
        %v1188 = vtanh.pop %v1186
        %v1189 = vtanh.pop %v1187
        %v1190 = vld [vmem:[%s9 + $0x4] sm:$0x1]
        %v1191 = vld [vmem:[%s9 + $0x5] sm:$0x1]
        %1192 = vst [vmem:[#allocation2 + $0x8] sm:$0xff] %v1188
        %1193 = vst [vmem:[#allocation2 + $0x10] sm:$0xff] %v1189
        %v1194 = vld [vmem:[#allocation2 + $0x7] sm:$0xff]
        %v1195 = vld [vmem:[#allocation2 + $0xf] sm:$0xff]
        %v1196 = vpack.c.bf16 %v1195, %v1194
        %v1197 = vld [vmem:[%s3] sm:$0xf]
        %v1198 = vld [vmem:[%s3 + $0x4] sm:$0xf]
        %v1199 = vld [vmem:[%s3 + $0x8] sm:$0xf]
        %v1200 = vld [vmem:[%s3 + $0xc] sm:$0xf]
        %v1201 = vld [vmem:[%s3 + $0x10] sm:$0xf]
        %v1202 = vld [vmem:[%s3 + $0x14] sm:$0xf]
        %v1203 = vld [vmem:[%s3 + $0x18] sm:$0xf]
        %v1204 = vld [vmem:[%s3 + $0x1c] sm:$0xf]
        %v1205 = vld [vmem:[%s3 + $0x20] sm:$0xf]
        %v1206 = vld [vmem:[%s3 + $0x24] sm:$0xf]
        %v1207 = vld [vmem:[%s3 + $0x28] sm:$0xf]
        %v1208 = vld [vmem:[%s3 + $0x2c] sm:$0xf]
        %v1209 = vld [vmem:[%s3 + $0x30] sm:$0xf]
        %v1210 = vld [vmem:[%s3 + $0x34] sm:$0xf]
        %v1211 = vld [vmem:[%s3 + $0x38] sm:$0xf]
        %v1212 = vld [vmem:[%s3 + $0x3c] sm:$0xf]
        %v1213 = vld [vmem:[#allocation2 + $0x8] sm:$0xff]
        %v1214 = vld [vmem:[#allocation2 + $0x10] sm:$0xff]
        %v1215 = vpack.c.bf16 %v1214, %v1213
        %s1216 = scalar_lea.vmem %s3, 64
        %v1217 = vld [vmem:[%s1216] sm:$0xf]
        %v1218 = vld [vmem:[%s1216 + $0x4] sm:$0xf]
        %v1219 = vld [vmem:[%s1216 + $0x8] sm:$0xf]
        %v1220 = vld [vmem:[%s1216 + $0xc] sm:$0xf]
        %v1221 = vld [vmem:[%s1216 + $0x10] sm:$0xf]
        %v1222 = vld [vmem:[%s1216 + $0x14] sm:$0xf]
        %v1223 = vld [vmem:[%s1216 + $0x18] sm:$0xf]
        %v1224 = vld [vmem:[%s1216 + $0x1c] sm:$0xf]
        %v1225 = vld [vmem:[%s1216 + $0x20] sm:$0xf]
        %v1226 = vld [vmem:[%s1216 + $0x24] sm:$0xf]
        %v1227 = vld [vmem:[%s1216 + $0x28] sm:$0xf]
        %v1228 = vld [vmem:[%s1216 + $0x2c] sm:$0xf]
        %v1229 = vld [vmem:[%s1216 + $0x30] sm:$0xf]
        %v1230 = vld [vmem:[%s1216 + $0x34] sm:$0xf]
        %v1231 = vld [vmem:[%s1216 + $0x38] sm:$0xf]
        %v1232 = vld [vmem:[%s1216 + $0x3c] sm:$0xf]
        %v1249 = vunpack.c.l.b16 %v1217
        %v1250 = vunpack.c.l.b16 %v1218
        %v1251 = vunpack.c.l.b16 %v1219
        %v1252 = vunpack.c.l.b16 %v1220
        %v1253 = vunpack.c.l.b16 %v1221
        %v1254 = vunpack.c.l.b16 %v1222
        %v1255 = vunpack.c.l.b16 %v1223
        %v1256 = vunpack.c.l.b16 %v1224
        %v1257 = vunpack.c.l.b16 %v1225
        %v1258 = vunpack.c.l.b16 %v1226
        %v1259 = vunpack.c.l.b16 %v1227
        %v1260 = vunpack.c.l.b16 %v1228
        %v1261 = vunpack.c.l.b16 %v1229
        %v1262 = vunpack.c.l.b16 %v1230
        %v1263 = vunpack.c.l.b16 %v1231
        %v1264 = vunpack.c.l.b16 %v1232
        %v1265 = vpack.c.b16 %v1250, %v1249
        %v1266 = vpack.c.b16 %v1252, %v1251
        %v1267 = vpack.c.b16 %v1254, %v1253
        %v1268 = vpack.c.b16 %v1256, %v1255
        %v1269 = vpack.c.b16 %v1258, %v1257
        %v1270 = vpack.c.b16 %v1260, %v1259
        %v1271 = vpack.c.b16 %v1262, %v1261
        %v1272 = vpack.c.b16 %v1264, %v1263
        %1281 = vmatprep.subr.bf16.mxu0 0
        %1282 = vmatpush1.bf16.msra.mxu0 %v1265
        %1283 = vmatprep.subr.bf16.mxu0 0
        %1284 = vmatpush1.bf16.msra.mxu0 %v1266
        %1285 = vmatprep.subr.bf16.mxu0 0
        %1286 = vmatpush1.bf16.msra.mxu0 %v1267
        %1287 = vmatprep.subr.bf16.mxu0 0
        %1288 = vmatpush1.bf16.msra.mxu0 %v1268
        %1289 = vmatprep.subr.bf16.mxu0 0
        %1290 = vmatpush1.bf16.msra.mxu0 %v1269
        %1291 = vmatprep.subr.bf16.mxu0 0
        %1292 = vmatpush1.bf16.msra.mxu0 %v1270
        %1293 = vmatprep.subr.bf16.mxu0 0
        %1294 = vmatpush1.bf16.msra.mxu0 %v1271
        %1295 = vmatprep.subr.bf16.mxu0 0
        %1296 = vmatpush1.bf16.msra.mxu0 %v1272
        %1297 = vmatprep.subr.bf16.mxu0 0
        %1298 = vmatpush1.bf16.msra.mxu0 0
        %1299 = vmatprep.subr.bf16.mxu0 0
        %1300 = vmatpush1.bf16.msra.mxu0 0
        %1301 = vmatprep.subr.bf16.mxu0 0
        %1302 = vmatpush1.bf16.msra.mxu0 0
        %1303 = vmatprep.subr.bf16.mxu0 0
        %1304 = vmatpush1.bf16.msra.mxu0 0
        %1305 = vmatprep.subr.bf16.mxu0 0
        %1306 = vmatpush1.bf16.msra.mxu0 0
        %1307 = vmatprep.subr.bf16.mxu0 0
        %1308 = vmatpush1.bf16.msra.mxu0 0
        %1309 = vmatprep.subr.bf16.mxu0 0
        %1310 = vmatpush1.bf16.msra.mxu0 0
        %1311 = vmatprep.subr.bf16.mxu0 0
        %1312 = vmatpush1.bf16.msra.mxu0 0
        %1313 = vmatprep.mubr.bf16.mxu0 0
        %1314 = vmatmul.mubr.bf16.gmra.mrb[0].mxu0 %v1215
        %v1315 = vpop.f32.mrb[0].mxu0
        %v1316 = vadd.f32 0.0, %v1315
        %v1317 = vpop.f32.mrb[0].mxu0
        %v1318 = vpop.f32.mrb[0].mxu0
        %v1319 = vadd.f32 0.0, %v1318
        %v1320 = vpop.f32.mrb[0].mxu0
        %1321 = vdwg.mxu0
        %v1338 = vunpack.c.l.b16 %v1197
        %v1339 = vunpack.c.l.b16 %v1198
        %v1340 = vunpack.c.l.b16 %v1199
        %v1341 = vunpack.c.l.b16 %v1200
        %v1342 = vunpack.c.l.b16 %v1201
        %v1343 = vunpack.c.l.b16 %v1202
        %v1344 = vunpack.c.l.b16 %v1203
        %v1345 = vunpack.c.l.b16 %v1204
        %v1346 = vunpack.c.l.b16 %v1205
        %v1347 = vunpack.c.l.b16 %v1206
        %v1348 = vunpack.c.l.b16 %v1207
        %v1349 = vunpack.c.l.b16 %v1208
        %v1350 = vunpack.c.l.b16 %v1209
        %v1351 = vunpack.c.l.b16 %v1210
        %v1352 = vunpack.c.l.b16 %v1211
        %v1353 = vunpack.c.l.b16 %v1212
        %v1354 = vpack.c.b16 %v1339, %v1338
        %v1355 = vpack.c.b16 %v1341, %v1340
        %v1356 = vpack.c.b16 %v1343, %v1342
        %v1357 = vpack.c.b16 %v1345, %v1344
        %v1358 = vpack.c.b16 %v1347, %v1346
        %v1359 = vpack.c.b16 %v1349, %v1348
        %v1360 = vpack.c.b16 %v1351, %v1350
        %v1361 = vpack.c.b16 %v1353, %v1352
        %1370 = vmatprep.subr.bf16.mxu0 0
        %1371 = vmatpush1.bf16.msra.mxu0 %v1354
        %1372 = vmatprep.subr.bf16.mxu0 0
        %1373 = vmatpush1.bf16.msra.mxu0 %v1355
        %1374 = vmatprep.subr.bf16.mxu0 0
        %1375 = vmatpush1.bf16.msra.mxu0 %v1356
        %1376 = vmatprep.subr.bf16.mxu0 0
        %1377 = vmatpush1.bf16.msra.mxu0 %v1357
        %1378 = vmatprep.subr.bf16.mxu0 0
        %1379 = vmatpush1.bf16.msra.mxu0 %v1358
        %1380 = vmatprep.subr.bf16.mxu0 0
        %1381 = vmatpush1.bf16.msra.mxu0 %v1359
        %1382 = vmatprep.subr.bf16.mxu0 0
        %1383 = vmatpush1.bf16.msra.mxu0 %v1360
        %1384 = vmatprep.subr.bf16.mxu0 0
        %1385 = vmatpush1.bf16.msra.mxu0 %v1361
        %1386 = vmatprep.subr.bf16.mxu0 0
        %1387 = vmatpush1.bf16.msra.mxu0 0
        %1388 = vmatprep.subr.bf16.mxu0 0
        %1389 = vmatpush1.bf16.msra.mxu0 0
        %1390 = vmatprep.subr.bf16.mxu0 0
        %1391 = vmatpush1.bf16.msra.mxu0 0
        %1392 = vmatprep.subr.bf16.mxu0 0
        %1393 = vmatpush1.bf16.msra.mxu0 0
        %1394 = vmatprep.subr.bf16.mxu0 0
        %1395 = vmatpush1.bf16.msra.mxu0 0
        %1396 = vmatprep.subr.bf16.mxu0 0
        %1397 = vmatpush1.bf16.msra.mxu0 0
        %1398 = vmatprep.subr.bf16.mxu0 0
        %1399 = vmatpush1.bf16.msra.mxu0 0
        %1400 = vmatprep.subr.bf16.mxu0 0
        %1401 = vmatpush1.bf16.msra.mxu0 0
        %1402 = vmatprep.mubr.bf16.mxu0 0
        %1403 = vmatmul.mubr.bf16.gmra.mrb[0].mxu0 %v1196
        %v1404 = vpop.f32.mrb[0].mxu0
        %v1405 = vadd.f32 %v1316, %v1404
        %v1406 = vpop.f32.mrb[0].mxu0
        %v1407 = vpop.f32.mrb[0].mxu0
        %v1408 = vadd.f32 %v1319, %v1407
        %v1409 = vpop.f32.mrb[0].mxu0
        %1410 = vdwg.mxu0
        %v1411 = vld [vmem:[#allocation2 + $0x9] sm:$0xff]
        %v1412 = vld [vmem:[#allocation2 + $0x11] sm:$0xff]
        %v1413 = vpack.c.bf16 %v1412, %v1411
        %s1414 = scalar_lea.vmem %s3, 128
        %v1415 = vld [vmem:[%s1414] sm:$0xf]
        %v1416 = vld [vmem:[%s1414 + $0x4] sm:$0xf]
        %v1417 = vld [vmem:[%s1414 + $0x8] sm:$0xf]
        %v1418 = vld [vmem:[%s1414 + $0xc] sm:$0xf]
        %v1419 = vld [vmem:[%s1414 + $0x10] sm:$0xf]
        %v1420 = vld [vmem:[%s1414 + $0x14] sm:$0xf]
        %v1421 = vld [vmem:[%s1414 + $0x18] sm:$0xf]
        %v1422 = vld [vmem:[%s1414 + $0x1c] sm:$0xf]
        %v1423 = vld [vmem:[%s1414 + $0x20] sm:$0xf]
        %v1424 = vld [vmem:[%s1414 + $0x24] sm:$0xf]
        %v1425 = vld [vmem:[%s1414 + $0x28] sm:$0xf]
        %v1426 = vld [vmem:[%s1414 + $0x2c] sm:$0xf]
        %v1427 = vld [vmem:[%s1414 + $0x30] sm:$0xf]
        %v1428 = vld [vmem:[%s1414 + $0x34] sm:$0xf]
        %v1429 = vld [vmem:[%s1414 + $0x38] sm:$0xf]
        %v1430 = vld [vmem:[%s1414 + $0x3c] sm:$0xf]
        %v1447 = vunpack.c.l.b16 %v1415
        %v1448 = vunpack.c.l.b16 %v1416
        %v1449 = vunpack.c.l.b16 %v1417
        %v1450 = vunpack.c.l.b16 %v1418
        %v1451 = vunpack.c.l.b16 %v1419
        %v1452 = vunpack.c.l.b16 %v1420
        %v1453 = vunpack.c.l.b16 %v1421
        %v1454 = vunpack.c.l.b16 %v1422
        %v1455 = vunpack.c.l.b16 %v1423
        %v1456 = vunpack.c.l.b16 %v1424
        %v1457 = vunpack.c.l.b16 %v1425
        %v1458 = vunpack.c.l.b16 %v1426
        %v1459 = vunpack.c.l.b16 %v1427
        %v1460 = vunpack.c.l.b16 %v1428
        %v1461 = vunpack.c.l.b16 %v1429
        %v1462 = vunpack.c.l.b16 %v1430
        %v1463 = vpack.c.b16 %v1448, %v1447
        %v1464 = vpack.c.b16 %v1450, %v1449
        %v1465 = vpack.c.b16 %v1452, %v1451
        %v1466 = vpack.c.b16 %v1454, %v1453
        %v1467 = vpack.c.b16 %v1456, %v1455
        %v1468 = vpack.c.b16 %v1458, %v1457
        %v1469 = vpack.c.b16 %v1460, %v1459
        %v1470 = vpack.c.b16 %v1462, %v1461
        %1479 = vmatprep.subr.bf16.mxu0 0
        %1480 = vmatpush1.bf16.msra.mxu0 %v1463
        %1481 = vmatprep.subr.bf16.mxu0 0
        %1482 = vmatpush1.bf16.msra.mxu0 %v1464
        %1483 = vmatprep.subr.bf16.mxu0 0
        %1484 = vmatpush1.bf16.msra.mxu0 %v1465
        %1485 = vmatprep.subr.bf16.mxu0 0
        %1486 = vmatpush1.bf16.msra.mxu0 %v1466
        %1487 = vmatprep.subr.bf16.mxu0 0
        %1488 = vmatpush1.bf16.msra.mxu0 %v1467
        %1489 = vmatprep.subr.bf16.mxu0 0
        %1490 = vmatpush1.bf16.msra.mxu0 %v1468
        %1491 = vmatprep.subr.bf16.mxu0 0
        %1492 = vmatpush1.bf16.msra.mxu0 %v1469
        %1493 = vmatprep.subr.bf16.mxu0 0
        %1494 = vmatpush1.bf16.msra.mxu0 %v1470
        %1495 = vmatprep.subr.bf16.mxu0 0
        %1496 = vmatpush1.bf16.msra.mxu0 0
        %1497 = vmatprep.subr.bf16.mxu0 0
        %1498 = vmatpush1.bf16.msra.mxu0 0
        %1499 = vmatprep.subr.bf16.mxu0 0
        %1500 = vmatpush1.bf16.msra.mxu0 0
        %1501 = vmatprep.subr.bf16.mxu0 0
        %1502 = vmatpush1.bf16.msra.mxu0 0
        %1503 = vmatprep.subr.bf16.mxu0 0
        %1504 = vmatpush1.bf16.msra.mxu0 0
        %1505 = vmatprep.subr.bf16.mxu0 0
        %1506 = vmatpush1.bf16.msra.mxu0 0
        %1507 = vmatprep.subr.bf16.mxu0 0
        %1508 = vmatpush1.bf16.msra.mxu0 0
        %1509 = vmatprep.subr.bf16.mxu0 0
        %1510 = vmatpush1.bf16.msra.mxu0 0
        %1511 = vmatprep.mubr.bf16.mxu0 0
        %1512 = vmatmul.mubr.bf16.gmra.mrb[0].mxu0 %v1413
        %v1513 = vpop.f32.mrb[0].mxu0
        %v1514 = vadd.f32 0.0, %v1513
        %v1515 = vpop.f32.mrb[0].mxu0
        %v1516 = vpop.f32.mrb[0].mxu0
        %v1517 = vadd.f32 0.0, %v1516
        %v1518 = vpop.f32.mrb[0].mxu0
        %1519 = vdwg.mxu0
        %v1520 = vadd.f32 %v1405, %v1514
        %v1521 = vadd.f32 %v1408, %v1517
        %v1522 = vlaneseq
        %v1523 = vshrl.u32 %v1522, 7
        %v1524 = vsub.s32 0, %v1523
        %v1525 = vrot.slane %v1190, %v1524
        %v1526 = vmul.f32 %v1520, %v1525
        %v1527 = vmul.f32 %v1521, %v1525
        %v1528 = vlaneseq
        %v1529 = vshrl.u32 %v1528, 7
        %v1530 = vsub.s32 0, %v1529
        %v1531 = vrot.slane %v1191, %v1530
        %v1532 = vadd.f32 %v1526, %v1531
        %v1533 = vadd.f32 %v1527, %v1531
        %v1534 = vld [vmem:[%s9 + $0x6] sm:$0x1]
        %v1535 = vld [vmem:[%s9 + $0x7] sm:$0x1]
        %v1536 = vld [vmem:[%s4] sm:$0xf]
        %v1537 = vld [vmem:[%s4 + $0x4] sm:$0xf]
        %v1538 = vld [vmem:[%s4 + $0x8] sm:$0xf]
        %v1539 = vld [vmem:[%s4 + $0xc] sm:$0xf]
        %v1540 = vld [vmem:[%s4 + $0x10] sm:$0xf]
        %v1541 = vld [vmem:[%s4 + $0x14] sm:$0xf]
        %v1542 = vld [vmem:[%s4 + $0x18] sm:$0xf]
        %v1543 = vld [vmem:[%s4 + $0x1c] sm:$0xf]
        %v1544 = vld [vmem:[%s4 + $0x20] sm:$0xf]
        %v1545 = vld [vmem:[%s4 + $0x24] sm:$0xf]
        %v1546 = vld [vmem:[%s4 + $0x28] sm:$0xf]
        %v1547 = vld [vmem:[%s4 + $0x2c] sm:$0xf]
        %v1548 = vld [vmem:[%s4 + $0x30] sm:$0xf]
        %v1549 = vld [vmem:[%s4 + $0x34] sm:$0xf]
        %v1550 = vld [vmem:[%s4 + $0x38] sm:$0xf]
        %v1551 = vld [vmem:[%s4 + $0x3c] sm:$0xf]
        %v1568 = vunpack.c.l.b16 %v1536
        %v1569 = vunpack.c.l.b16 %v1537
        %v1570 = vunpack.c.l.b16 %v1538
        %v1571 = vunpack.c.l.b16 %v1539
        %v1572 = vunpack.c.l.b16 %v1540
        %v1573 = vunpack.c.l.b16 %v1541
        %v1574 = vunpack.c.l.b16 %v1542
        %v1575 = vunpack.c.l.b16 %v1543
        %v1576 = vunpack.c.l.b16 %v1544
        %v1577 = vunpack.c.l.b16 %v1545
        %v1578 = vunpack.c.l.b16 %v1546
        %v1579 = vunpack.c.l.b16 %v1547
        %v1580 = vunpack.c.l.b16 %v1548
        %v1581 = vunpack.c.l.b16 %v1549
        %v1582 = vunpack.c.l.b16 %v1550
        %v1583 = vunpack.c.l.b16 %v1551
        %v1584 = vpack.c.b16 %v1569, %v1568
        %v1585 = vpack.c.b16 %v1571, %v1570
        %v1586 = vpack.c.b16 %v1573, %v1572
        %v1587 = vpack.c.b16 %v1575, %v1574
        %v1588 = vpack.c.b16 %v1577, %v1576
        %v1589 = vpack.c.b16 %v1579, %v1578
        %v1590 = vpack.c.b16 %v1581, %v1580
        %v1591 = vpack.c.b16 %v1583, %v1582
        %1600 = vmatprep.subr.bf16.mxu0 0
        %1601 = vmatpush1.bf16.msra.mxu0 %v1584
        %1602 = vmatprep.subr.bf16.mxu0 0
        %1603 = vmatpush1.bf16.msra.mxu0 %v1585
        %1604 = vmatprep.subr.bf16.mxu0 0
        %1605 = vmatpush1.bf16.msra.mxu0 %v1586
        %1606 = vmatprep.subr.bf16.mxu0 0
        %1607 = vmatpush1.bf16.msra.mxu0 %v1587
        %1608 = vmatprep.subr.bf16.mxu0 0
        %1609 = vmatpush1.bf16.msra.mxu0 %v1588
        %1610 = vmatprep.subr.bf16.mxu0 0
        %1611 = vmatpush1.bf16.msra.mxu0 %v1589
        %1612 = vmatprep.subr.bf16.mxu0 0
        %1613 = vmatpush1.bf16.msra.mxu0 %v1590
        %1614 = vmatprep.subr.bf16.mxu0 0
        %1615 = vmatpush1.bf16.msra.mxu0 %v1591
        %1616 = vmatprep.subr.bf16.mxu0 0
        %1617 = vmatpush1.bf16.msra.mxu0 0
        %1618 = vmatprep.subr.bf16.mxu0 0
        %1619 = vmatpush1.bf16.msra.mxu0 0
        %1620 = vmatprep.subr.bf16.mxu0 0
        %1621 = vmatpush1.bf16.msra.mxu0 0
        %1622 = vmatprep.subr.bf16.mxu0 0
        %1623 = vmatpush1.bf16.msra.mxu0 0
        %1624 = vmatprep.subr.bf16.mxu0 0
        %1625 = vmatpush1.bf16.msra.mxu0 0
        %1626 = vmatprep.subr.bf16.mxu0 0
        %1627 = vmatpush1.bf16.msra.mxu0 0
        %1628 = vmatprep.subr.bf16.mxu0 0
        %1629 = vmatpush1.bf16.msra.mxu0 0
        %1630 = vmatprep.subr.bf16.mxu0 0
        %1631 = vmatpush1.bf16.msra.mxu0 0
        %1632 = vmatprep.mubr.bf16.mxu0 0
        %1633 = vmatmul.mubr.bf16.gmra.mrb[0].mxu0 %v843
        %v1634 = vpop.f32.mrb[0].mxu0
        %v1635 = vadd.f32 0.0, %v1634
        %v1636 = vpop.f32.mrb[0].mxu0
        %v1637 = vpop.f32.mrb[0].mxu0
        %v1638 = vadd.f32 0.0, %v1637
        %v1639 = vpop.f32.mrb[0].mxu0
        %1640 = vdwg.mxu0
        %v1641 = vlaneseq
        %v1642 = vshrl.u32 %v1641, 7
        %v1643 = vsub.s32 0, %v1642
        %v1644 = vrot.slane %v1534, %v1643
        %v1645 = vmul.f32 %v1635, %v1644
        %v1646 = vmul.f32 %v1638, %v1644
        %v1647 = vlaneseq
        %v1648 = vshrl.u32 %v1647, 7
        %v1649 = vsub.s32 0, %v1648
        %v1650 = vrot.slane %v1535, %v1649
        %v1651 = vadd.f32 %v1645, %v1650
        %v1652 = vadd.f32 %v1646, %v1650
        %v1653 = vadd.f32 %v1532, %v1651
        %v1654 = vadd.f32 %v1533, %v1652
        %v1655 = vtanh.pop %v1653
        %v1656 = vtanh.pop %v1654
        %v1657 = vpack.c.bf16 %v1656, %v1655
        %v1658 = vld [vmem:[%s10] sm:$0xf]
        %v1659 = vld [vmem:[%s10 + $0x4] sm:$0xf]
        %v1660 = vld [vmem:[%s10 + $0x8] sm:$0xf]
        %v1661 = vld [vmem:[%s10 + $0xc] sm:$0xf]
        %v1662 = vld [vmem:[%s10 + $0x10] sm:$0xf]
        %v1663 = vld [vmem:[%s10 + $0x14] sm:$0xf]
        %v1664 = vld [vmem:[%s10 + $0x18] sm:$0xf]
        %v1665 = vld [vmem:[%s10 + $0x1c] sm:$0xf]
        %v1666 = vld [vmem:[%s10 + $0x20] sm:$0xf]
        %v1667 = vld [vmem:[%s10 + $0x24] sm:$0xf]
        %v1668 = vld [vmem:[%s10 + $0x28] sm:$0xf]
        %v1669 = vld [vmem:[%s10 + $0x2c] sm:$0xf]
        %v1670 = vld [vmem:[%s10 + $0x30] sm:$0xf]
        %v1671 = vld [vmem:[%s10 + $0x34] sm:$0xf]
        %v1672 = vld [vmem:[%s10 + $0x38] sm:$0xf]
        %v1673 = vld [vmem:[%s10 + $0x3c] sm:$0xf]
        %v1674 = vld [vmem:[%s9 + $0x8] sm:$0x1]
        %v1675 = vld [vmem:[%s9 + $0x9] sm:$0x1]
        %1676 = vst [vmem:[#allocation2 + $0x8] sm:$0xff] %v495
        %1677 = vst [vmem:[#allocation2 + $0x10] sm:$0xff] %v496
        %v1678 = vld [vmem:[#allocation2 + $0x6] sm:$0xff]
        %v1679 = vld [vmem:[#allocation2 + $0xe] sm:$0xff]
        %v1680 = vpack.c.bf16 %v1679, %v1678
        %v1681 = vld [vmem:[%s5] sm:$0xf]
        %v1682 = vld [vmem:[%s5 + $0x4] sm:$0xf]
        %v1683 = vld [vmem:[%s5 + $0x8] sm:$0xf]
        %v1684 = vld [vmem:[%s5 + $0xc] sm:$0xf]
        %v1685 = vld [vmem:[%s5 + $0x10] sm:$0xf]
        %v1686 = vld [vmem:[%s5 + $0x14] sm:$0xf]
        %v1687 = vld [vmem:[%s5 + $0x18] sm:$0xf]
        %v1688 = vld [vmem:[%s5 + $0x1c] sm:$0xf]
        %v1689 = vld [vmem:[%s5 + $0x20] sm:$0xf]
        %v1690 = vld [vmem:[%s5 + $0x24] sm:$0xf]
        %v1691 = vld [vmem:[%s5 + $0x28] sm:$0xf]
        %v1692 = vld [vmem:[%s5 + $0x2c] sm:$0xf]
        %v1693 = vld [vmem:[%s5 + $0x30] sm:$0xf]
        %v1694 = vld [vmem:[%s5 + $0x34] sm:$0xf]
        %v1695 = vld [vmem:[%s5 + $0x38] sm:$0xf]
        %v1696 = vld [vmem:[%s5 + $0x3c] sm:$0xf]
        %v1697 = vld [vmem:[#allocation2 + $0x7] sm:$0xff]
        %v1698 = vld [vmem:[#allocation2 + $0xf] sm:$0xff]
        %v1699 = vpack.c.bf16 %v1698, %v1697
        %s1700 = scalar_lea.vmem %s5, 64
        %v1701 = vld [vmem:[%s1700] sm:$0xf]
        %v1702 = vld [vmem:[%s1700 + $0x4] sm:$0xf]
        %v1703 = vld [vmem:[%s1700 + $0x8] sm:$0xf]
        %v1704 = vld [vmem:[%s1700 + $0xc] sm:$0xf]
        %v1705 = vld [vmem:[%s1700 + $0x10] sm:$0xf]
        %v1706 = vld [vmem:[%s1700 + $0x14] sm:$0xf]
        %v1707 = vld [vmem:[%s1700 + $0x18] sm:$0xf]
        %v1708 = vld [vmem:[%s1700 + $0x1c] sm:$0xf]
        %v1709 = vld [vmem:[%s1700 + $0x20] sm:$0xf]
        %v1710 = vld [vmem:[%s1700 + $0x24] sm:$0xf]
        %v1711 = vld [vmem:[%s1700 + $0x28] sm:$0xf]
        %v1712 = vld [vmem:[%s1700 + $0x2c] sm:$0xf]
        %v1713 = vld [vmem:[%s1700 + $0x30] sm:$0xf]
        %v1714 = vld [vmem:[%s1700 + $0x34] sm:$0xf]
        %v1715 = vld [vmem:[%s1700 + $0x38] sm:$0xf]
        %v1716 = vld [vmem:[%s1700 + $0x3c] sm:$0xf]
        %v1733 = vunpack.c.l.b16 %v1701
        %v1734 = vunpack.c.l.b16 %v1702
        %v1735 = vunpack.c.l.b16 %v1703
        %v1736 = vunpack.c.l.b16 %v1704
        %v1737 = vunpack.c.l.b16 %v1705
        %v1738 = vunpack.c.l.b16 %v1706
        %v1739 = vunpack.c.l.b16 %v1707
        %v1740 = vunpack.c.l.b16 %v1708
        %v1741 = vunpack.c.l.b16 %v1709
        %v1742 = vunpack.c.l.b16 %v1710
        %v1743 = vunpack.c.l.b16 %v1711
        %v1744 = vunpack.c.l.b16 %v1712
        %v1745 = vunpack.c.l.b16 %v1713
        %v1746 = vunpack.c.l.b16 %v1714
        %v1747 = vunpack.c.l.b16 %v1715
        %v1748 = vunpack.c.l.b16 %v1716
        %v1749 = vpack.c.b16 %v1734, %v1733
        %v1750 = vpack.c.b16 %v1736, %v1735
        %v1751 = vpack.c.b16 %v1738, %v1737
        %v1752 = vpack.c.b16 %v1740, %v1739
        %v1753 = vpack.c.b16 %v1742, %v1741
        %v1754 = vpack.c.b16 %v1744, %v1743
        %v1755 = vpack.c.b16 %v1746, %v1745
        %v1756 = vpack.c.b16 %v1748, %v1747
        %1765 = vmatprep.subr.bf16.mxu0 0
        %1766 = vmatpush1.bf16.msra.mxu0 %v1749
        %1767 = vmatprep.subr.bf16.mxu0 0
        %1768 = vmatpush1.bf16.msra.mxu0 %v1750
        %1769 = vmatprep.subr.bf16.mxu0 0
        %1770 = vmatpush1.bf16.msra.mxu0 %v1751
        %1771 = vmatprep.subr.bf16.mxu0 0
        %1772 = vmatpush1.bf16.msra.mxu0 %v1752
        %1773 = vmatprep.subr.bf16.mxu0 0
        %1774 = vmatpush1.bf16.msra.mxu0 %v1753
        %1775 = vmatprep.subr.bf16.mxu0 0
        %1776 = vmatpush1.bf16.msra.mxu0 %v1754
        %1777 = vmatprep.subr.bf16.mxu0 0
        %1778 = vmatpush1.bf16.msra.mxu0 %v1755
        %1779 = vmatprep.subr.bf16.mxu0 0
        %1780 = vmatpush1.bf16.msra.mxu0 %v1756
        %1781 = vmatprep.subr.bf16.mxu0 0
        %1782 = vmatpush1.bf16.msra.mxu0 0
        %1783 = vmatprep.subr.bf16.mxu0 0
        %1784 = vmatpush1.bf16.msra.mxu0 0
        %1785 = vmatprep.subr.bf16.mxu0 0
        %1786 = vmatpush1.bf16.msra.mxu0 0
        %1787 = vmatprep.subr.bf16.mxu0 0
        %1788 = vmatpush1.bf16.msra.mxu0 0
        %1789 = vmatprep.subr.bf16.mxu0 0
        %1790 = vmatpush1.bf16.msra.mxu0 0
        %1791 = vmatprep.subr.bf16.mxu0 0
        %1792 = vmatpush1.bf16.msra.mxu0 0
        %1793 = vmatprep.subr.bf16.mxu0 0
        %1794 = vmatpush1.bf16.msra.mxu0 0
        %1795 = vmatprep.subr.bf16.mxu0 0
        %1796 = vmatpush1.bf16.msra.mxu0 0
        %1797 = vmatprep.mubr.bf16.mxu0 0
        %1798 = vmatmul.mubr.bf16.gmra.mrb[0].mxu0 %v1699
        %v1799 = vpop.f32.mrb[0].mxu0
        %v1800 = vadd.f32 0.0, %v1799
        %v1801 = vpop.f32.mrb[0].mxu0
        %v1802 = vpop.f32.mrb[0].mxu0
        %v1803 = vadd.f32 0.0, %v1802
        %v1804 = vpop.f32.mrb[0].mxu0
        %1805 = vdwg.mxu0
        %v1822 = vunpack.c.l.b16 %v1681
        %v1823 = vunpack.c.l.b16 %v1682
        %v1824 = vunpack.c.l.b16 %v1683
        %v1825 = vunpack.c.l.b16 %v1684
        %v1826 = vunpack.c.l.b16 %v1685
        %v1827 = vunpack.c.l.b16 %v1686
        %v1828 = vunpack.c.l.b16 %v1687
        %v1829 = vunpack.c.l.b16 %v1688
        %v1830 = vunpack.c.l.b16 %v1689
        %v1831 = vunpack.c.l.b16 %v1690
        %v1832 = vunpack.c.l.b16 %v1691
        %v1833 = vunpack.c.l.b16 %v1692
        %v1834 = vunpack.c.l.b16 %v1693
        %v1835 = vunpack.c.l.b16 %v1694
        %v1836 = vunpack.c.l.b16 %v1695
        %v1837 = vunpack.c.l.b16 %v1696
        %v1838 = vpack.c.b16 %v1823, %v1822
        %v1839 = vpack.c.b16 %v1825, %v1824
        %v1840 = vpack.c.b16 %v1827, %v1826
        %v1841 = vpack.c.b16 %v1829, %v1828
        %v1842 = vpack.c.b16 %v1831, %v1830
        %v1843 = vpack.c.b16 %v1833, %v1832
        %v1844 = vpack.c.b16 %v1835, %v1834
        %v1845 = vpack.c.b16 %v1837, %v1836
        %1854 = vmatprep.subr.bf16.mxu0 0
        %1855 = vmatpush1.bf16.msra.mxu0 %v1838
        %1856 = vmatprep.subr.bf16.mxu0 0
        %1857 = vmatpush1.bf16.msra.mxu0 %v1839
        %1858 = vmatprep.subr.bf16.mxu0 0
        %1859 = vmatpush1.bf16.msra.mxu0 %v1840
        %1860 = vmatprep.subr.bf16.mxu0 0
        %1861 = vmatpush1.bf16.msra.mxu0 %v1841
        %1862 = vmatprep.subr.bf16.mxu0 0
        %1863 = vmatpush1.bf16.msra.mxu0 %v1842
        %1864 = vmatprep.subr.bf16.mxu0 0
        %1865 = vmatpush1.bf16.msra.mxu0 %v1843
        %1866 = vmatprep.subr.bf16.mxu0 0
        %1867 = vmatpush1.bf16.msra.mxu0 %v1844
        %1868 = vmatprep.subr.bf16.mxu0 0
        %1869 = vmatpush1.bf16.msra.mxu0 %v1845
        %1870 = vmatprep.subr.bf16.mxu0 0
        %1871 = vmatpush1.bf16.msra.mxu0 0
        %1872 = vmatprep.subr.bf16.mxu0 0
        %1873 = vmatpush1.bf16.msra.mxu0 0
        %1874 = vmatprep.subr.bf16.mxu0 0
        %1875 = vmatpush1.bf16.msra.mxu0 0
        %1876 = vmatprep.subr.bf16.mxu0 0
        %1877 = vmatpush1.bf16.msra.mxu0 0
        %1878 = vmatprep.subr.bf16.mxu0 0
        %1879 = vmatpush1.bf16.msra.mxu0 0
        %1880 = vmatprep.subr.bf16.mxu0 0
        %1881 = vmatpush1.bf16.msra.mxu0 0
        %1882 = vmatprep.subr.bf16.mxu0 0
        %1883 = vmatpush1.bf16.msra.mxu0 0
        %1884 = vmatprep.subr.bf16.mxu0 0
        %1885 = vmatpush1.bf16.msra.mxu0 0
        %1886 = vmatprep.mubr.bf16.mxu0 0
        %1887 = vmatmul.mubr.bf16.gmra.mrb[0].mxu0 %v1680
        %v1888 = vpop.f32.mrb[0].mxu0
        %v1889 = vadd.f32 %v1800, %v1888
        %v1890 = vpop.f32.mrb[0].mxu0
        %v1891 = vpop.f32.mrb[0].mxu0
        %v1892 = vadd.f32 %v1803, %v1891
        %v1893 = vpop.f32.mrb[0].mxu0
        %1894 = vdwg.mxu0
        %v1895 = vld [vmem:[#allocation2 + $0x8] sm:$0xff]
        %v1896 = vld [vmem:[#allocation2 + $0x10] sm:$0xff]
        %v1897 = vpack.c.bf16 %v1896, %v1895
        %s1898 = scalar_lea.vmem %s5, 128
        %v1899 = vld [vmem:[%s1898] sm:$0xf]
        %v1900 = vld [vmem:[%s1898 + $0x4] sm:$0xf]
        %v1901 = vld [vmem:[%s1898 + $0x8] sm:$0xf]
        %v1902 = vld [vmem:[%s1898 + $0xc] sm:$0xf]
        %v1903 = vld [vmem:[%s1898 + $0x10] sm:$0xf]
        %v1904 = vld [vmem:[%s1898 + $0x14] sm:$0xf]
        %v1905 = vld [vmem:[%s1898 + $0x18] sm:$0xf]
        %v1906 = vld [vmem:[%s1898 + $0x1c] sm:$0xf]
        %v1907 = vld [vmem:[%s1898 + $0x20] sm:$0xf]
        %v1908 = vld [vmem:[%s1898 + $0x24] sm:$0xf]
        %v1909 = vld [vmem:[%s1898 + $0x28] sm:$0xf]
        %v1910 = vld [vmem:[%s1898 + $0x2c] sm:$0xf]
        %v1911 = vld [vmem:[%s1898 + $0x30] sm:$0xf]
        %v1912 = vld [vmem:[%s1898 + $0x34] sm:$0xf]
        %v1913 = vld [vmem:[%s1898 + $0x38] sm:$0xf]
        %v1914 = vld [vmem:[%s1898 + $0x3c] sm:$0xf]
        %v1931 = vunpack.c.l.b16 %v1899
        %v1932 = vunpack.c.l.b16 %v1900
        %v1933 = vunpack.c.l.b16 %v1901
        %v1934 = vunpack.c.l.b16 %v1902
        %v1935 = vunpack.c.l.b16 %v1903
        %v1936 = vunpack.c.l.b16 %v1904
        %v1937 = vunpack.c.l.b16 %v1905
        %v1938 = vunpack.c.l.b16 %v1906
        %v1939 = vunpack.c.l.b16 %v1907
        %v1940 = vunpack.c.l.b16 %v1908
        %v1941 = vunpack.c.l.b16 %v1909
        %v1942 = vunpack.c.l.b16 %v1910
        %v1943 = vunpack.c.l.b16 %v1911
        %v1944 = vunpack.c.l.b16 %v1912
        %v1945 = vunpack.c.l.b16 %v1913
        %v1946 = vunpack.c.l.b16 %v1914
        %v1947 = vpack.c.b16 %v1932, %v1931
        %v1948 = vpack.c.b16 %v1934, %v1933
        %v1949 = vpack.c.b16 %v1936, %v1935
        %v1950 = vpack.c.b16 %v1938, %v1937
        %v1951 = vpack.c.b16 %v1940, %v1939
        %v1952 = vpack.c.b16 %v1942, %v1941
        %v1953 = vpack.c.b16 %v1944, %v1943
        %v1954 = vpack.c.b16 %v1946, %v1945
        %1963 = vmatprep.subr.bf16.mxu0 0
        %1964 = vmatpush1.bf16.msra.mxu0 %v1947
        %1965 = vmatprep.subr.bf16.mxu0 0
        %1966 = vmatpush1.bf16.msra.mxu0 %v1948
        %1967 = vmatprep.subr.bf16.mxu0 0
        %1968 = vmatpush1.bf16.msra.mxu0 %v1949
        %1969 = vmatprep.subr.bf16.mxu0 0
        %1970 = vmatpush1.bf16.msra.mxu0 %v1950
        %1971 = vmatprep.subr.bf16.mxu0 0
        %1972 = vmatpush1.bf16.msra.mxu0 %v1951
        %1973 = vmatprep.subr.bf16.mxu0 0
        %1974 = vmatpush1.bf16.msra.mxu0 %v1952
        %1975 = vmatprep.subr.bf16.mxu0 0
        %1976 = vmatpush1.bf16.msra.mxu0 %v1953
        %1977 = vmatprep.subr.bf16.mxu0 0
        %1978 = vmatpush1.bf16.msra.mxu0 %v1954
        %1979 = vmatprep.subr.bf16.mxu0 0
        %1980 = vmatpush1.bf16.msra.mxu0 0
        %1981 = vmatprep.subr.bf16.mxu0 0
        %1982 = vmatpush1.bf16.msra.mxu0 0
        %1983 = vmatprep.subr.bf16.mxu0 0
        %1984 = vmatpush1.bf16.msra.mxu0 0
        %1985 = vmatprep.subr.bf16.mxu0 0
        %1986 = vmatpush1.bf16.msra.mxu0 0
        %1987 = vmatprep.subr.bf16.mxu0 0
        %1988 = vmatpush1.bf16.msra.mxu0 0
        %1989 = vmatprep.subr.bf16.mxu0 0
        %1990 = vmatpush1.bf16.msra.mxu0 0
        %1991 = vmatprep.subr.bf16.mxu0 0
        %1992 = vmatpush1.bf16.msra.mxu0 0
        %1993 = vmatprep.subr.bf16.mxu0 0
        %1994 = vmatpush1.bf16.msra.mxu0 0
        %1995 = vmatprep.mubr.bf16.mxu0 0
        %1996 = vmatmul.mubr.bf16.gmra.mrb[0].mxu0 %v1897
        %v1997 = vpop.f32.mrb[0].mxu0
        %v1998 = vadd.f32 0.0, %v1997
        %v1999 = vpop.f32.mrb[0].mxu0
        %v2000 = vpop.f32.mrb[0].mxu0
        %v2001 = vadd.f32 0.0, %v2000
        %v2002 = vpop.f32.mrb[0].mxu0
        %2003 = vdwg.mxu0
        %v2004 = vadd.f32 %v1889, %v1998
        %v2005 = vadd.f32 %v1892, %v2001
        %v2006 = vld [vmem:[#allocation2 + $0x9] sm:$0xff]
        %v2007 = vld [vmem:[#allocation2 + $0x11] sm:$0xff]
        %v2008 = vpack.c.bf16 %v2007, %v2006
        %s2009 = scalar_lea.vmem %s5, 192
        %v2010 = vld [vmem:[%s2009] sm:$0xf]
        %v2011 = vld [vmem:[%s2009 + $0x4] sm:$0xf]
        %v2012 = vld [vmem:[%s2009 + $0x8] sm:$0xf]
        %v2013 = vld [vmem:[%s2009 + $0xc] sm:$0xf]
        %v2014 = vld [vmem:[%s2009 + $0x10] sm:$0xf]
        %v2015 = vld [vmem:[%s2009 + $0x14] sm:$0xf]
        %v2016 = vld [vmem:[%s2009 + $0x18] sm:$0xf]
        %v2017 = vld [vmem:[%s2009 + $0x1c] sm:$0xf]
        %v2018 = vld [vmem:[%s2009 + $0x20] sm:$0xf]
        %v2019 = vld [vmem:[%s2009 + $0x24] sm:$0xf]
        %v2020 = vld [vmem:[%s2009 + $0x28] sm:$0xf]
        %v2021 = vld [vmem:[%s2009 + $0x2c] sm:$0xf]
        %v2022 = vld [vmem:[%s2009 + $0x30] sm:$0xf]
        %v2023 = vld [vmem:[%s2009 + $0x34] sm:$0xf]
        %v2024 = vld [vmem:[%s2009 + $0x38] sm:$0xf]
        %v2025 = vld [vmem:[%s2009 + $0x3c] sm:$0xf]
        %v2042 = vunpack.c.l.b16 %v2010
        %v2043 = vunpack.c.l.b16 %v2011
        %v2044 = vunpack.c.l.b16 %v2012
        %v2045 = vunpack.c.l.b16 %v2013
        %v2046 = vunpack.c.l.b16 %v2014
        %v2047 = vunpack.c.l.b16 %v2015
        %v2048 = vunpack.c.l.b16 %v2016
        %v2049 = vunpack.c.l.b16 %v2017
        %v2050 = vunpack.c.l.b16 %v2018
        %v2051 = vunpack.c.l.b16 %v2019
        %v2052 = vunpack.c.l.b16 %v2020
        %v2053 = vunpack.c.l.b16 %v2021
        %v2054 = vunpack.c.l.b16 %v2022
        %v2055 = vunpack.c.l.b16 %v2023
        %v2056 = vunpack.c.l.b16 %v2024
        %v2057 = vunpack.c.l.b16 %v2025
        %v2058 = vpack.c.b16 %v2043, %v2042
        %v2059 = vpack.c.b16 %v2045, %v2044
        %v2060 = vpack.c.b16 %v2047, %v2046
        %v2061 = vpack.c.b16 %v2049, %v2048
        %v2062 = vpack.c.b16 %v2051, %v2050
        %v2063 = vpack.c.b16 %v2053, %v2052
        %v2064 = vpack.c.b16 %v2055, %v2054
        %v2065 = vpack.c.b16 %v2057, %v2056
        %2074 = vmatprep.subr.bf16.mxu0 0
        %2075 = vmatpush1.bf16.msra.mxu0 %v2058
        %2076 = vmatprep.subr.bf16.mxu0 0
        %2077 = vmatpush1.bf16.msra.mxu0 %v2059
        %2078 = vmatprep.subr.bf16.mxu0 0
        %2079 = vmatpush1.bf16.msra.mxu0 %v2060
        %2080 = vmatprep.subr.bf16.mxu0 0
        %2081 = vmatpush1.bf16.msra.mxu0 %v2061
        %2082 = vmatprep.subr.bf16.mxu0 0
        %2083 = vmatpush1.bf16.msra.mxu0 %v2062
        %2084 = vmatprep.subr.bf16.mxu0 0
        %2085 = vmatpush1.bf16.msra.mxu0 %v2063
        %2086 = vmatprep.subr.bf16.mxu0 0
        %2087 = vmatpush1.bf16.msra.mxu0 %v2064
        %2088 = vmatprep.subr.bf16.mxu0 0
        %2089 = vmatpush1.bf16.msra.mxu0 %v2065
        %2090 = vmatprep.subr.bf16.mxu0 0
        %2091 = vmatpush1.bf16.msra.mxu0 0
        %2092 = vmatprep.subr.bf16.mxu0 0
        %2093 = vmatpush1.bf16.msra.mxu0 0
        %2094 = vmatprep.subr.bf16.mxu0 0
        %2095 = vmatpush1.bf16.msra.mxu0 0
        %2096 = vmatprep.subr.bf16.mxu0 0
        %2097 = vmatpush1.bf16.msra.mxu0 0
        %2098 = vmatprep.subr.bf16.mxu0 0
        %2099 = vmatpush1.bf16.msra.mxu0 0
        %2100 = vmatprep.subr.bf16.mxu0 0
        %2101 = vmatpush1.bf16.msra.mxu0 0
        %2102 = vmatprep.subr.bf16.mxu0 0
        %2103 = vmatpush1.bf16.msra.mxu0 0
        %2104 = vmatprep.subr.bf16.mxu0 0
        %2105 = vmatpush1.bf16.msra.mxu0 0
        %2106 = vmatprep.mubr.bf16.mxu0 0
        %2107 = vmatmul.mubr.bf16.gmra.mrb[0].mxu0 %v2008
        %v2108 = vpop.f32.mrb[0].mxu0
        %v2109 = vadd.f32 0.0, %v2108
        %v2110 = vpop.f32.mrb[0].mxu0
        %v2111 = vpop.f32.mrb[0].mxu0
        %v2112 = vadd.f32 0.0, %v2111
        %v2113 = vpop.f32.mrb[0].mxu0
        %2114 = vdwg.mxu0
        %v2115 = vadd.f32 %v2004, %v2109
        %v2116 = vadd.f32 %v2005, %v2112
        %v2117 = vld [vmem:[#allocation2 + $0xa] sm:$0xff]
        %v2118 = vld [vmem:[#allocation2 + $0x12] sm:$0xff]
        %v2119 = vpack.c.bf16 %v2118, %v2117
        %s2120 = scalar_lea.vmem %s5, 256
        %v2121 = vld [vmem:[%s2120] sm:$0xf]
        %v2122 = vld [vmem:[%s2120 + $0x4] sm:$0xf]
        %v2123 = vld [vmem:[%s2120 + $0x8] sm:$0xf]
        %v2124 = vld [vmem:[%s2120 + $0xc] sm:$0xf]
        %v2125 = vld [vmem:[%s2120 + $0x10] sm:$0xf]
        %v2126 = vld [vmem:[%s2120 + $0x14] sm:$0xf]
        %v2127 = vld [vmem:[%s2120 + $0x18] sm:$0xf]
        %v2128 = vld [vmem:[%s2120 + $0x1c] sm:$0xf]
        %v2129 = vld [vmem:[%s2120 + $0x20] sm:$0xf]
        %v2130 = vld [vmem:[%s2120 + $0x24] sm:$0xf]
        %v2131 = vld [vmem:[%s2120 + $0x28] sm:$0xf]
        %v2132 = vld [vmem:[%s2120 + $0x2c] sm:$0xf]
        %v2133 = vld [vmem:[%s2120 + $0x30] sm:$0xf]
        %v2134 = vld [vmem:[%s2120 + $0x34] sm:$0xf]
        %v2135 = vld [vmem:[%s2120 + $0x38] sm:$0xf]
        %v2136 = vld [vmem:[%s2120 + $0x3c] sm:$0xf]
        %v2153 = vunpack.c.l.b16 %v2121
        %v2154 = vunpack.c.l.b16 %v2122
        %v2155 = vunpack.c.l.b16 %v2123
        %v2156 = vunpack.c.l.b16 %v2124
        %v2157 = vunpack.c.l.b16 %v2125
        %v2158 = vunpack.c.l.b16 %v2126
        %v2159 = vunpack.c.l.b16 %v2127
        %v2160 = vunpack.c.l.b16 %v2128
        %v2161 = vunpack.c.l.b16 %v2129
        %v2162 = vunpack.c.l.b16 %v2130
        %v2163 = vunpack.c.l.b16 %v2131
        %v2164 = vunpack.c.l.b16 %v2132
        %v2165 = vunpack.c.l.b16 %v2133
        %v2166 = vunpack.c.l.b16 %v2134
        %v2167 = vunpack.c.l.b16 %v2135
        %v2168 = vunpack.c.l.b16 %v2136
        %v2169 = vpack.c.b16 %v2154, %v2153
        %v2170 = vpack.c.b16 %v2156, %v2155
        %v2171 = vpack.c.b16 %v2158, %v2157
        %v2172 = vpack.c.b16 %v2160, %v2159
        %v2173 = vpack.c.b16 %v2162, %v2161
        %v2174 = vpack.c.b16 %v2164, %v2163
        %v2175 = vpack.c.b16 %v2166, %v2165
        %v2176 = vpack.c.b16 %v2168, %v2167
        %2185 = vmatprep.subr.bf16.mxu0 0
        %2186 = vmatpush1.bf16.msra.mxu0 %v2169
        %2187 = vmatprep.subr.bf16.mxu0 0
        %2188 = vmatpush1.bf16.msra.mxu0 %v2170
        %2189 = vmatprep.subr.bf16.mxu0 0
        %2190 = vmatpush1.bf16.msra.mxu0 %v2171
        %2191 = vmatprep.subr.bf16.mxu0 0
        %2192 = vmatpush1.bf16.msra.mxu0 %v2172
        %2193 = vmatprep.subr.bf16.mxu0 0
        %2194 = vmatpush1.bf16.msra.mxu0 %v2173
        %2195 = vmatprep.subr.bf16.mxu0 0
        %2196 = vmatpush1.bf16.msra.mxu0 %v2174
        %2197 = vmatprep.subr.bf16.mxu0 0
        %2198 = vmatpush1.bf16.msra.mxu0 %v2175
        %2199 = vmatprep.subr.bf16.mxu0 0
        %2200 = vmatpush1.bf16.msra.mxu0 %v2176
        %2201 = vmatprep.subr.bf16.mxu0 0
        %2202 = vmatpush1.bf16.msra.mxu0 0
        %2203 = vmatprep.subr.bf16.mxu0 0
        %2204 = vmatpush1.bf16.msra.mxu0 0
        %2205 = vmatprep.subr.bf16.mxu0 0
        %2206 = vmatpush1.bf16.msra.mxu0 0
        %2207 = vmatprep.subr.bf16.mxu0 0
        %2208 = vmatpush1.bf16.msra.mxu0 0
        %2209 = vmatprep.subr.bf16.mxu0 0
        %2210 = vmatpush1.bf16.msra.mxu0 0
        %2211 = vmatprep.subr.bf16.mxu0 0
        %2212 = vmatpush1.bf16.msra.mxu0 0
        %2213 = vmatprep.subr.bf16.mxu0 0
        %2214 = vmatpush1.bf16.msra.mxu0 0
        %2215 = vmatprep.subr.bf16.mxu0 0
        %2216 = vmatpush1.bf16.msra.mxu0 0
        %2217 = vmatprep.mubr.bf16.mxu0 0
        %2218 = vmatmul.mubr.bf16.gmra.mrb[0].mxu0 %v2119
        %v2219 = vpop.f32.mrb[0].mxu0
        %v2220 = vadd.f32 0.0, %v2219
        %v2221 = vpop.f32.mrb[0].mxu0
        %v2222 = vpop.f32.mrb[0].mxu0
        %v2223 = vadd.f32 0.0, %v2222
        %v2224 = vpop.f32.mrb[0].mxu0
        %2225 = vdwg.mxu0
        %v2226 = vadd.f32 %v2115, %v2220
        %v2227 = vadd.f32 %v2116, %v2223
        %v2228 = vlaneseq
        %v2229 = vshrl.u32 %v2228, 7
        %v2230 = vsub.s32 0, %v2229
        %v2231 = vrot.slane %v1674, %v2230
        %v2232 = vmul.f32 %v2226, %v2231
        %v2233 = vmul.f32 %v2227, %v2231
        %v2234 = vlaneseq
        %v2235 = vshrl.u32 %v2234, 7
        %v2236 = vsub.s32 0, %v2235
        %v2237 = vrot.slane %v1675, %v2236
        %v2238 = vadd.f32 %v2232, %v2237
        %v2239 = vadd.f32 %v2233, %v2237
        %v2240 = vtanh.pop %v2238
        %v2241 = vtanh.pop %v2239
        %v2242 = vpack.c.bf16 %v2241, %v2240
        %v2243 = vld [vmem:[%s9 + $0xa] sm:$0x1]
        %v2244 = vld [vmem:[%s9 + $0xb] sm:$0x1]
        %2245 = vst [vmem:[#allocation2 + $0x8] sm:$0xff] %v2240
        %2246 = vst [vmem:[#allocation2 + $0x10] sm:$0xff] %v2241
        %v2247 = vld [vmem:[#allocation2 + $0x6] sm:$0xff]
        %v2248 = vld [vmem:[#allocation2 + $0xe] sm:$0xff]
        %v2249 = vpack.c.bf16 %v2248, %v2247
        %v2250 = vld [vmem:[%s6] sm:$0xf]
        %v2251 = vld [vmem:[%s6 + $0x4] sm:$0xf]
        %v2252 = vld [vmem:[%s6 + $0x8] sm:$0xf]
        %v2253 = vld [vmem:[%s6 + $0xc] sm:$0xf]
        %v2254 = vld [vmem:[%s6 + $0x10] sm:$0xf]
        %v2255 = vld [vmem:[%s6 + $0x14] sm:$0xf]
        %v2256 = vld [vmem:[%s6 + $0x18] sm:$0xf]
        %v2257 = vld [vmem:[%s6 + $0x1c] sm:$0xf]
        %v2258 = vld [vmem:[%s6 + $0x20] sm:$0xf]
        %v2259 = vld [vmem:[%s6 + $0x24] sm:$0xf]
        %v2260 = vld [vmem:[%s6 + $0x28] sm:$0xf]
        %v2261 = vld [vmem:[%s6 + $0x2c] sm:$0xf]
        %v2262 = vld [vmem:[%s6 + $0x30] sm:$0xf]
        %v2263 = vld [vmem:[%s6 + $0x34] sm:$0xf]
        %v2264 = vld [vmem:[%s6 + $0x38] sm:$0xf]
        %v2265 = vld [vmem:[%s6 + $0x3c] sm:$0xf]
        %v2266 = vld [vmem:[#allocation2 + $0x7] sm:$0xff]
        %v2267 = vld [vmem:[#allocation2 + $0xf] sm:$0xff]
        %v2268 = vpack.c.bf16 %v2267, %v2266
        %s2269 = scalar_lea.vmem %s6, 64
        %v2270 = vld [vmem:[%s2269] sm:$0xf]
        %v2271 = vld [vmem:[%s2269 + $0x4] sm:$0xf]
        %v2272 = vld [vmem:[%s2269 + $0x8] sm:$0xf]
        %v2273 = vld [vmem:[%s2269 + $0xc] sm:$0xf]
        %v2274 = vld [vmem:[%s2269 + $0x10] sm:$0xf]
        %v2275 = vld [vmem:[%s2269 + $0x14] sm:$0xf]
        %v2276 = vld [vmem:[%s2269 + $0x18] sm:$0xf]
        %v2277 = vld [vmem:[%s2269 + $0x1c] sm:$0xf]
        %v2278 = vld [vmem:[%s2269 + $0x20] sm:$0xf]
        %v2279 = vld [vmem:[%s2269 + $0x24] sm:$0xf]
        %v2280 = vld [vmem:[%s2269 + $0x28] sm:$0xf]
        %v2281 = vld [vmem:[%s2269 + $0x2c] sm:$0xf]
        %v2282 = vld [vmem:[%s2269 + $0x30] sm:$0xf]
        %v2283 = vld [vmem:[%s2269 + $0x34] sm:$0xf]
        %v2284 = vld [vmem:[%s2269 + $0x38] sm:$0xf]
        %v2285 = vld [vmem:[%s2269 + $0x3c] sm:$0xf]
        %v2302 = vunpack.c.l.b16 %v2270
        %v2303 = vunpack.c.l.b16 %v2271
        %v2304 = vunpack.c.l.b16 %v2272
        %v2305 = vunpack.c.l.b16 %v2273
        %v2306 = vunpack.c.l.b16 %v2274
        %v2307 = vunpack.c.l.b16 %v2275
        %v2308 = vunpack.c.l.b16 %v2276
        %v2309 = vunpack.c.l.b16 %v2277
        %v2310 = vunpack.c.l.b16 %v2278
        %v2311 = vunpack.c.l.b16 %v2279
        %v2312 = vunpack.c.l.b16 %v2280
        %v2313 = vunpack.c.l.b16 %v2281
        %v2314 = vunpack.c.l.b16 %v2282
        %v2315 = vunpack.c.l.b16 %v2283
        %v2316 = vunpack.c.l.b16 %v2284
        %v2317 = vunpack.c.l.b16 %v2285
        %v2318 = vpack.c.b16 %v2303, %v2302
        %v2319 = vpack.c.b16 %v2305, %v2304
        %v2320 = vpack.c.b16 %v2307, %v2306
        %v2321 = vpack.c.b16 %v2309, %v2308
        %v2322 = vpack.c.b16 %v2311, %v2310
        %v2323 = vpack.c.b16 %v2313, %v2312
        %v2324 = vpack.c.b16 %v2315, %v2314
        %v2325 = vpack.c.b16 %v2317, %v2316
        %2334 = vmatprep.subr.bf16.mxu0 0
        %2335 = vmatpush1.bf16.msra.mxu0 %v2318
        %2336 = vmatprep.subr.bf16.mxu0 0
        %2337 = vmatpush1.bf16.msra.mxu0 %v2319
        %2338 = vmatprep.subr.bf16.mxu0 0
        %2339 = vmatpush1.bf16.msra.mxu0 %v2320
        %2340 = vmatprep.subr.bf16.mxu0 0
        %2341 = vmatpush1.bf16.msra.mxu0 %v2321
        %2342 = vmatprep.subr.bf16.mxu0 0
        %2343 = vmatpush1.bf16.msra.mxu0 %v2322
        %2344 = vmatprep.subr.bf16.mxu0 0
        %2345 = vmatpush1.bf16.msra.mxu0 %v2323
        %2346 = vmatprep.subr.bf16.mxu0 0
        %2347 = vmatpush1.bf16.msra.mxu0 %v2324
        %2348 = vmatprep.subr.bf16.mxu0 0
        %2349 = vmatpush1.bf16.msra.mxu0 %v2325
        %2350 = vmatprep.subr.bf16.mxu0 0
        %2351 = vmatpush1.bf16.msra.mxu0 0
        %2352 = vmatprep.subr.bf16.mxu0 0
        %2353 = vmatpush1.bf16.msra.mxu0 0
        %2354 = vmatprep.subr.bf16.mxu0 0
        %2355 = vmatpush1.bf16.msra.mxu0 0
        %2356 = vmatprep.subr.bf16.mxu0 0
        %2357 = vmatpush1.bf16.msra.mxu0 0
        %2358 = vmatprep.subr.bf16.mxu0 0
        %2359 = vmatpush1.bf16.msra.mxu0 0
        %2360 = vmatprep.subr.bf16.mxu0 0
        %2361 = vmatpush1.bf16.msra.mxu0 0
        %2362 = vmatprep.subr.bf16.mxu0 0
        %2363 = vmatpush1.bf16.msra.mxu0 0
        %2364 = vmatprep.subr.bf16.mxu0 0
        %2365 = vmatpush1.bf16.msra.mxu0 0
        %2366 = vmatprep.mubr.bf16.mxu0 0
        %2367 = vmatmul.mubr.bf16.gmra.mrb[0].mxu0 %v2268
        %v2368 = vpop.f32.mrb[0].mxu0
        %v2369 = vadd.f32 0.0, %v2368
        %v2370 = vpop.f32.mrb[0].mxu0
        %v2371 = vpop.f32.mrb[0].mxu0
        %v2372 = vadd.f32 0.0, %v2371
        %v2373 = vpop.f32.mrb[0].mxu0
        %2374 = vdwg.mxu0
        %v2391 = vunpack.c.l.b16 %v2250
        %v2392 = vunpack.c.l.b16 %v2251
        %v2393 = vunpack.c.l.b16 %v2252
        %v2394 = vunpack.c.l.b16 %v2253
        %v2395 = vunpack.c.l.b16 %v2254
        %v2396 = vunpack.c.l.b16 %v2255
        %v2397 = vunpack.c.l.b16 %v2256
        %v2398 = vunpack.c.l.b16 %v2257
        %v2399 = vunpack.c.l.b16 %v2258
        %v2400 = vunpack.c.l.b16 %v2259
        %v2401 = vunpack.c.l.b16 %v2260
        %v2402 = vunpack.c.l.b16 %v2261
        %v2403 = vunpack.c.l.b16 %v2262
        %v2404 = vunpack.c.l.b16 %v2263
        %v2405 = vunpack.c.l.b16 %v2264
        %v2406 = vunpack.c.l.b16 %v2265
        %v2407 = vpack.c.b16 %v2392, %v2391
        %v2408 = vpack.c.b16 %v2394, %v2393
        %v2409 = vpack.c.b16 %v2396, %v2395
        %v2410 = vpack.c.b16 %v2398, %v2397
        %v2411 = vpack.c.b16 %v2400, %v2399
        %v2412 = vpack.c.b16 %v2402, %v2401
        %v2413 = vpack.c.b16 %v2404, %v2403
        %v2414 = vpack.c.b16 %v2406, %v2405
        %2423 = vmatprep.subr.bf16.mxu0 0
        %2424 = vmatpush1.bf16.msra.mxu0 %v2407
        %2425 = vmatprep.subr.bf16.mxu0 0
        %2426 = vmatpush1.bf16.msra.mxu0 %v2408
        %2427 = vmatprep.subr.bf16.mxu0 0
        %2428 = vmatpush1.bf16.msra.mxu0 %v2409
        %2429 = vmatprep.subr.bf16.mxu0 0
        %2430 = vmatpush1.bf16.msra.mxu0 %v2410
        %2431 = vmatprep.subr.bf16.mxu0 0
        %2432 = vmatpush1.bf16.msra.mxu0 %v2411
        %2433 = vmatprep.subr.bf16.mxu0 0
        %2434 = vmatpush1.bf16.msra.mxu0 %v2412
        %2435 = vmatprep.subr.bf16.mxu0 0
        %2436 = vmatpush1.bf16.msra.mxu0 %v2413
        %2437 = vmatprep.subr.bf16.mxu0 0
        %2438 = vmatpush1.bf16.msra.mxu0 %v2414
        %2439 = vmatprep.subr.bf16.mxu0 0
        %2440 = vmatpush1.bf16.msra.mxu0 0
        %2441 = vmatprep.subr.bf16.mxu0 0
        %2442 = vmatpush1.bf16.msra.mxu0 0
        %2443 = vmatprep.subr.bf16.mxu0 0
        %2444 = vmatpush1.bf16.msra.mxu0 0
        %2445 = vmatprep.subr.bf16.mxu0 0
        %2446 = vmatpush1.bf16.msra.mxu0 0
        %2447 = vmatprep.subr.bf16.mxu0 0
        %2448 = vmatpush1.bf16.msra.mxu0 0
        %2449 = vmatprep.subr.bf16.mxu0 0
        %2450 = vmatpush1.bf16.msra.mxu0 0
        %2451 = vmatprep.subr.bf16.mxu0 0
        %2452 = vmatpush1.bf16.msra.mxu0 0
        %2453 = vmatprep.subr.bf16.mxu0 0
        %2454 = vmatpush1.bf16.msra.mxu0 0
        %2455 = vmatprep.mubr.bf16.mxu0 0
        %2456 = vmatmul.mubr.bf16.gmra.mrb[0].mxu0 %v2249
        %v2457 = vpop.f32.mrb[0].mxu0
        %v2458 = vadd.f32 %v2369, %v2457
        %v2459 = vpop.f32.mrb[0].mxu0
        %v2460 = vpop.f32.mrb[0].mxu0
        %v2461 = vadd.f32 %v2372, %v2460
        %v2462 = vpop.f32.mrb[0].mxu0
        %2463 = vdwg.mxu0
        %v2464 = vld [vmem:[#allocation2 + $0x8] sm:$0xff]
        %v2465 = vld [vmem:[#allocation2 + $0x10] sm:$0xff]
        %v2466 = vpack.c.bf16 %v2465, %v2464
        %s2467 = scalar_lea.vmem %s6, 128
        %v2468 = vld [vmem:[%s2467] sm:$0xf]
        %v2469 = vld [vmem:[%s2467 + $0x4] sm:$0xf]
        %v2470 = vld [vmem:[%s2467 + $0x8] sm:$0xf]
        %v2471 = vld [vmem:[%s2467 + $0xc] sm:$0xf]
        %v2472 = vld [vmem:[%s2467 + $0x10] sm:$0xf]
        %v2473 = vld [vmem:[%s2467 + $0x14] sm:$0xf]
        %v2474 = vld [vmem:[%s2467 + $0x18] sm:$0xf]
        %v2475 = vld [vmem:[%s2467 + $0x1c] sm:$0xf]
        %v2476 = vld [vmem:[%s2467 + $0x20] sm:$0xf]
        %v2477 = vld [vmem:[%s2467 + $0x24] sm:$0xf]
        %v2478 = vld [vmem:[%s2467 + $0x28] sm:$0xf]
        %v2479 = vld [vmem:[%s2467 + $0x2c] sm:$0xf]
        %v2480 = vld [vmem:[%s2467 + $0x30] sm:$0xf]
        %v2481 = vld [vmem:[%s2467 + $0x34] sm:$0xf]
        %v2482 = vld [vmem:[%s2467 + $0x38] sm:$0xf]
        %v2483 = vld [vmem:[%s2467 + $0x3c] sm:$0xf]
        %v2500 = vunpack.c.l.b16 %v2468
        %v2501 = vunpack.c.l.b16 %v2469
        %v2502 = vunpack.c.l.b16 %v2470
        %v2503 = vunpack.c.l.b16 %v2471
        %v2504 = vunpack.c.l.b16 %v2472
        %v2505 = vunpack.c.l.b16 %v2473
        %v2506 = vunpack.c.l.b16 %v2474
        %v2507 = vunpack.c.l.b16 %v2475
        %v2508 = vunpack.c.l.b16 %v2476
        %v2509 = vunpack.c.l.b16 %v2477
        %v2510 = vunpack.c.l.b16 %v2478
        %v2511 = vunpack.c.l.b16 %v2479
        %v2512 = vunpack.c.l.b16 %v2480
        %v2513 = vunpack.c.l.b16 %v2481
        %v2514 = vunpack.c.l.b16 %v2482
        %v2515 = vunpack.c.l.b16 %v2483
        %v2516 = vpack.c.b16 %v2501, %v2500
        %v2517 = vpack.c.b16 %v2503, %v2502
        %v2518 = vpack.c.b16 %v2505, %v2504
        %v2519 = vpack.c.b16 %v2507, %v2506
        %v2520 = vpack.c.b16 %v2509, %v2508
        %v2521 = vpack.c.b16 %v2511, %v2510
        %v2522 = vpack.c.b16 %v2513, %v2512
        %v2523 = vpack.c.b16 %v2515, %v2514
        %2532 = vmatprep.subr.bf16.mxu0 0
        %2533 = vmatpush1.bf16.msra.mxu0 %v2516
        %2534 = vmatprep.subr.bf16.mxu0 0
        %2535 = vmatpush1.bf16.msra.mxu0 %v2517
        %2536 = vmatprep.subr.bf16.mxu0 0
        %2537 = vmatpush1.bf16.msra.mxu0 %v2518
        %2538 = vmatprep.subr.bf16.mxu0 0
        %2539 = vmatpush1.bf16.msra.mxu0 %v2519
        %2540 = vmatprep.subr.bf16.mxu0 0
        %2541 = vmatpush1.bf16.msra.mxu0 %v2520
        %2542 = vmatprep.subr.bf16.mxu0 0
        %2543 = vmatpush1.bf16.msra.mxu0 %v2521
        %2544 = vmatprep.subr.bf16.mxu0 0
        %2545 = vmatpush1.bf16.msra.mxu0 %v2522
        %2546 = vmatprep.subr.bf16.mxu0 0
        %2547 = vmatpush1.bf16.msra.mxu0 %v2523
        %2548 = vmatprep.subr.bf16.mxu0 0
        %2549 = vmatpush1.bf16.msra.mxu0 0
        %2550 = vmatprep.subr.bf16.mxu0 0
        %2551 = vmatpush1.bf16.msra.mxu0 0
        %2552 = vmatprep.subr.bf16.mxu0 0
        %2553 = vmatpush1.bf16.msra.mxu0 0
        %2554 = vmatprep.subr.bf16.mxu0 0
        %2555 = vmatpush1.bf16.msra.mxu0 0
        %2556 = vmatprep.subr.bf16.mxu0 0
        %2557 = vmatpush1.bf16.msra.mxu0 0
        %2558 = vmatprep.subr.bf16.mxu0 0
        %2559 = vmatpush1.bf16.msra.mxu0 0
        %2560 = vmatprep.subr.bf16.mxu0 0
        %2561 = vmatpush1.bf16.msra.mxu0 0
        %2562 = vmatprep.subr.bf16.mxu0 0
        %2563 = vmatpush1.bf16.msra.mxu0 0
        %2564 = vmatprep.mubr.bf16.mxu0 0
        %2565 = vmatmul.mubr.bf16.gmra.mrb[0].mxu0 %v2466
        %v2566 = vpop.f32.mrb[0].mxu0
        %v2567 = vadd.f32 0.0, %v2566
        %v2568 = vpop.f32.mrb[0].mxu0
        %v2569 = vpop.f32.mrb[0].mxu0
        %v2570 = vadd.f32 0.0, %v2569
        %v2571 = vpop.f32.mrb[0].mxu0
        %2572 = vdwg.mxu0
        %v2573 = vadd.f32 %v2458, %v2567
        %v2574 = vadd.f32 %v2461, %v2570
        %v2575 = vld [vmem:[#allocation2 + $0x9] sm:$0xff]
        %v2576 = vld [vmem:[#allocation2 + $0x11] sm:$0xff]
        %v2577 = vpack.c.bf16 %v2576, %v2575
        %s2578 = scalar_lea.vmem %s6, 192
        %v2579 = vld [vmem:[%s2578] sm:$0xf]
        %v2580 = vld [vmem:[%s2578 + $0x4] sm:$0xf]
        %v2581 = vld [vmem:[%s2578 + $0x8] sm:$0xf]
        %v2582 = vld [vmem:[%s2578 + $0xc] sm:$0xf]
        %v2583 = vld [vmem:[%s2578 + $0x10] sm:$0xf]
        %v2584 = vld [vmem:[%s2578 + $0x14] sm:$0xf]
        %v2585 = vld [vmem:[%s2578 + $0x18] sm:$0xf]
        %v2586 = vld [vmem:[%s2578 + $0x1c] sm:$0xf]
        %v2587 = vld [vmem:[%s2578 + $0x20] sm:$0xf]
        %v2588 = vld [vmem:[%s2578 + $0x24] sm:$0xf]
        %v2589 = vld [vmem:[%s2578 + $0x28] sm:$0xf]
        %v2590 = vld [vmem:[%s2578 + $0x2c] sm:$0xf]
        %v2591 = vld [vmem:[%s2578 + $0x30] sm:$0xf]
        %v2592 = vld [vmem:[%s2578 + $0x34] sm:$0xf]
        %v2593 = vld [vmem:[%s2578 + $0x38] sm:$0xf]
        %v2594 = vld [vmem:[%s2578 + $0x3c] sm:$0xf]
        %v2611 = vunpack.c.l.b16 %v2579
        %v2612 = vunpack.c.l.b16 %v2580
        %v2613 = vunpack.c.l.b16 %v2581
        %v2614 = vunpack.c.l.b16 %v2582
        %v2615 = vunpack.c.l.b16 %v2583
        %v2616 = vunpack.c.l.b16 %v2584
        %v2617 = vunpack.c.l.b16 %v2585
        %v2618 = vunpack.c.l.b16 %v2586
        %v2619 = vunpack.c.l.b16 %v2587
        %v2620 = vunpack.c.l.b16 %v2588
        %v2621 = vunpack.c.l.b16 %v2589
        %v2622 = vunpack.c.l.b16 %v2590
        %v2623 = vunpack.c.l.b16 %v2591
        %v2624 = vunpack.c.l.b16 %v2592
        %v2625 = vunpack.c.l.b16 %v2593
        %v2626 = vunpack.c.l.b16 %v2594
        %v2627 = vpack.c.b16 %v2612, %v2611
        %v2628 = vpack.c.b16 %v2614, %v2613
        %v2629 = vpack.c.b16 %v2616, %v2615
        %v2630 = vpack.c.b16 %v2618, %v2617
        %v2631 = vpack.c.b16 %v2620, %v2619
        %v2632 = vpack.c.b16 %v2622, %v2621
        %v2633 = vpack.c.b16 %v2624, %v2623
        %v2634 = vpack.c.b16 %v2626, %v2625
        %2643 = vmatprep.subr.bf16.mxu0 0
        %2644 = vmatpush1.bf16.msra.mxu0 %v2627
        %2645 = vmatprep.subr.bf16.mxu0 0
        %2646 = vmatpush1.bf16.msra.mxu0 %v2628
        %2647 = vmatprep.subr.bf16.mxu0 0
        %2648 = vmatpush1.bf16.msra.mxu0 %v2629
        %2649 = vmatprep.subr.bf16.mxu0 0
        %2650 = vmatpush1.bf16.msra.mxu0 %v2630
        %2651 = vmatprep.subr.bf16.mxu0 0
        %2652 = vmatpush1.bf16.msra.mxu0 %v2631
        %2653 = vmatprep.subr.bf16.mxu0 0
        %2654 = vmatpush1.bf16.msra.mxu0 %v2632
        %2655 = vmatprep.subr.bf16.mxu0 0
        %2656 = vmatpush1.bf16.msra.mxu0 %v2633
        %2657 = vmatprep.subr.bf16.mxu0 0
        %2658 = vmatpush1.bf16.msra.mxu0 %v2634
        %2659 = vmatprep.subr.bf16.mxu0 0
        %2660 = vmatpush1.bf16.msra.mxu0 0
        %2661 = vmatprep.subr.bf16.mxu0 0
        %2662 = vmatpush1.bf16.msra.mxu0 0
        %2663 = vmatprep.subr.bf16.mxu0 0
        %2664 = vmatpush1.bf16.msra.mxu0 0
        %2665 = vmatprep.subr.bf16.mxu0 0
        %2666 = vmatpush1.bf16.msra.mxu0 0
        %2667 = vmatprep.subr.bf16.mxu0 0
        %2668 = vmatpush1.bf16.msra.mxu0 0
        %2669 = vmatprep.subr.bf16.mxu0 0
        %2670 = vmatpush1.bf16.msra.mxu0 0
        %2671 = vmatprep.subr.bf16.mxu0 0
        %2672 = vmatpush1.bf16.msra.mxu0 0
        %2673 = vmatprep.subr.bf16.mxu0 0
        %2674 = vmatpush1.bf16.msra.mxu0 0
        %2675 = vmatprep.mubr.bf16.mxu0 0
        %2676 = vmatmul.mubr.bf16.gmra.mrb[0].mxu0 %v2577
        %v2677 = vpop.f32.mrb[0].mxu0
        %v2678 = vadd.f32 0.0, %v2677
        %v2679 = vpop.f32.mrb[0].mxu0
        %v2680 = vpop.f32.mrb[0].mxu0
        %v2681 = vadd.f32 0.0, %v2680
        %v2682 = vpop.f32.mrb[0].mxu0
        %2683 = vdwg.mxu0
        %v2684 = vadd.f32 %v2573, %v2678
        %v2685 = vadd.f32 %v2574, %v2681
        %v2686 = vld [vmem:[#allocation2 + $0xa] sm:$0xff]
        %v2687 = vld [vmem:[#allocation2 + $0x12] sm:$0xff]
        %v2688 = vpack.c.bf16 %v2687, %v2686
        %s2689 = scalar_lea.vmem %s6, 256
        %v2690 = vld [vmem:[%s2689] sm:$0xf]
        %v2691 = vld [vmem:[%s2689 + $0x4] sm:$0xf]
        %v2692 = vld [vmem:[%s2689 + $0x8] sm:$0xf]
        %v2693 = vld [vmem:[%s2689 + $0xc] sm:$0xf]
        %v2694 = vld [vmem:[%s2689 + $0x10] sm:$0xf]
        %v2695 = vld [vmem:[%s2689 + $0x14] sm:$0xf]
        %v2696 = vld [vmem:[%s2689 + $0x18] sm:$0xf]
        %v2697 = vld [vmem:[%s2689 + $0x1c] sm:$0xf]
        %v2698 = vld [vmem:[%s2689 + $0x20] sm:$0xf]
        %v2699 = vld [vmem:[%s2689 + $0x24] sm:$0xf]
        %v2700 = vld [vmem:[%s2689 + $0x28] sm:$0xf]
        %v2701 = vld [vmem:[%s2689 + $0x2c] sm:$0xf]
        %v2702 = vld [vmem:[%s2689 + $0x30] sm:$0xf]
        %v2703 = vld [vmem:[%s2689 + $0x34] sm:$0xf]
        %v2704 = vld [vmem:[%s2689 + $0x38] sm:$0xf]
        %v2705 = vld [vmem:[%s2689 + $0x3c] sm:$0xf]
        %v2722 = vunpack.c.l.b16 %v2690
        %v2723 = vunpack.c.l.b16 %v2691
        %v2724 = vunpack.c.l.b16 %v2692
        %v2725 = vunpack.c.l.b16 %v2693
        %v2726 = vunpack.c.l.b16 %v2694
        %v2727 = vunpack.c.l.b16 %v2695
        %v2728 = vunpack.c.l.b16 %v2696
        %v2729 = vunpack.c.l.b16 %v2697
        %v2730 = vunpack.c.l.b16 %v2698
        %v2731 = vunpack.c.l.b16 %v2699
        %v2732 = vunpack.c.l.b16 %v2700
        %v2733 = vunpack.c.l.b16 %v2701
        %v2734 = vunpack.c.l.b16 %v2702
        %v2735 = vunpack.c.l.b16 %v2703
        %v2736 = vunpack.c.l.b16 %v2704
        %v2737 = vunpack.c.l.b16 %v2705
        %v2738 = vpack.c.b16 %v2723, %v2722
        %v2739 = vpack.c.b16 %v2725, %v2724
        %v2740 = vpack.c.b16 %v2727, %v2726
        %v2741 = vpack.c.b16 %v2729, %v2728
        %v2742 = vpack.c.b16 %v2731, %v2730
        %v2743 = vpack.c.b16 %v2733, %v2732
        %v2744 = vpack.c.b16 %v2735, %v2734
        %v2745 = vpack.c.b16 %v2737, %v2736
        %2754 = vmatprep.subr.bf16.mxu0 0
        %2755 = vmatpush1.bf16.msra.mxu0 %v2738
        %2756 = vmatprep.subr.bf16.mxu0 0
        %2757 = vmatpush1.bf16.msra.mxu0 %v2739
        %2758 = vmatprep.subr.bf16.mxu0 0
        %2759 = vmatpush1.bf16.msra.mxu0 %v2740
        %2760 = vmatprep.subr.bf16.mxu0 0
        %2761 = vmatpush1.bf16.msra.mxu0 %v2741
        %2762 = vmatprep.subr.bf16.mxu0 0
        %2763 = vmatpush1.bf16.msra.mxu0 %v2742
        %2764 = vmatprep.subr.bf16.mxu0 0
        %2765 = vmatpush1.bf16.msra.mxu0 %v2743
        %2766 = vmatprep.subr.bf16.mxu0 0
        %2767 = vmatpush1.bf16.msra.mxu0 %v2744
        %2768 = vmatprep.subr.bf16.mxu0 0
        %2769 = vmatpush1.bf16.msra.mxu0 %v2745
        %2770 = vmatprep.subr.bf16.mxu0 0
        %2771 = vmatpush1.bf16.msra.mxu0 0
        %2772 = vmatprep.subr.bf16.mxu0 0
        %2773 = vmatpush1.bf16.msra.mxu0 0
        %2774 = vmatprep.subr.bf16.mxu0 0
        %2775 = vmatpush1.bf16.msra.mxu0 0
        %2776 = vmatprep.subr.bf16.mxu0 0
        %2777 = vmatpush1.bf16.msra.mxu0 0
        %2778 = vmatprep.subr.bf16.mxu0 0
        %2779 = vmatpush1.bf16.msra.mxu0 0
        %2780 = vmatprep.subr.bf16.mxu0 0
        %2781 = vmatpush1.bf16.msra.mxu0 0
        %2782 = vmatprep.subr.bf16.mxu0 0
        %2783 = vmatpush1.bf16.msra.mxu0 0
        %2784 = vmatprep.subr.bf16.mxu0 0
        %2785 = vmatpush1.bf16.msra.mxu0 0
        %2786 = vmatprep.mubr.bf16.mxu0 0
        %2787 = vmatmul.mubr.bf16.gmra.mrb[0].mxu0 %v2688
        %v2788 = vpop.f32.mrb[0].mxu0
        %v2789 = vadd.f32 0.0, %v2788
        %v2790 = vpop.f32.mrb[0].mxu0
        %v2791 = vpop.f32.mrb[0].mxu0
        %v2792 = vadd.f32 0.0, %v2791
        %v2793 = vpop.f32.mrb[0].mxu0
        %2794 = vdwg.mxu0
        %v2795 = vadd.f32 %v2684, %v2789
        %v2796 = vadd.f32 %v2685, %v2792
        %v2797 = vlaneseq
        %v2798 = vshrl.u32 %v2797, 7
        %v2799 = vsub.s32 0, %v2798
        %v2800 = vrot.slane %v2243, %v2799
        %v2801 = vmul.f32 %v2795, %v2800
        %v2802 = vmul.f32 %v2796, %v2800
        %v2803 = vlaneseq
        %v2804 = vshrl.u32 %v2803, 7
        %v2805 = vsub.s32 0, %v2804
        %v2806 = vrot.slane %v2244, %v2805
        %v2807 = vadd.f32 %v2801, %v2806
        %v2808 = vadd.f32 %v2802, %v2806
        %v2809 = vtanh.pop %v2807
        %v2810 = vtanh.pop %v2808
        %v2811 = vld [vmem:[%s9 + $0xc] sm:$0x1]
        %v2812 = vld [vmem:[%s9 + $0xd] sm:$0x1]
        %2813 = vst [vmem:[#allocation2 + $0x8] sm:$0xff] %v2809
        %2814 = vst [vmem:[#allocation2 + $0x10] sm:$0xff] %v2810
        %v2815 = vld [vmem:[#allocation2 + $0x6] sm:$0xff]
        %v2816 = vld [vmem:[#allocation2 + $0xe] sm:$0xff]
        %v2817 = vpack.c.bf16 %v2816, %v2815
        %v2818 = vld [vmem:[%s7] sm:$0xf]
        %v2819 = vld [vmem:[%s7 + $0x4] sm:$0xf]
        %v2820 = vld [vmem:[%s7 + $0x8] sm:$0xf]
        %v2821 = vld [vmem:[%s7 + $0xc] sm:$0xf]
        %v2822 = vld [vmem:[%s7 + $0x10] sm:$0xf]
        %v2823 = vld [vmem:[%s7 + $0x14] sm:$0xf]
        %v2824 = vld [vmem:[%s7 + $0x18] sm:$0xf]
        %v2825 = vld [vmem:[%s7 + $0x1c] sm:$0xf]
        %v2826 = vld [vmem:[%s7 + $0x20] sm:$0xf]
        %v2827 = vld [vmem:[%s7 + $0x24] sm:$0xf]
        %v2828 = vld [vmem:[%s7 + $0x28] sm:$0xf]
        %v2829 = vld [vmem:[%s7 + $0x2c] sm:$0xf]
        %v2830 = vld [vmem:[%s7 + $0x30] sm:$0xf]
        %v2831 = vld [vmem:[%s7 + $0x34] sm:$0xf]
        %v2832 = vld [vmem:[%s7 + $0x38] sm:$0xf]
        %v2833 = vld [vmem:[%s7 + $0x3c] sm:$0xf]
        %v2834 = vld [vmem:[#allocation2 + $0x7] sm:$0xff]
        %v2835 = vld [vmem:[#allocation2 + $0xf] sm:$0xff]
        %v2836 = vpack.c.bf16 %v2835, %v2834
        %s2837 = scalar_lea.vmem %s7, 64
        %v2838 = vld [vmem:[%s2837] sm:$0xf]
        %v2839 = vld [vmem:[%s2837 + $0x4] sm:$0xf]
        %v2840 = vld [vmem:[%s2837 + $0x8] sm:$0xf]
        %v2841 = vld [vmem:[%s2837 + $0xc] sm:$0xf]
        %v2842 = vld [vmem:[%s2837 + $0x10] sm:$0xf]
        %v2843 = vld [vmem:[%s2837 + $0x14] sm:$0xf]
        %v2844 = vld [vmem:[%s2837 + $0x18] sm:$0xf]
        %v2845 = vld [vmem:[%s2837 + $0x1c] sm:$0xf]
        %v2846 = vld [vmem:[%s2837 + $0x20] sm:$0xf]
        %v2847 = vld [vmem:[%s2837 + $0x24] sm:$0xf]
        %v2848 = vld [vmem:[%s2837 + $0x28] sm:$0xf]
        %v2849 = vld [vmem:[%s2837 + $0x2c] sm:$0xf]
        %v2850 = vld [vmem:[%s2837 + $0x30] sm:$0xf]
        %v2851 = vld [vmem:[%s2837 + $0x34] sm:$0xf]
        %v2852 = vld [vmem:[%s2837 + $0x38] sm:$0xf]
        %v2853 = vld [vmem:[%s2837 + $0x3c] sm:$0xf]
        %v2870 = vunpack.c.l.b16 %v2838
        %v2871 = vunpack.c.l.b16 %v2839
        %v2872 = vunpack.c.l.b16 %v2840
        %v2873 = vunpack.c.l.b16 %v2841
        %v2874 = vunpack.c.l.b16 %v2842
        %v2875 = vunpack.c.l.b16 %v2843
        %v2876 = vunpack.c.l.b16 %v2844
        %v2877 = vunpack.c.l.b16 %v2845
        %v2878 = vunpack.c.l.b16 %v2846
        %v2879 = vunpack.c.l.b16 %v2847
        %v2880 = vunpack.c.l.b16 %v2848
        %v2881 = vunpack.c.l.b16 %v2849
        %v2882 = vunpack.c.l.b16 %v2850
        %v2883 = vunpack.c.l.b16 %v2851
        %v2884 = vunpack.c.l.b16 %v2852
        %v2885 = vunpack.c.l.b16 %v2853
        %v2886 = vpack.c.b16 %v2871, %v2870
        %v2887 = vpack.c.b16 %v2873, %v2872
        %v2888 = vpack.c.b16 %v2875, %v2874
        %v2889 = vpack.c.b16 %v2877, %v2876
        %v2890 = vpack.c.b16 %v2879, %v2878
        %v2891 = vpack.c.b16 %v2881, %v2880
        %v2892 = vpack.c.b16 %v2883, %v2882
        %v2893 = vpack.c.b16 %v2885, %v2884
        %2902 = vmatprep.subr.bf16.mxu0 0
        %2903 = vmatpush1.bf16.msra.mxu0 %v2886
        %2904 = vmatprep.subr.bf16.mxu0 0
        %2905 = vmatpush1.bf16.msra.mxu0 %v2887
        %2906 = vmatprep.subr.bf16.mxu0 0
        %2907 = vmatpush1.bf16.msra.mxu0 %v2888
        %2908 = vmatprep.subr.bf16.mxu0 0
        %2909 = vmatpush1.bf16.msra.mxu0 %v2889
        %2910 = vmatprep.subr.bf16.mxu0 0
        %2911 = vmatpush1.bf16.msra.mxu0 %v2890
        %2912 = vmatprep.subr.bf16.mxu0 0
        %2913 = vmatpush1.bf16.msra.mxu0 %v2891
        %2914 = vmatprep.subr.bf16.mxu0 0
        %2915 = vmatpush1.bf16.msra.mxu0 %v2892
        %2916 = vmatprep.subr.bf16.mxu0 0
        %2917 = vmatpush1.bf16.msra.mxu0 %v2893
        %2918 = vmatprep.subr.bf16.mxu0 0
        %2919 = vmatpush1.bf16.msra.mxu0 0
        %2920 = vmatprep.subr.bf16.mxu0 0
        %2921 = vmatpush1.bf16.msra.mxu0 0
        %2922 = vmatprep.subr.bf16.mxu0 0
        %2923 = vmatpush1.bf16.msra.mxu0 0
        %2924 = vmatprep.subr.bf16.mxu0 0
        %2925 = vmatpush1.bf16.msra.mxu0 0
        %2926 = vmatprep.subr.bf16.mxu0 0
        %2927 = vmatpush1.bf16.msra.mxu0 0
        %2928 = vmatprep.subr.bf16.mxu0 0
        %2929 = vmatpush1.bf16.msra.mxu0 0
        %2930 = vmatprep.subr.bf16.mxu0 0
        %2931 = vmatpush1.bf16.msra.mxu0 0
        %2932 = vmatprep.subr.bf16.mxu0 0
        %2933 = vmatpush1.bf16.msra.mxu0 0
        %2934 = vmatprep.mubr.bf16.mxu0 0
        %2935 = vmatmul.mubr.bf16.gmra.mrb[0].mxu0 %v2836
        %v2936 = vpop.f32.mrb[0].mxu0
        %v2937 = vadd.f32 0.0, %v2936
        %v2938 = vpop.f32.mrb[0].mxu0
        %v2939 = vpop.f32.mrb[0].mxu0
        %v2940 = vadd.f32 0.0, %v2939
        %v2941 = vpop.f32.mrb[0].mxu0
        %2942 = vdwg.mxu0
        %v2959 = vunpack.c.l.b16 %v2818
        %v2960 = vunpack.c.l.b16 %v2819
        %v2961 = vunpack.c.l.b16 %v2820
        %v2962 = vunpack.c.l.b16 %v2821
        %v2963 = vunpack.c.l.b16 %v2822
        %v2964 = vunpack.c.l.b16 %v2823
        %v2965 = vunpack.c.l.b16 %v2824
        %v2966 = vunpack.c.l.b16 %v2825
        %v2967 = vunpack.c.l.b16 %v2826
        %v2968 = vunpack.c.l.b16 %v2827
        %v2969 = vunpack.c.l.b16 %v2828
        %v2970 = vunpack.c.l.b16 %v2829
        %v2971 = vunpack.c.l.b16 %v2830
        %v2972 = vunpack.c.l.b16 %v2831
        %v2973 = vunpack.c.l.b16 %v2832
        %v2974 = vunpack.c.l.b16 %v2833
        %v2975 = vpack.c.b16 %v2960, %v2959
        %v2976 = vpack.c.b16 %v2962, %v2961
        %v2977 = vpack.c.b16 %v2964, %v2963
        %v2978 = vpack.c.b16 %v2966, %v2965
        %v2979 = vpack.c.b16 %v2968, %v2967
        %v2980 = vpack.c.b16 %v2970, %v2969
        %v2981 = vpack.c.b16 %v2972, %v2971
        %v2982 = vpack.c.b16 %v2974, %v2973
        %2991 = vmatprep.subr.bf16.mxu0 0
        %2992 = vmatpush1.bf16.msra.mxu0 %v2975
        %2993 = vmatprep.subr.bf16.mxu0 0
        %2994 = vmatpush1.bf16.msra.mxu0 %v2976
        %2995 = vmatprep.subr.bf16.mxu0 0
        %2996 = vmatpush1.bf16.msra.mxu0 %v2977
        %2997 = vmatprep.subr.bf16.mxu0 0
        %2998 = vmatpush1.bf16.msra.mxu0 %v2978
        %2999 = vmatprep.subr.bf16.mxu0 0
        %3000 = vmatpush1.bf16.msra.mxu0 %v2979
        %3001 = vmatprep.subr.bf16.mxu0 0
        %3002 = vmatpush1.bf16.msra.mxu0 %v2980
        %3003 = vmatprep.subr.bf16.mxu0 0
        %3004 = vmatpush1.bf16.msra.mxu0 %v2981
        %3005 = vmatprep.subr.bf16.mxu0 0
        %3006 = vmatpush1.bf16.msra.mxu0 %v2982
        %3007 = vmatprep.subr.bf16.mxu0 0
        %3008 = vmatpush1.bf16.msra.mxu0 0
        %3009 = vmatprep.subr.bf16.mxu0 0
        %3010 = vmatpush1.bf16.msra.mxu0 0
        %3011 = vmatprep.subr.bf16.mxu0 0
        %3012 = vmatpush1.bf16.msra.mxu0 0
        %3013 = vmatprep.subr.bf16.mxu0 0
        %3014 = vmatpush1.bf16.msra.mxu0 0
        %3015 = vmatprep.subr.bf16.mxu0 0
        %3016 = vmatpush1.bf16.msra.mxu0 0
        %3017 = vmatprep.subr.bf16.mxu0 0
        %3018 = vmatpush1.bf16.msra.mxu0 0
        %3019 = vmatprep.subr.bf16.mxu0 0
        %3020 = vmatpush1.bf16.msra.mxu0 0
        %3021 = vmatprep.subr.bf16.mxu0 0
        %3022 = vmatpush1.bf16.msra.mxu0 0
        %3023 = vmatprep.mubr.bf16.mxu0 0
        %3024 = vmatmul.mubr.bf16.gmra.mrb[0].mxu0 %v2817
        %v3025 = vpop.f32.mrb[0].mxu0
        %v3026 = vadd.f32 %v2937, %v3025
        %v3027 = vpop.f32.mrb[0].mxu0
        %v3028 = vpop.f32.mrb[0].mxu0
        %v3029 = vadd.f32 %v2940, %v3028
        %v3030 = vpop.f32.mrb[0].mxu0
        %3031 = vdwg.mxu0
        %v3032 = vld [vmem:[#allocation2 + $0x8] sm:$0xff]
        %v3033 = vld [vmem:[#allocation2 + $0x10] sm:$0xff]
        %v3034 = vpack.c.bf16 %v3033, %v3032
        %s3035 = scalar_lea.vmem %s7, 128
        %v3036 = vld [vmem:[%s3035] sm:$0xf]
        %v3037 = vld [vmem:[%s3035 + $0x4] sm:$0xf]
        %v3038 = vld [vmem:[%s3035 + $0x8] sm:$0xf]
        %v3039 = vld [vmem:[%s3035 + $0xc] sm:$0xf]
        %v3040 = vld [vmem:[%s3035 + $0x10] sm:$0xf]
        %v3041 = vld [vmem:[%s3035 + $0x14] sm:$0xf]
        %v3042 = vld [vmem:[%s3035 + $0x18] sm:$0xf]
        %v3043 = vld [vmem:[%s3035 + $0x1c] sm:$0xf]
        %v3044 = vld [vmem:[%s3035 + $0x20] sm:$0xf]
        %v3045 = vld [vmem:[%s3035 + $0x24] sm:$0xf]
        %v3046 = vld [vmem:[%s3035 + $0x28] sm:$0xf]
        %v3047 = vld [vmem:[%s3035 + $0x2c] sm:$0xf]
        %v3048 = vld [vmem:[%s3035 + $0x30] sm:$0xf]
        %v3049 = vld [vmem:[%s3035 + $0x34] sm:$0xf]
        %v3050 = vld [vmem:[%s3035 + $0x38] sm:$0xf]
        %v3051 = vld [vmem:[%s3035 + $0x3c] sm:$0xf]
        %v3068 = vunpack.c.l.b16 %v3036
        %v3069 = vunpack.c.l.b16 %v3037
        %v3070 = vunpack.c.l.b16 %v3038
        %v3071 = vunpack.c.l.b16 %v3039
        %v3072 = vunpack.c.l.b16 %v3040
        %v3073 = vunpack.c.l.b16 %v3041
        %v3074 = vunpack.c.l.b16 %v3042
        %v3075 = vunpack.c.l.b16 %v3043
        %v3076 = vunpack.c.l.b16 %v3044
        %v3077 = vunpack.c.l.b16 %v3045
        %v3078 = vunpack.c.l.b16 %v3046
        %v3079 = vunpack.c.l.b16 %v3047
        %v3080 = vunpack.c.l.b16 %v3048
        %v3081 = vunpack.c.l.b16 %v3049
        %v3082 = vunpack.c.l.b16 %v3050
        %v3083 = vunpack.c.l.b16 %v3051
        %v3084 = vpack.c.b16 %v3069, %v3068
        %v3085 = vpack.c.b16 %v3071, %v3070
        %v3086 = vpack.c.b16 %v3073, %v3072
        %v3087 = vpack.c.b16 %v3075, %v3074
        %v3088 = vpack.c.b16 %v3077, %v3076
        %v3089 = vpack.c.b16 %v3079, %v3078
        %v3090 = vpack.c.b16 %v3081, %v3080
        %v3091 = vpack.c.b16 %v3083, %v3082
        %3100 = vmatprep.subr.bf16.mxu0 0
        %3101 = vmatpush1.bf16.msra.mxu0 %v3084
        %3102 = vmatprep.subr.bf16.mxu0 0
        %3103 = vmatpush1.bf16.msra.mxu0 %v3085
        %3104 = vmatprep.subr.bf16.mxu0 0
        %3105 = vmatpush1.bf16.msra.mxu0 %v3086
        %3106 = vmatprep.subr.bf16.mxu0 0
        %3107 = vmatpush1.bf16.msra.mxu0 %v3087
        %3108 = vmatprep.subr.bf16.mxu0 0
        %3109 = vmatpush1.bf16.msra.mxu0 %v3088
        %3110 = vmatprep.subr.bf16.mxu0 0
        %3111 = vmatpush1.bf16.msra.mxu0 %v3089
        %3112 = vmatprep.subr.bf16.mxu0 0
        %3113 = vmatpush1.bf16.msra.mxu0 %v3090
        %3114 = vmatprep.subr.bf16.mxu0 0
        %3115 = vmatpush1.bf16.msra.mxu0 %v3091
        %3116 = vmatprep.subr.bf16.mxu0 0
        %3117 = vmatpush1.bf16.msra.mxu0 0
        %3118 = vmatprep.subr.bf16.mxu0 0
        %3119 = vmatpush1.bf16.msra.mxu0 0
        %3120 = vmatprep.subr.bf16.mxu0 0
        %3121 = vmatpush1.bf16.msra.mxu0 0
        %3122 = vmatprep.subr.bf16.mxu0 0
        %3123 = vmatpush1.bf16.msra.mxu0 0
        %3124 = vmatprep.subr.bf16.mxu0 0
        %3125 = vmatpush1.bf16.msra.mxu0 0
        %3126 = vmatprep.subr.bf16.mxu0 0
        %3127 = vmatpush1.bf16.msra.mxu0 0
        %3128 = vmatprep.subr.bf16.mxu0 0
        %3129 = vmatpush1.bf16.msra.mxu0 0
        %3130 = vmatprep.subr.bf16.mxu0 0
        %3131 = vmatpush1.bf16.msra.mxu0 0
        %3132 = vmatprep.mubr.bf16.mxu0 0
        %3133 = vmatmul.mubr.bf16.gmra.mrb[0].mxu0 %v3034
        %v3134 = vpop.f32.mrb[0].mxu0
        %v3135 = vadd.f32 0.0, %v3134
        %v3136 = vpop.f32.mrb[0].mxu0
        %v3137 = vpop.f32.mrb[0].mxu0
        %v3138 = vadd.f32 0.0, %v3137
        %v3139 = vpop.f32.mrb[0].mxu0
        %3140 = vdwg.mxu0
        %v3141 = vadd.f32 %v3026, %v3135
        %v3142 = vadd.f32 %v3029, %v3138
        %v3143 = vld [vmem:[#allocation2 + $0x9] sm:$0xff]
        %v3144 = vld [vmem:[#allocation2 + $0x11] sm:$0xff]
        %v3145 = vpack.c.bf16 %v3144, %v3143
        %s3146 = scalar_lea.vmem %s7, 192
        %v3147 = vld [vmem:[%s3146] sm:$0xf]
        %v3148 = vld [vmem:[%s3146 + $0x4] sm:$0xf]
        %v3149 = vld [vmem:[%s3146 + $0x8] sm:$0xf]
        %v3150 = vld [vmem:[%s3146 + $0xc] sm:$0xf]
        %v3151 = vld [vmem:[%s3146 + $0x10] sm:$0xf]
        %v3152 = vld [vmem:[%s3146 + $0x14] sm:$0xf]
        %v3153 = vld [vmem:[%s3146 + $0x18] sm:$0xf]
        %v3154 = vld [vmem:[%s3146 + $0x1c] sm:$0xf]
        %v3155 = vld [vmem:[%s3146 + $0x20] sm:$0xf]
        %v3156 = vld [vmem:[%s3146 + $0x24] sm:$0xf]
        %v3157 = vld [vmem:[%s3146 + $0x28] sm:$0xf]
        %v3158 = vld [vmem:[%s3146 + $0x2c] sm:$0xf]
        %v3159 = vld [vmem:[%s3146 + $0x30] sm:$0xf]
        %v3160 = vld [vmem:[%s3146 + $0x34] sm:$0xf]
        %v3161 = vld [vmem:[%s3146 + $0x38] sm:$0xf]
        %v3162 = vld [vmem:[%s3146 + $0x3c] sm:$0xf]
        %v3179 = vunpack.c.l.b16 %v3147
        %v3180 = vunpack.c.l.b16 %v3148
        %v3181 = vunpack.c.l.b16 %v3149
        %v3182 = vunpack.c.l.b16 %v3150
        %v3183 = vunpack.c.l.b16 %v3151
        %v3184 = vunpack.c.l.b16 %v3152
        %v3185 = vunpack.c.l.b16 %v3153
        %v3186 = vunpack.c.l.b16 %v3154
        %v3187 = vunpack.c.l.b16 %v3155
        %v3188 = vunpack.c.l.b16 %v3156
        %v3189 = vunpack.c.l.b16 %v3157
        %v3190 = vunpack.c.l.b16 %v3158
        %v3191 = vunpack.c.l.b16 %v3159
        %v3192 = vunpack.c.l.b16 %v3160
        %v3193 = vunpack.c.l.b16 %v3161
        %v3194 = vunpack.c.l.b16 %v3162
        %v3195 = vpack.c.b16 %v3180, %v3179
        %v3196 = vpack.c.b16 %v3182, %v3181
        %v3197 = vpack.c.b16 %v3184, %v3183
        %v3198 = vpack.c.b16 %v3186, %v3185
        %v3199 = vpack.c.b16 %v3188, %v3187
        %v3200 = vpack.c.b16 %v3190, %v3189
        %v3201 = vpack.c.b16 %v3192, %v3191
        %v3202 = vpack.c.b16 %v3194, %v3193
        %3211 = vmatprep.subr.bf16.mxu0 0
        %3212 = vmatpush1.bf16.msra.mxu0 %v3195
        %3213 = vmatprep.subr.bf16.mxu0 0
        %3214 = vmatpush1.bf16.msra.mxu0 %v3196
        %3215 = vmatprep.subr.bf16.mxu0 0
        %3216 = vmatpush1.bf16.msra.mxu0 %v3197
        %3217 = vmatprep.subr.bf16.mxu0 0
        %3218 = vmatpush1.bf16.msra.mxu0 %v3198
        %3219 = vmatprep.subr.bf16.mxu0 0
        %3220 = vmatpush1.bf16.msra.mxu0 %v3199
        %3221 = vmatprep.subr.bf16.mxu0 0
        %3222 = vmatpush1.bf16.msra.mxu0 %v3200
        %3223 = vmatprep.subr.bf16.mxu0 0
        %3224 = vmatpush1.bf16.msra.mxu0 %v3201
        %3225 = vmatprep.subr.bf16.mxu0 0
        %3226 = vmatpush1.bf16.msra.mxu0 %v3202
        %3227 = vmatprep.subr.bf16.mxu0 0
        %3228 = vmatpush1.bf16.msra.mxu0 0
        %3229 = vmatprep.subr.bf16.mxu0 0
        %3230 = vmatpush1.bf16.msra.mxu0 0
        %3231 = vmatprep.subr.bf16.mxu0 0
        %3232 = vmatpush1.bf16.msra.mxu0 0
        %3233 = vmatprep.subr.bf16.mxu0 0
        %3234 = vmatpush1.bf16.msra.mxu0 0
        %3235 = vmatprep.subr.bf16.mxu0 0
        %3236 = vmatpush1.bf16.msra.mxu0 0
        %3237 = vmatprep.subr.bf16.mxu0 0
        %3238 = vmatpush1.bf16.msra.mxu0 0
        %3239 = vmatprep.subr.bf16.mxu0 0
        %3240 = vmatpush1.bf16.msra.mxu0 0
        %3241 = vmatprep.subr.bf16.mxu0 0
        %3242 = vmatpush1.bf16.msra.mxu0 0
        %3243 = vmatprep.mubr.bf16.mxu0 0
        %3244 = vmatmul.mubr.bf16.gmra.mrb[0].mxu0 %v3145
        %v3245 = vpop.f32.mrb[0].mxu0
        %v3246 = vadd.f32 0.0, %v3245
        %v3247 = vpop.f32.mrb[0].mxu0
        %v3248 = vpop.f32.mrb[0].mxu0
        %v3249 = vadd.f32 0.0, %v3248
        %v3250 = vpop.f32.mrb[0].mxu0
        %3251 = vdwg.mxu0
        %v3252 = vadd.f32 %v3141, %v3246
        %v3253 = vadd.f32 %v3142, %v3249
        %v3254 = vld [vmem:[#allocation2 + $0xa] sm:$0xff]
        %v3255 = vld [vmem:[#allocation2 + $0x12] sm:$0xff]
        %v3256 = vpack.c.bf16 %v3255, %v3254
        %s3257 = scalar_lea.vmem %s7, 256
        %v3258 = vld [vmem:[%s3257] sm:$0xf]
        %v3259 = vld [vmem:[%s3257 + $0x4] sm:$0xf]
        %v3260 = vld [vmem:[%s3257 + $0x8] sm:$0xf]
        %v3261 = vld [vmem:[%s3257 + $0xc] sm:$0xf]
        %v3262 = vld [vmem:[%s3257 + $0x10] sm:$0xf]
        %v3263 = vld [vmem:[%s3257 + $0x14] sm:$0xf]
        %v3264 = vld [vmem:[%s3257 + $0x18] sm:$0xf]
        %v3265 = vld [vmem:[%s3257 + $0x1c] sm:$0xf]
        %v3266 = vld [vmem:[%s3257 + $0x20] sm:$0xf]
        %v3267 = vld [vmem:[%s3257 + $0x24] sm:$0xf]
        %v3268 = vld [vmem:[%s3257 + $0x28] sm:$0xf]
        %v3269 = vld [vmem:[%s3257 + $0x2c] sm:$0xf]
        %v3270 = vld [vmem:[%s3257 + $0x30] sm:$0xf]
        %v3271 = vld [vmem:[%s3257 + $0x34] sm:$0xf]
        %v3272 = vld [vmem:[%s3257 + $0x38] sm:$0xf]
        %v3273 = vld [vmem:[%s3257 + $0x3c] sm:$0xf]
        %v3290 = vunpack.c.l.b16 %v3258
        %v3291 = vunpack.c.l.b16 %v3259
        %v3292 = vunpack.c.l.b16 %v3260
        %v3293 = vunpack.c.l.b16 %v3261
        %v3294 = vunpack.c.l.b16 %v3262
        %v3295 = vunpack.c.l.b16 %v3263
        %v3296 = vunpack.c.l.b16 %v3264
        %v3297 = vunpack.c.l.b16 %v3265
        %v3298 = vunpack.c.l.b16 %v3266
        %v3299 = vunpack.c.l.b16 %v3267
        %v3300 = vunpack.c.l.b16 %v3268
        %v3301 = vunpack.c.l.b16 %v3269
        %v3302 = vunpack.c.l.b16 %v3270
        %v3303 = vunpack.c.l.b16 %v3271
        %v3304 = vunpack.c.l.b16 %v3272
        %v3305 = vunpack.c.l.b16 %v3273
        %v3306 = vpack.c.b16 %v3291, %v3290
        %v3307 = vpack.c.b16 %v3293, %v3292
        %v3308 = vpack.c.b16 %v3295, %v3294
        %v3309 = vpack.c.b16 %v3297, %v3296
        %v3310 = vpack.c.b16 %v3299, %v3298
        %v3311 = vpack.c.b16 %v3301, %v3300
        %v3312 = vpack.c.b16 %v3303, %v3302
        %v3313 = vpack.c.b16 %v3305, %v3304
        %3322 = vmatprep.subr.bf16.mxu0 0
        %3323 = vmatpush1.bf16.msra.mxu0 %v3306
        %3324 = vmatprep.subr.bf16.mxu0 0
        %3325 = vmatpush1.bf16.msra.mxu0 %v3307
        %3326 = vmatprep.subr.bf16.mxu0 0
        %3327 = vmatpush1.bf16.msra.mxu0 %v3308
        %3328 = vmatprep.subr.bf16.mxu0 0
        %3329 = vmatpush1.bf16.msra.mxu0 %v3309
        %3330 = vmatprep.subr.bf16.mxu0 0
        %3331 = vmatpush1.bf16.msra.mxu0 %v3310
        %3332 = vmatprep.subr.bf16.mxu0 0
        %3333 = vmatpush1.bf16.msra.mxu0 %v3311
        %3334 = vmatprep.subr.bf16.mxu0 0
        %3335 = vmatpush1.bf16.msra.mxu0 %v3312
        %3336 = vmatprep.subr.bf16.mxu0 0
        %3337 = vmatpush1.bf16.msra.mxu0 %v3313
        %3338 = vmatprep.subr.bf16.mxu0 0
        %3339 = vmatpush1.bf16.msra.mxu0 0
        %3340 = vmatprep.subr.bf16.mxu0 0
        %3341 = vmatpush1.bf16.msra.mxu0 0
        %3342 = vmatprep.subr.bf16.mxu0 0
        %3343 = vmatpush1.bf16.msra.mxu0 0
        %3344 = vmatprep.subr.bf16.mxu0 0
        %3345 = vmatpush1.bf16.msra.mxu0 0
        %3346 = vmatprep.subr.bf16.mxu0 0
        %3347 = vmatpush1.bf16.msra.mxu0 0
        %3348 = vmatprep.subr.bf16.mxu0 0
        %3349 = vmatpush1.bf16.msra.mxu0 0
        %3350 = vmatprep.subr.bf16.mxu0 0
        %3351 = vmatpush1.bf16.msra.mxu0 0
        %3352 = vmatprep.subr.bf16.mxu0 0
        %3353 = vmatpush1.bf16.msra.mxu0 0
        %3354 = vmatprep.mubr.bf16.mxu0 0
        %3355 = vmatmul.mubr.bf16.gmra.mrb[0].mxu0 %v3256
        %v3356 = vpop.f32.mrb[0].mxu0
        %v3357 = vadd.f32 0.0, %v3356
        %v3358 = vpop.f32.mrb[0].mxu0
        %v3359 = vpop.f32.mrb[0].mxu0
        %v3360 = vadd.f32 0.0, %v3359
        %v3361 = vpop.f32.mrb[0].mxu0
        %3362 = vdwg.mxu0
        %v3363 = vadd.f32 %v3252, %v3357
        %v3364 = vadd.f32 %v3253, %v3360
        %v3365 = vlaneseq
        %v3366 = vshrl.u32 %v3365, 7
        %v3367 = vsub.s32 0, %v3366
        %v3368 = vrot.slane %v2811, %v3367
        %v3369 = vmul.f32 %v3363, %v3368
        %v3370 = vmul.f32 %v3364, %v3368
        %v3371 = vlaneseq
        %v3372 = vshrl.u32 %v3371, 7
        %v3373 = vsub.s32 0, %v3372
        %v3374 = vrot.slane %v2812, %v3373
        %v3375 = vadd.f32 %v3369, %v3374
        %v3376 = vadd.f32 %v3370, %v3374
        %v3377 = vld [vmem:[%s9 + $0xe] sm:$0x1]
        %v3378 = vld [vmem:[%s9 + $0xf] sm:$0x1]
        %v3379 = vld [vmem:[%s8] sm:$0xf]
        %v3380 = vld [vmem:[%s8 + $0x4] sm:$0xf]
        %v3381 = vld [vmem:[%s8 + $0x8] sm:$0xf]
        %v3382 = vld [vmem:[%s8 + $0xc] sm:$0xf]
        %v3383 = vld [vmem:[%s8 + $0x10] sm:$0xf]
        %v3384 = vld [vmem:[%s8 + $0x14] sm:$0xf]
        %v3385 = vld [vmem:[%s8 + $0x18] sm:$0xf]
        %v3386 = vld [vmem:[%s8 + $0x1c] sm:$0xf]
        %v3387 = vld [vmem:[%s8 + $0x20] sm:$0xf]
        %v3388 = vld [vmem:[%s8 + $0x24] sm:$0xf]
        %v3389 = vld [vmem:[%s8 + $0x28] sm:$0xf]
        %v3390 = vld [vmem:[%s8 + $0x2c] sm:$0xf]
        %v3391 = vld [vmem:[%s8 + $0x30] sm:$0xf]
        %v3392 = vld [vmem:[%s8 + $0x34] sm:$0xf]
        %v3393 = vld [vmem:[%s8 + $0x38] sm:$0xf]
        %v3394 = vld [vmem:[%s8 + $0x3c] sm:$0xf]
        %v3411 = vunpack.c.l.b16 %v3379
        %v3412 = vunpack.c.l.b16 %v3380
        %v3413 = vunpack.c.l.b16 %v3381
        %v3414 = vunpack.c.l.b16 %v3382
        %v3415 = vunpack.c.l.b16 %v3383
        %v3416 = vunpack.c.l.b16 %v3384
        %v3417 = vunpack.c.l.b16 %v3385
        %v3418 = vunpack.c.l.b16 %v3386
        %v3419 = vunpack.c.l.b16 %v3387
        %v3420 = vunpack.c.l.b16 %v3388
        %v3421 = vunpack.c.l.b16 %v3389
        %v3422 = vunpack.c.l.b16 %v3390
        %v3423 = vunpack.c.l.b16 %v3391
        %v3424 = vunpack.c.l.b16 %v3392
        %v3425 = vunpack.c.l.b16 %v3393
        %v3426 = vunpack.c.l.b16 %v3394
        %v3427 = vpack.c.b16 %v3412, %v3411
        %v3428 = vpack.c.b16 %v3414, %v3413
        %v3429 = vpack.c.b16 %v3416, %v3415
        %v3430 = vpack.c.b16 %v3418, %v3417
        %v3431 = vpack.c.b16 %v3420, %v3419
        %v3432 = vpack.c.b16 %v3422, %v3421
        %v3433 = vpack.c.b16 %v3424, %v3423
        %v3434 = vpack.c.b16 %v3426, %v3425
        %3443 = vmatprep.subr.bf16.mxu0 0
        %3444 = vmatpush1.bf16.msra.mxu0 %v3427
        %3445 = vmatprep.subr.bf16.mxu0 0
        %3446 = vmatpush1.bf16.msra.mxu0 %v3428
        %3447 = vmatprep.subr.bf16.mxu0 0
        %3448 = vmatpush1.bf16.msra.mxu0 %v3429
        %3449 = vmatprep.subr.bf16.mxu0 0
        %3450 = vmatpush1.bf16.msra.mxu0 %v3430
        %3451 = vmatprep.subr.bf16.mxu0 0
        %3452 = vmatpush1.bf16.msra.mxu0 %v3431
        %3453 = vmatprep.subr.bf16.mxu0 0
        %3454 = vmatpush1.bf16.msra.mxu0 %v3432
        %3455 = vmatprep.subr.bf16.mxu0 0
        %3456 = vmatpush1.bf16.msra.mxu0 %v3433
        %3457 = vmatprep.subr.bf16.mxu0 0
        %3458 = vmatpush1.bf16.msra.mxu0 %v3434
        %3459 = vmatprep.subr.bf16.mxu0 0
        %3460 = vmatpush1.bf16.msra.mxu0 0
        %3461 = vmatprep.subr.bf16.mxu0 0
        %3462 = vmatpush1.bf16.msra.mxu0 0
        %3463 = vmatprep.subr.bf16.mxu0 0
        %3464 = vmatpush1.bf16.msra.mxu0 0
        %3465 = vmatprep.subr.bf16.mxu0 0
        %3466 = vmatpush1.bf16.msra.mxu0 0
        %3467 = vmatprep.subr.bf16.mxu0 0
        %3468 = vmatpush1.bf16.msra.mxu0 0
        %3469 = vmatprep.subr.bf16.mxu0 0
        %3470 = vmatpush1.bf16.msra.mxu0 0
        %3471 = vmatprep.subr.bf16.mxu0 0
        %3472 = vmatpush1.bf16.msra.mxu0 0
        %3473 = vmatprep.subr.bf16.mxu0 0
        %3474 = vmatpush1.bf16.msra.mxu0 0
        %3475 = vmatprep.mubr.bf16.mxu0 0
        %3476 = vmatmul.mubr.bf16.gmra.mrb[0].mxu0 %v2242
        %v3477 = vpop.f32.mrb[0].mxu0
        %v3478 = vadd.f32 0.0, %v3477
        %v3479 = vpop.f32.mrb[0].mxu0
        %v3480 = vpop.f32.mrb[0].mxu0
        %v3481 = vadd.f32 0.0, %v3480
        %v3482 = vpop.f32.mrb[0].mxu0
        %3483 = vdwg.mxu0
        %v3484 = vlaneseq
        %v3485 = vshrl.u32 %v3484, 7
        %v3486 = vsub.s32 0, %v3485
        %v3487 = vrot.slane %v3377, %v3486
        %v3488 = vmul.f32 %v3478, %v3487
        %v3489 = vmul.f32 %v3481, %v3487
        %v3490 = vlaneseq
        %v3491 = vshrl.u32 %v3490, 7
        %v3492 = vsub.s32 0, %v3491
        %v3493 = vrot.slane %v3378, %v3492
        %v3494 = vadd.f32 %v3488, %v3493
        %v3495 = vadd.f32 %v3489, %v3493
        %v3496 = vadd.f32 %v3375, %v3494
        %v3497 = vadd.f32 %v3376, %v3495
        %v3498 = vtanh.pop %v3496
        %v3499 = vtanh.pop %v3497
        %v3500 = vpack.c.bf16 %v3499, %v3498
        %s3501 = scalar_lea.vmem %s10, 64
        %v3502 = vld [vmem:[%s3501] sm:$0xf]
        %v3503 = vld [vmem:[%s3501 + $0x4] sm:$0xf]
        %v3504 = vld [vmem:[%s3501 + $0x8] sm:$0xf]
        %v3505 = vld [vmem:[%s3501 + $0xc] sm:$0xf]
        %v3506 = vld [vmem:[%s3501 + $0x10] sm:$0xf]
        %v3507 = vld [vmem:[%s3501 + $0x14] sm:$0xf]
        %v3508 = vld [vmem:[%s3501 + $0x18] sm:$0xf]
        %v3509 = vld [vmem:[%s3501 + $0x1c] sm:$0xf]
        %v3510 = vld [vmem:[%s3501 + $0x20] sm:$0xf]
        %v3511 = vld [vmem:[%s3501 + $0x24] sm:$0xf]
        %v3512 = vld [vmem:[%s3501 + $0x28] sm:$0xf]
        %v3513 = vld [vmem:[%s3501 + $0x2c] sm:$0xf]
        %v3514 = vld [vmem:[%s3501 + $0x30] sm:$0xf]
        %v3515 = vld [vmem:[%s3501 + $0x34] sm:$0xf]
        %v3516 = vld [vmem:[%s3501 + $0x38] sm:$0xf]
        %v3517 = vld [vmem:[%s3501 + $0x3c] sm:$0xf]
        %v3534 = vunpack.c.l.b16 %v3502
        %v3535 = vunpack.c.l.b16 %v3503
        %v3536 = vunpack.c.l.b16 %v3504
        %v3537 = vunpack.c.l.b16 %v3505
        %v3538 = vunpack.c.l.b16 %v3506
        %v3539 = vunpack.c.l.b16 %v3507
        %v3540 = vunpack.c.l.b16 %v3508
        %v3541 = vunpack.c.l.b16 %v3509
        %v3542 = vunpack.c.l.b16 %v3510
        %v3543 = vunpack.c.l.b16 %v3511
        %v3544 = vunpack.c.l.b16 %v3512
        %v3545 = vunpack.c.l.b16 %v3513
        %v3546 = vunpack.c.l.b16 %v3514
        %v3547 = vunpack.c.l.b16 %v3515
        %v3548 = vunpack.c.l.b16 %v3516
        %v3549 = vunpack.c.l.b16 %v3517
        %v3550 = vpack.c.b16 %v3535, %v3534
        %v3551 = vpack.c.b16 %v3537, %v3536
        %v3552 = vpack.c.b16 %v3539, %v3538
        %v3553 = vpack.c.b16 %v3541, %v3540
        %v3554 = vpack.c.b16 %v3543, %v3542
        %v3555 = vpack.c.b16 %v3545, %v3544
        %v3556 = vpack.c.b16 %v3547, %v3546
        %v3557 = vpack.c.b16 %v3549, %v3548
        %3566 = vmatprep.subr.bf16.mxu0 0
        %3567 = vmatpush1.bf16.msra.mxu0 %v3550
        %3568 = vmatprep.subr.bf16.mxu0 0
        %3569 = vmatpush1.bf16.msra.mxu0 %v3551
        %3570 = vmatprep.subr.bf16.mxu0 0
        %3571 = vmatpush1.bf16.msra.mxu0 %v3552
        %3572 = vmatprep.subr.bf16.mxu0 0
        %3573 = vmatpush1.bf16.msra.mxu0 %v3553
        %3574 = vmatprep.subr.bf16.mxu0 0
        %3575 = vmatpush1.bf16.msra.mxu0 %v3554
        %3576 = vmatprep.subr.bf16.mxu0 0
        %3577 = vmatpush1.bf16.msra.mxu0 %v3555
        %3578 = vmatprep.subr.bf16.mxu0 0
        %3579 = vmatpush1.bf16.msra.mxu0 %v3556
        %3580 = vmatprep.subr.bf16.mxu0 0
        %3581 = vmatpush1.bf16.msra.mxu0 %v3557
        %3582 = vmatprep.subr.bf16.mxu0 0
        %3583 = vmatpush1.bf16.msra.mxu0 0
        %3584 = vmatprep.subr.bf16.mxu0 0
        %3585 = vmatpush1.bf16.msra.mxu0 0
        %3586 = vmatprep.subr.bf16.mxu0 0
        %3587 = vmatpush1.bf16.msra.mxu0 0
        %3588 = vmatprep.subr.bf16.mxu0 0
        %3589 = vmatpush1.bf16.msra.mxu0 0
        %3590 = vmatprep.subr.bf16.mxu0 0
        %3591 = vmatpush1.bf16.msra.mxu0 0
        %3592 = vmatprep.subr.bf16.mxu0 0
        %3593 = vmatpush1.bf16.msra.mxu0 0
        %3594 = vmatprep.subr.bf16.mxu0 0
        %3595 = vmatpush1.bf16.msra.mxu0 0
        %3596 = vmatprep.subr.bf16.mxu0 0
        %3597 = vmatpush1.bf16.msra.mxu0 0
        %3598 = vmatprep.mubr.bf16.mxu0 0
        %3599 = vmatmul.mubr.bf16.gmra.mrb[0].mxu0 %v3500
        %v3600 = vpop.f32.mrb[0].mxu0
        %v3601 = vadd.f32 0.0, %v3600
        %v3602 = vpop.f32.mrb[0].mxu0
        %v3603 = vpop.f32.mrb[0].mxu0
        %v3604 = vadd.f32 0.0, %v3603
        %v3605 = vpop.f32.mrb[0].mxu0
        %3606 = vdwg.mxu0
        %v3623 = vunpack.c.l.b16 %v1658
        %v3624 = vunpack.c.l.b16 %v1659
        %v3625 = vunpack.c.l.b16 %v1660
        %v3626 = vunpack.c.l.b16 %v1661
        %v3627 = vunpack.c.l.b16 %v1662
        %v3628 = vunpack.c.l.b16 %v1663
        %v3629 = vunpack.c.l.b16 %v1664
        %v3630 = vunpack.c.l.b16 %v1665
        %v3631 = vunpack.c.l.b16 %v1666
        %v3632 = vunpack.c.l.b16 %v1667
        %v3633 = vunpack.c.l.b16 %v1668
        %v3634 = vunpack.c.l.b16 %v1669
        %v3635 = vunpack.c.l.b16 %v1670
        %v3636 = vunpack.c.l.b16 %v1671
        %v3637 = vunpack.c.l.b16 %v1672
        %v3638 = vunpack.c.l.b16 %v1673
        %v3639 = vpack.c.b16 %v3624, %v3623
        %v3640 = vpack.c.b16 %v3626, %v3625
        %v3641 = vpack.c.b16 %v3628, %v3627
        %v3642 = vpack.c.b16 %v3630, %v3629
        %v3643 = vpack.c.b16 %v3632, %v3631
        %v3644 = vpack.c.b16 %v3634, %v3633
        %v3645 = vpack.c.b16 %v3636, %v3635
        %v3646 = vpack.c.b16 %v3638, %v3637
        %3655 = vmatprep.subr.bf16.mxu0 0
        %3656 = vmatpush1.bf16.msra.mxu0 %v3639
        %3657 = vmatprep.subr.bf16.mxu0 0
        %3658 = vmatpush1.bf16.msra.mxu0 %v3640
        %3659 = vmatprep.subr.bf16.mxu0 0
        %3660 = vmatpush1.bf16.msra.mxu0 %v3641
        %3661 = vmatprep.subr.bf16.mxu0 0
        %3662 = vmatpush1.bf16.msra.mxu0 %v3642
        %3663 = vmatprep.subr.bf16.mxu0 0
        %3664 = vmatpush1.bf16.msra.mxu0 %v3643
        %3665 = vmatprep.subr.bf16.mxu0 0
        %3666 = vmatpush1.bf16.msra.mxu0 %v3644
        %3667 = vmatprep.subr.bf16.mxu0 0
        %3668 = vmatpush1.bf16.msra.mxu0 %v3645
        %3669 = vmatprep.subr.bf16.mxu0 0
        %3670 = vmatpush1.bf16.msra.mxu0 %v3646
        %3671 = vmatprep.subr.bf16.mxu0 0
        %3672 = vmatpush1.bf16.msra.mxu0 0
        %3673 = vmatprep.subr.bf16.mxu0 0
        %3674 = vmatpush1.bf16.msra.mxu0 0
        %3675 = vmatprep.subr.bf16.mxu0 0
        %3676 = vmatpush1.bf16.msra.mxu0 0
        %3677 = vmatprep.subr.bf16.mxu0 0
        %3678 = vmatpush1.bf16.msra.mxu0 0
        %3679 = vmatprep.subr.bf16.mxu0 0
        %3680 = vmatpush1.bf16.msra.mxu0 0
        %3681 = vmatprep.subr.bf16.mxu0 0
        %3682 = vmatpush1.bf16.msra.mxu0 0
        %3683 = vmatprep.subr.bf16.mxu0 0
        %3684 = vmatpush1.bf16.msra.mxu0 0
        %3685 = vmatprep.subr.bf16.mxu0 0
        %3686 = vmatpush1.bf16.msra.mxu0 0
        %3687 = vmatprep.mubr.bf16.mxu0 0
        %3688 = vmatmul.mubr.bf16.gmra.mrb[0].mxu0 %v1657
        %v3689 = vpop.f32.mrb[0].mxu0
        %v3690 = vadd.f32 %v3601, %v3689
        %v3691 = vpop.f32.mrb[0].mxu0
        %v3692 = vpop.f32.mrb[0].mxu0
        %v3693 = vadd.f32 %v3604, %v3692
        %v3694 = vpop.f32.mrb[0].mxu0
        %3695 = vdwg.mxu0
        %v3696 = vld [vmem:[%s11] sm:$0x1]
        %v3698 = vlaneseq
        %v3699 = vshrl.u32 %v3698, 7
        %v3700 = vsub.s32 0, %v3699
        %v3701 = vrot.slane %v3696, %v3700
        %v3703 = vadd.f32 %v3690, %v3701
        %v3704 = vadd.f32 %v3693, %v3701
        %v3705 = vtanh.pop %v3703
        %v3706 = vtanh.pop %v3704
        %v3707 = vld [vmem:[%s12] sm:$0x1]
        %v3709 = vlaneseq
        %v3710 = vshrl.u32 %v3709, 7
        %v3711 = vsub.s32 0, %v3710
        %v3712 = vrot.slane %v3707, %v3711
        %v3714 = vmul.f32 %v3705, %v3712
        %v3715 = vmul.f32 %v3706, %v3712
        %3716 = vadd.xlane.f32.xlu0 %v3714
        %v3717 = vpop.xlane.xlu0 %3716
        %3718 = vadd.xlane.f32.xlu0 %v3715
        %v3719 = vpop.xlane.xlu0 %3718
        %v3720 = vmax.f32 %v3717, %v3719
        %v3721 = vrot.slane %v3720, 4
        %v3722 = vmax.f32 %v3720, %v3721
        %v3723 = vrot.slane %v3722, 2
        %v3724 = vmax.f32 %v3722, %v3723
        %v3725 = vrot.slane %v3724, 1
        %v3726 = vmax.f32 %v3724, %v3725
        %v3727 = vsub.f32 %v3717, %v3726
        %v3728 = vsub.f32 %v3719, %v3726
        %v3729 = vmul.f32 %v3727, 1.442695
        %v3730 = vpow.pop %v3729
        %v3731 = vmul.f32 %v3728, 1.442695
        %v3732 = vpow.pop %v3731
        %v3733 = vadd.f32 %v3730, %v3732
        %v3734 = vrot.slane %v3733, 4
        %v3735 = vadd.f32 %v3733, %v3734
        %v3736 = vrot.slane %v3735, 2
        %v3737 = vadd.f32 %v3735, %v3736
        %v3738 = vrot.slane %v3737, 1
        %v3739 = vadd.f32 %v3737, %v3738
        %v3740 = vunpack.c.l.bf16 %v1657
        %v3741 = vunpack.c.h.bf16 %v1657
        %v3742 = vmul.f32 %v3730, %v3740
        %v3743 = vmul.f32 %v3732, %v3741
        %v3744 = vadd.f32 %v3742, %v3743
        %v3745 = vrot.slane %v3744, 4
        %v3746 = vadd.f32 %v3744, %v3745
        %v3747 = vrot.slane %v3746, 2
        %v3748 = vadd.f32 %v3746, %v3747
        %v3749 = vrot.slane %v3748, 1
        %v3750 = vadd.f32 %v3748, %v3749
        %v3751 = vpack.c.bf16 %v3750, %v3750
        %v3752 = vld [vmem:[%s13] sm:$0xf]
        %v3753 = vld [vmem:[%s13 + $0x4] sm:$0xf]
        %v3754 = vld [vmem:[%s13 + $0x8] sm:$0xf]
        %v3755 = vld [vmem:[%s13 + $0xc] sm:$0xf]
        %v3756 = vld [vmem:[%s13 + $0x10] sm:$0xf]
        %v3757 = vld [vmem:[%s13 + $0x14] sm:$0xf]
        %v3758 = vld [vmem:[%s13 + $0x18] sm:$0xf]
        %v3759 = vld [vmem:[%s13 + $0x1c] sm:$0xf]
        %v3760 = vld [vmem:[%s13 + $0x20] sm:$0xf]
        %v3761 = vld [vmem:[%s13 + $0x24] sm:$0xf]
        %v3762 = vld [vmem:[%s13 + $0x28] sm:$0xf]
        %v3763 = vld [vmem:[%s13 + $0x2c] sm:$0xf]
        %v3764 = vld [vmem:[%s13 + $0x30] sm:$0xf]
        %v3765 = vld [vmem:[%s13 + $0x34] sm:$0xf]
        %v3766 = vld [vmem:[%s13 + $0x38] sm:$0xf]
        %v3767 = vld [vmem:[%s13 + $0x3c] sm:$0xf]
        %v3768 = vunpack.c.l.bf16 %v3500
        %v3769 = vunpack.c.h.bf16 %v3500
        %v3770 = vmul.f32 %v3730, %v3768
        %v3771 = vmul.f32 %v3732, %v3769
        %v3772 = vadd.f32 %v3770, %v3771
        %v3773 = vrot.slane %v3772, 4
        %v3774 = vadd.f32 %v3772, %v3773
        %v3775 = vrot.slane %v3774, 2
        %v3776 = vadd.f32 %v3774, %v3775
        %v3777 = vrot.slane %v3776, 1
        %v3778 = vadd.f32 %v3776, %v3777
        %v3779 = vpack.c.bf16 %v3778, %v3778
        %s3780 = scalar_lea.vmem %s13, 64
        %v3781 = vld [vmem:[%s3780] sm:$0xf]
        %v3782 = vld [vmem:[%s3780 + $0x4] sm:$0xf]
        %v3783 = vld [vmem:[%s3780 + $0x8] sm:$0xf]
        %v3784 = vld [vmem:[%s3780 + $0xc] sm:$0xf]
        %v3785 = vld [vmem:[%s3780 + $0x10] sm:$0xf]
        %v3786 = vld [vmem:[%s3780 + $0x14] sm:$0xf]
        %v3787 = vld [vmem:[%s3780 + $0x18] sm:$0xf]
        %v3788 = vld [vmem:[%s3780 + $0x1c] sm:$0xf]
        %v3789 = vld [vmem:[%s3780 + $0x20] sm:$0xf]
        %v3790 = vld [vmem:[%s3780 + $0x24] sm:$0xf]
        %v3791 = vld [vmem:[%s3780 + $0x28] sm:$0xf]
        %v3792 = vld [vmem:[%s3780 + $0x2c] sm:$0xf]
        %v3793 = vld [vmem:[%s3780 + $0x30] sm:$0xf]
        %v3794 = vld [vmem:[%s3780 + $0x34] sm:$0xf]
        %v3795 = vld [vmem:[%s3780 + $0x38] sm:$0xf]
        %v3796 = vld [vmem:[%s3780 + $0x3c] sm:$0xf]
        %v3813 = vunpack.c.l.b16 %v3781
        %v3814 = vunpack.c.l.b16 %v3782
        %v3815 = vunpack.c.l.b16 %v3783
        %v3816 = vunpack.c.l.b16 %v3784
        %v3817 = vunpack.c.l.b16 %v3785
        %v3818 = vunpack.c.l.b16 %v3786
        %v3819 = vunpack.c.l.b16 %v3787
        %v3820 = vunpack.c.l.b16 %v3788
        %v3821 = vunpack.c.l.b16 %v3789
        %v3822 = vunpack.c.l.b16 %v3790
        %v3823 = vunpack.c.l.b16 %v3791
        %v3824 = vunpack.c.l.b16 %v3792
        %v3825 = vunpack.c.l.b16 %v3793
        %v3826 = vunpack.c.l.b16 %v3794
        %v3827 = vunpack.c.l.b16 %v3795
        %v3828 = vunpack.c.l.b16 %v3796
        %v3829 = vpack.c.b16 %v3814, %v3813
        %v3830 = vpack.c.b16 %v3816, %v3815
        %v3831 = vpack.c.b16 %v3818, %v3817
        %v3832 = vpack.c.b16 %v3820, %v3819
        %v3833 = vpack.c.b16 %v3822, %v3821
        %v3834 = vpack.c.b16 %v3824, %v3823
        %v3835 = vpack.c.b16 %v3826, %v3825
        %v3836 = vpack.c.b16 %v3828, %v3827
        %3845 = vmatprep.subr.bf16.mxu0 0
        %3846 = vmatpush1.bf16.msra.mxu0 %v3829
        %3847 = vmatprep.subr.bf16.mxu0 0
        %3848 = vmatpush1.bf16.msra.mxu0 %v3830
        %3849 = vmatprep.subr.bf16.mxu0 0
        %3850 = vmatpush1.bf16.msra.mxu0 %v3831
        %3851 = vmatprep.subr.bf16.mxu0 0
        %3852 = vmatpush1.bf16.msra.mxu0 %v3832
        %3853 = vmatprep.subr.bf16.mxu0 0
        %3854 = vmatpush1.bf16.msra.mxu0 %v3833
        %3855 = vmatprep.subr.bf16.mxu0 0
        %3856 = vmatpush1.bf16.msra.mxu0 %v3834
        %3857 = vmatprep.subr.bf16.mxu0 0
        %3858 = vmatpush1.bf16.msra.mxu0 %v3835
        %3859 = vmatprep.subr.bf16.mxu0 0
        %3860 = vmatpush1.bf16.msra.mxu0 %v3836
        %3861 = vmatprep.subr.bf16.mxu0 0
        %3862 = vmatpush1.bf16.msra.mxu0 0
        %3863 = vmatprep.subr.bf16.mxu0 0
        %3864 = vmatpush1.bf16.msra.mxu0 0
        %3865 = vmatprep.subr.bf16.mxu0 0
        %3866 = vmatpush1.bf16.msra.mxu0 0
        %3867 = vmatprep.subr.bf16.mxu0 0
        %3868 = vmatpush1.bf16.msra.mxu0 0
        %3869 = vmatprep.subr.bf16.mxu0 0
        %3870 = vmatpush1.bf16.msra.mxu0 0
        %3871 = vmatprep.subr.bf16.mxu0 0
        %3872 = vmatpush1.bf16.msra.mxu0 0
        %3873 = vmatprep.subr.bf16.mxu0 0
        %3874 = vmatpush1.bf16.msra.mxu0 0
        %3875 = vmatprep.subr.bf16.mxu0 0
        %3876 = vmatpush1.bf16.msra.mxu0 0
        %3877 = vmatprep.mubr.bf16.mxu0 0
        %3878 = vmatmul.mubr.bf16.gmra.mrb[0].mxu0 %v3779
        %v3879 = vpop.f32.mrb[0].mxu0
        %v3880 = vadd.f32 0.0, %v3879
        %v3881 = vpop.f32.mrb[0].mxu0
        %v3882 = vpop.f32.mrb[0].mxu0
        %v3883 = vpop.f32.mrb[0].mxu0
        %3884 = vdwg.mxu0
        %v3901 = vunpack.c.l.b16 %v3752
        %v3902 = vunpack.c.l.b16 %v3753
        %v3903 = vunpack.c.l.b16 %v3754
        %v3904 = vunpack.c.l.b16 %v3755
        %v3905 = vunpack.c.l.b16 %v3756
        %v3906 = vunpack.c.l.b16 %v3757
        %v3907 = vunpack.c.l.b16 %v3758
        %v3908 = vunpack.c.l.b16 %v3759
        %v3909 = vunpack.c.l.b16 %v3760
        %v3910 = vunpack.c.l.b16 %v3761
        %v3911 = vunpack.c.l.b16 %v3762
        %v3912 = vunpack.c.l.b16 %v3763
        %v3913 = vunpack.c.l.b16 %v3764
        %v3914 = vunpack.c.l.b16 %v3765
        %v3915 = vunpack.c.l.b16 %v3766
        %v3916 = vunpack.c.l.b16 %v3767
        %v3917 = vpack.c.b16 %v3902, %v3901
        %v3918 = vpack.c.b16 %v3904, %v3903
        %v3919 = vpack.c.b16 %v3906, %v3905
        %v3920 = vpack.c.b16 %v3908, %v3907
        %v3921 = vpack.c.b16 %v3910, %v3909
        %v3922 = vpack.c.b16 %v3912, %v3911
        %v3923 = vpack.c.b16 %v3914, %v3913
        %v3924 = vpack.c.b16 %v3916, %v3915
        %3933 = vmatprep.subr.bf16.mxu0 0
        %3934 = vmatpush1.bf16.msra.mxu0 %v3917
        %3935 = vmatprep.subr.bf16.mxu0 0
        %3936 = vmatpush1.bf16.msra.mxu0 %v3918
        %3937 = vmatprep.subr.bf16.mxu0 0
        %3938 = vmatpush1.bf16.msra.mxu0 %v3919
        %3939 = vmatprep.subr.bf16.mxu0 0
        %3940 = vmatpush1.bf16.msra.mxu0 %v3920
        %3941 = vmatprep.subr.bf16.mxu0 0
        %3942 = vmatpush1.bf16.msra.mxu0 %v3921
        %3943 = vmatprep.subr.bf16.mxu0 0
        %3944 = vmatpush1.bf16.msra.mxu0 %v3922
        %3945 = vmatprep.subr.bf16.mxu0 0
        %3946 = vmatpush1.bf16.msra.mxu0 %v3923
        %3947 = vmatprep.subr.bf16.mxu0 0
        %3948 = vmatpush1.bf16.msra.mxu0 %v3924
        %3949 = vmatprep.subr.bf16.mxu0 0
        %3950 = vmatpush1.bf16.msra.mxu0 0
        %3951 = vmatprep.subr.bf16.mxu0 0
        %3952 = vmatpush1.bf16.msra.mxu0 0
        %3953 = vmatprep.subr.bf16.mxu0 0
        %3954 = vmatpush1.bf16.msra.mxu0 0
        %3955 = vmatprep.subr.bf16.mxu0 0
        %3956 = vmatpush1.bf16.msra.mxu0 0
        %3957 = vmatprep.subr.bf16.mxu0 0
        %3958 = vmatpush1.bf16.msra.mxu0 0
        %3959 = vmatprep.subr.bf16.mxu0 0
        %3960 = vmatpush1.bf16.msra.mxu0 0
        %3961 = vmatprep.subr.bf16.mxu0 0
        %3962 = vmatpush1.bf16.msra.mxu0 0
        %3963 = vmatprep.subr.bf16.mxu0 0
        %3964 = vmatpush1.bf16.msra.mxu0 0
        %3965 = vmatprep.mubr.bf16.mxu0 0
        %3966 = vmatmul.mubr.bf16.gmra.mrb[0].mxu0 %v3751
        %v3967 = vpop.f32.mrb[0].mxu0
        %v3968 = vadd.f32 %v3880, %v3967
        %v3969 = vpop.f32.mrb[0].mxu0
        %v3970 = vpop.f32.mrb[0].mxu0
        %v3971 = vpop.f32.mrb[0].mxu0
        %3972 = vdwg.mxu0
        %v3973 = vrcp.pop %v3739
        %v3974 = vmul.f32 %v3968, %v3973
        %v3975 = vld [vmem:[%s14] sm:$0x1]
        %v3976 = vadd.f32 %v3974, %v3975
        %vm3977 = vcmask 8192
        %3978 = vst.msk [vmem:[%s486] sm:$0x1] %vm3977, %v3976
        %s3979 = sand.u32 %s357, 1
        %s3980 = scalar_lea.sflag [#allocation4], %s3979
        %s3981 = sand.u32 %s357, 1
        %s3982 = scalar_lea.vmem [#allocation3], %s3981
        // Predicated region
        $region81: #{flat_model_forward.1} parent=79 // pred_check
          %p3983 = pneg %p367
        $region82: #{flat_model_forward.1} parent=79 // pred_check_branch
          %3985 = sbr.rel (%p3983) target = $region84
        $region83: #{flat_model_forward.1} parent=79 // pred_region
          %s3987 = ssub.s32 16, 16
          %3988 = vsyncadd %s3980, %s3987
          %s3989 = smul.addr %s29, 16
          %s3990 = scalar_lea.hbm %s15, %s3989
          %s3992 = sshll.u32 %s3982, 4
          %s3993 = int_to_ptr.vmem [resolvable:$true] %s3992
          %3995 = dma.vmem_to_hbm [thread:$0]  %s3993, 16, %s3990, %s3980
        $region84: #{flat_model_forward.1} parent=79 // pred_fallthru
          _
      $region80: #{flat_model_forward.1} parent=5 // pred_fallthru
        _
      %p3996 = scmp.le.s32.totalorder 2, %s24
      // Predicated region
      $region85: #{flat_model_forward.1} parent=5 // pred_check
        %p3997 = pneg %p3996
      $region86: #{flat_model_forward.1} parent=5 // pred_check_branch
        %3999 = sbr.rel (%p3997) target = $region88
      $region87: #{flat_model_forward.1} parent=5 // pred_region
        %s4000 = ssub.s32 %s24, 2
        // Predicated region
        $region89: #{flat_model_forward.1} parent=87 // pred_check
          %p4001 = pneg %p373
        $region90: #{flat_model_forward.1} parent=87 // pred_check_branch
          %4003 = sbr.rel (%p4001) target = $region92
        $region91: #{flat_model_forward.1} parent=87 // pred_region
          %s4004 = sand.u32 %s358, 1
          %s4005 = scalar_lea.sflag [#allocation4], %s4004
          %s4006 = sand.u32 %s358, 1
          %s4007 = scalar_lea.vmem [#allocation3], %s4006
          %4008 = dma.done %s4005, 16
        $region92: #{flat_model_forward.1} parent=87 // pred_fallthru
          _
      $region88: #{flat_model_forward.1} parent=5 // pred_fallthru
        _
    $region6: #{flat_model_forward.1} parent=1 // loop_footer
      %s28 = sadd.s32 1, %s24
    $region7: #{flat_model_forward.1} parent=1 // loop_footer_branch
      %23 = sbr.rel target = $region3
    $region8: #{flat_model_forward.1} parent=1 // loop_exit
      _
    %4009 = vsyncpa [#allocation4], 1
    %s4010 = scalar_lea.sflag [#allocation4], 1
    %4011 = vsyncpa %s4010, 1

</llo_original>
